<compile_context>
chip_gen: v7x
topology: tpu7x:2x2x1
jax: 0.10.0
libtpu: 0.0.40
codegen_flags: <defaults>
</compile_context>

<pallas_src>
import numpy as np

import jax
import jax.numpy as jnp
from jax.experimental import pallas as pl
from jax.experimental.pallas import tpu as pltpu


_REP4 = 8   # layer-4 output rows replicated 8x -> head is one aligned matmul


# ---------------------------------------------------------------------------
# Fused kernel
# ---------------------------------------------------------------------------
def _cnn_fused_kernel(cols1_ref, w1_ref, b1_ref,
                      g2_ref, b2_ref, g3_ref, b3_ref, g4_ref, b4_ref,
                      bh_ref,
                      w2_hbm, w3_hbm, w4_hbm, wh_hbm,
                      out_ref,
                      w2_buf, w3_buf, w4_buf, wh_buf, dma_sem):
    f32, bf16 = jnp.float32, jnp.bfloat16

    # Kick off DMAs for the late-layer weights (~1.1 MiB) so they stream in
    # behind layer-1/2 compute; each is waited on right before first use.
    copies = []
    for i, (src, dst) in enumerate(((w2_hbm, w2_buf), (w3_hbm, w3_buf),
                                    (w4_hbm, w4_buf), (wh_hbm, wh_buf))):
        cp = pltpu.make_async_copy(src, dst, dma_sem.at[i])
        cp.start()
        copies.append(cp)

    # ---- layer 1: Conv(1->64) as im2col matmul (BN scale folded), +bias, ReLU
    a = jnp.dot(cols1_ref[...], w1_ref[...], preferred_element_type=f32)
    a = jnp.maximum(a + b1_ref[...], 0.0)                      # (256, B*64) f32

    # ---- layers 2..4: gather matmul (in-VMEM im2col) + ONE stacked-K matmul
    for g_ref, b_ref, w_buf, cp in ((g2_ref, b2_ref, w2_buf, copies[0]),
                                    (g3_ref, b3_ref, w3_buf, copies[1]),
                                    (g4_ref, b4_ref, w4_buf, copies[2])):
        m = g_ref.shape[0] // 9
        # All 9 shifted stride-2 windows at once: (9m, HW_in) @ (HW_in, B*64).
        p = jnp.dot(g_ref[...], a.astype(bf16), preferred_element_type=f32)
        # Regroup the 9 sublane-aligned row blocks onto lanes (vreg placement).
        p_wide = jnp.concatenate([p[t * m:(t + 1) * m, :] for t in range(9)],
                                 axis=1)                       # (m, 9*B*64) f32
        cp.wait()                                              # weights in VMEM
        z = jnp.dot(p_wide.astype(bf16), w_buf[...], preferred_element_type=f32)
        a = jnp.maximum(z + b_ref[...], 0.0)                   # (m, B*64) f32

    # ---- pool (identity at 2x2) + NCHW flatten + Linear as ONE matmul.
    # Layer-4 rows are replicated _REP4 x, so each spatial position is a full
    # 8-sublane block; concatenating the 4 blocks onto lanes yields 8 identical
    # copies of the flattened feature row -> one (8, 4*B*64) @ (4*B*64, B*o_pad).
    hcat = jnp.concatenate([a[r * _REP4:(r + 1) * _REP4, :] for r in range(4)],
                           axis=1)                             # (8, 4*B*64) f32
    copies[3].wait()
    logits = jnp.dot(hcat.astype(bf16), wh_buf[...], preferred_element_type=f32)
    out_ref[...] = (logits + bh_ref[...]).astype(out_ref.dtype)


# ---------------------------------------------------------------------------
# Wrapper-side constant construction
# ---------------------------------------------------------------------------
def _vmem_spec(shape):
    nd = len(shape)
    return pl.BlockSpec(shape, lambda i, _nd=nd: (0,) * _nd)


def _gather_matrix_np(H, W, in_rows, rep=1):
    """Stacked 0/1 gather for a k=3, s=2, p=1 conv: (9*m_blk, in_rows).

    Row t*m_blk + (i*Wo+j)*rep + s selects padded input position
    (2i+kh-1, 2j+kw-1) for tap t = kh*3+kw (zero row when out of bounds);
    each output position is replicated `rep` times.  m_blk is a multiple of 8
    so the per-tap row blocks are sublane-aligned inside the kernel.
    """
    Ho, Wo = H // 2, W // 2
    m_blk = ((Ho * Wo * rep + 7) // 8) * 8
    g = np.zeros((9 * m_blk, in_rows), np.float32)
    for kh in range(3):
        for kw in range(3):
            t = kh * 3 + kw
            for i in range(Ho):
                h = 2 * i + kh - 1
                if not (0 <= h < H):
                    continue
                for j in range(Wo):
                    w = 2 * j + kw - 1
                    if not (0 <= w < W):
                        continue
                    for s in range(rep):
                        g[t * m_blk + (i * Wo + j) * rep + s, h * W + w] = 1.0
    return g, m_blk


def _block_diag_batch(mat, B):
    """(r, c) -> (B*r, B*c) block-diagonal copy per batch element."""
    r, c = mat.shape
    eye = jnp.eye(B, dtype=mat.dtype)
    return jnp.einsum('ab,rc->arbc', eye, mat).reshape(B * r, B * c)


def _conv_tap_weight_stack(w, scale, B):
    """(Cout,Cin,3,3) -> (9*B*Cin, B*Cout) stacked-K block-diag, BN scale folded."""
    cout, cin = w.shape[0], w.shape[1]
    w_t = jnp.transpose(w, (2, 3, 1, 0)).reshape(9, cin, cout) * scale[None, None, :]
    bd = jnp.stack([_block_diag_batch(w_t[t], B) for t in range(9)], axis=0)
    return bd.reshape(9 * B * cin, B * cout)


# ---------------------------------------------------------------------------
# Forward pass
# ---------------------------------------------------------------------------
def cnn_clf_forward(x, params):
    """x: (B, H, W) float32, params as produced by make_params."""
    B, H, W = x.shape
    # Four stride-2 convs turn 32 -> 2, making adaptive_avg_pool2d((2,2)) identity.
    assert H == 32 and W == 32, "fused kernel assumes 32x32 inputs"
    # TODO(synk): general adaptive_avg_pool2d (uneven bins) for other input sizes.

    f32, bf16 = jnp.float32, jnp.bfloat16
    eps = 1e-5
    C = 64
    lw, lb = params["linear"]                       # (O, 256), (O,)
    out_dim = lb.shape[0]
    o_pad = ((out_dim + 127) // 128) * 128          # lane-dense padded head width

    # ---- fold BatchNorm (eval) into per-channel scale (-> weights) and bias ----
    folded = []
    for (w, b, gamma, beta, mean, var) in params["conv"]:
        scale = gamma / jnp.sqrt(var + eps)
        bias = (b - mean) * scale + beta
        folded.append((w, scale, bias))

    # ---- layer-1 operands: wrapper-side im2col of the 1-channel input (bf16) ----
    w1, s1, b1 = folded[0]
    Ho1, Wo1 = H // 2, W // 2
    xp = jnp.pad(x.astype(f32), ((0, 0), (1, 1), (1, 1)))
    pats = [xp[:, kh:kh + 2 * Ho1:2, kw:kw + 2 * Wo1:2]
            for kh in range(3) for kw in range(3)]             # 9 x (B, Ho1, Wo1)
    cols1 = jnp.stack(pats, axis=-1)                           # (B, Ho1, Wo1, 9)
    cols1 = jnp.transpose(cols1, (1, 2, 0, 3)).reshape(Ho1 * Wo1, B * 9).astype(bf16)
    w1_mat = jnp.transpose(w1, (2, 3, 1, 0)).reshape(9, C) * s1[None, :]
    w1_bd = _block_diag_batch(w1_mat, B).astype(bf16)          # (B*9, B*64)
    b1_row = jnp.tile(b1, B)[None, :].astype(f32)

    # ---- layers 2..4: gather matrices + stacked-K block-diag tap weights ----
    gs, wstacks, brows = [], [], []
    Hc, Wc = Ho1, Wo1
    prev_rows = Ho1 * Wo1
    reps = (1, 1, _REP4)
    for li, (w, s, bsh) in enumerate(folded[1:]):
        g_np, m_blk = _gather_matrix_np(Hc, Wc, prev_rows, rep=reps[li])
        gs.append(jnp.asarray(g_np, bf16))
        wstacks.append(_conv_tap_weight_stack(w, s, B).astype(bf16))  # (1152,128)
        brows.append(jnp.tile(bsh, B)[None, :].astype(f32))
        prev_rows = m_blk
        Hc, Wc = Hc // 2, Wc // 2

    # ---- head: pool(identity) + NCHW flatten + Linear as one stacked weight ----
    # feat_pt[b, c*4 + (i*2+j)] == act4_nhwc[b, i, j, c]
    wh_taps = []
    for r in range(4):                                          # r = i*2 + j
        sel = lw[:, jnp.arange(C) * 4 + r]                      # (O, 64)
        base = jnp.zeros((C, o_pad), f32).at[:, :out_dim].set(sel.T)
        wh_taps.append(_block_diag_batch(base, B))              # (B*64, B*o_pad)
    wh_flat = jnp.stack(wh_taps, axis=0).reshape(4 * B * C, B * o_pad).astype(bf16)
    bh_row = jnp.tile(jnp.pad(lb, (0, o_pad - out_dim)), B)[None, :].astype(f32)

    auto_ops = [cols1, w1_bd, b1_row,
                gs[0], brows[0], gs[1], brows[1], gs[2], brows[2],
                bh_row]
    hbm_ops = [wstacks[0], wstacks[1], wstacks[2], wh_flat]     # manually DMA'd

    # ---- advisory cost estimate ----
    lanes = B * C
    flops = 2 * cols1.shape[0] * cols1.shape[1] * lanes
    for g, ws in zip(gs, wstacks):
        m = g.shape[0] // 9
        flops += 2 * g.shape[0] * g.shape[1] * lanes            # gather matmul
        flops += 2 * m * ws.shape[0] * ws.shape[1]              # stacked tap matmul
    flops += 2 * _REP4 * wh_flat.shape[0] * wh_flat.shape[1]    # head matmul
    bytes_accessed = sum(int(np.prod(op.shape)) * op.dtype.itemsize
                         for op in auto_ops + hbm_ops) + _REP4 * B * o_pad * 4

    out = pl.pallas_call(
        _cnn_fused_kernel,
        out_shape=jax.ShapeDtypeStruct((_REP4, B * o_pad), f32),
        grid=(1,),
        in_specs=([_vmem_spec(op.shape) for op in auto_ops]
                  + [pl.BlockSpec(memory_space=pl.ANY)] * len(hbm_ops)),
        out_specs=_vmem_spec((_REP4, B * o_pad)),
        scratch_shapes=[pltpu.VMEM(wstacks[0].shape, bf16),
                        pltpu.VMEM(wstacks[1].shape, bf16),
                        pltpu.VMEM(wstacks[2].shape, bf16),
                        pltpu.VMEM(wh_flat.shape, bf16),
                        pltpu.SemaphoreType.DMA((4,))],
        compiler_params=pltpu.CompilerParams(
            dimension_semantics=("arbitrary",),
            vmem_limit_bytes=8 * 1024 * 1024),
        cost_estimate=pl.CostEstimate(flops=int(flops), transcendentals=0,
                                      bytes_accessed=int(bytes_accessed)),
    )(*auto_ops, *hbm_ops)

    # Every output row is an identical copy of the logits; de-interleave batch.
    return out[0].reshape(B, o_pad)[:, :out_dim]


# ---------------------------------------------------------------------------
# Parameters (deterministic synthetic, PyTorch shapes) + pure-numpy reference
# ---------------------------------------------------------------------------
def make_params(key, output_dim=10):
    params = {"conv": []}
    for cin in (1, 64, 64, 64):
        cout = 64
        key, kw, kb, kg, kbe, km, kv = jax.random.split(key, 7)
        w = 0.1 * jax.random.normal(kw, (cout, cin, 3, 3), jnp.float32)
        b = 0.1 * jax.random.normal(kb, (cout,), jnp.float32)
        gamma = 1.0 + 0.1 * jax.random.normal(kg, (cout,), jnp.float32)
        beta = 0.1 * jax.random.normal(kbe, (cout,), jnp.float32)
        mean = 0.1 * jax.random.normal(km, (cout,), jnp.float32)
        var = jax.random.uniform(kv, (cout,), jnp.float32, 0.5, 1.5)
        params["conv"].append((w, b, gamma, beta, mean, var))
    key, kw, kb = jax.random.split(key, 3)
    lw = 0.1 * jax.random.normal(kw, (output_dim, 256), jnp.float32)
    lb = 0.1 * jax.random.normal(kb, (output_dim,), jnp.float32)
    params["linear"] = (lw, lb)
    return params


def _ref_forward_np(x, params):
    """f32 numpy reference of CNNClf.forward (BatchNorm in eval mode)."""
    eps = 1e-5
    a = np.asarray(x, np.float32)[:, None, :, :]                # (B,1,H,W)
    for (w, b, gamma, beta, mean, var) in params["conv"]:
        w = np.asarray(w, np.float32)
        b, gamma, beta, mean, var = (np.asarray(v, np.float32)
                                     for v in (b, gamma, beta, mean, var))
        Bn, Cin, H, W = a.shape
        Ho, Wo = H // 2, W // 2
        ap = np.pad(a, ((0, 0), (0, 0), (1, 1), (1, 1)))
        cols = np.stack([ap[:, :, kh:kh + 2 * Ho:2, kw:kw + 2 * Wo:2]
                         for kh in range(3) for kw in range(3)], axis=2)
        cols = cols.reshape(Bn, Cin * 9, Ho * Wo)
        wm = w.reshape(w.shape[0], Cin * 9)
        z = np.einsum('of,bfp->bop', wm, cols) + b[None, :, None]
        z = ((z - mean[None, :, None]) / np.sqrt(var[None, :, None] + eps)
             * gamma[None, :, None] + beta[None, :, None])
        a = np.maximum(z, 0.0).reshape(Bn, w.shape[0], Ho, Wo)
    feat = a.reshape(a.shape[0], -1)                            # pool(2,2) identity
    lw, lb = params["linear"]
    return feat @ np.asarray(lw, np.float32).T + np.asarray(lb, np.float32)


if __name__ == "__main__":
    key = jax.random.PRNGKey(0)
    key, kx = jax.random.split(key)
    B, H, W, OUT = 2, 32, 32, 10          # 32 -> 16 -> 8 -> 4 -> 2; 64*2*2 = 256 features
    x = jax.random.normal(kx, (B, H, W), jnp.float32)
    params = make_params(key, output_dim=OUT)

    fwd = jax.jit(cnn_clf_forward)
    out = jax.block_until_ready(fwd(x, params))
    assert out.shape == (B, OUT) and out.dtype == jnp.float32

    ref = _ref_forward_np(np.asarray(x), params)
    np.testing.assert_allclose(np.asarray(out), ref, rtol=1e-1, atol=1e-1)
    print("KERNEL_OK")
</pallas_src>

<mosaic_0001>
module attributes {stable_mosaic.version = 11 : i64} {
  func.func @_cnn_fused_kernel(%arg0: i32, %arg1: memref<256x18xbf16, #tpu.memory_space<vmem>>, %arg2: memref<18x128xbf16, #tpu.memory_space<vmem>>, %arg3: memref<1x128xf32, #tpu.memory_space<vmem>>, %arg4: memref<576x256xbf16, #tpu.memory_space<vmem>>, %arg5: memref<1x128xf32, #tpu.memory_space<vmem>>, %arg6: memref<144x64xbf16, #tpu.memory_space<vmem>>, %arg7: memref<1x128xf32, #tpu.memory_space<vmem>>, %arg8: memref<288x16xbf16, #tpu.memory_space<vmem>>, %arg9: memref<1x128xf32, #tpu.memory_space<vmem>>, %arg10: memref<1x256xf32, #tpu.memory_space<vmem>>, %arg11: memref<1152x128xbf16, #tpu.memory_space<any>>, %arg12: memref<1152x128xbf16, #tpu.memory_space<any>>, %arg13: memref<1152x128xbf16, #tpu.memory_space<any>>, %arg14: memref<512x256xbf16, #tpu.memory_space<any>>, %arg15: memref<8x256xf32, #tpu.memory_space<vmem>>, %arg16: memref<1152x128xbf16, #tpu.memory_space<vmem>>, %arg17: memref<1152x128xbf16, #tpu.memory_space<vmem>>, %arg18: memref<1152x128xbf16, #tpu.memory_space<vmem>>, %arg19: memref<512x256xbf16, #tpu.memory_space<vmem>>, %arg20: memref<4x!tpu.dma_semaphore, #tpu.memory_space<semaphore_mem>>) attributes {dimension_semantics = [#tpu.dimension_semantics<arbitrary>], iteration_bounds = array<i64: 1>, scalar_prefetch = 0 : i64, scratch_operands = 5 : i64, tpu.core_type = #tpu.core_type<tc>, window_params = [{pipeline_mode = #tpu.pipeline_mode<synchronous>, transform_indices = @transform_0, window_bounds = array<i64: 256, 18>}, {pipeline_mode = #tpu.pipeline_mode<synchronous>, transform_indices = @transform_1, window_bounds = array<i64: 18, 128>}, {pipeline_mode = #tpu.pipeline_mode<synchronous>, transform_indices = @transform_2, window_bounds = array<i64: 1, 128>}, {pipeline_mode = #tpu.pipeline_mode<synchronous>, transform_indices = @transform_3, window_bounds = array<i64: 576, 256>}, {pipeline_mode = #tpu.pipeline_mode<synchronous>, transform_indices = @transform_4, window_bounds = array<i64: 1, 128>}, {pipeline_mode = #tpu.pipeline_mode<synchronous>, transform_indices = @transform_5, window_bounds = array<i64: 144, 64>}, {pipeline_mode = #tpu.pipeline_mode<synchronous>, transform_indices = @transform_6, window_bounds = array<i64: 1, 128>}, {pipeline_mode = #tpu.pipeline_mode<synchronous>, transform_indices = @transform_7, window_bounds = array<i64: 288, 16>}, {pipeline_mode = #tpu.pipeline_mode<synchronous>, transform_indices = @transform_8, window_bounds = array<i64: 1, 128>}, {pipeline_mode = #tpu.pipeline_mode<synchronous>, transform_indices = @transform_9, window_bounds = array<i64: 1, 256>}, {}, {}, {}, {}, {pipeline_mode = #tpu.pipeline_mode<synchronous>, transform_indices = @transform_14, window_bounds = array<i64: 8, 256>}]} {
    %c0_i32 = arith.constant 0 : i32
    %0 = tpu.memref_slice %arg20[%c0_i32] : memref<4x!tpu.dma_semaphore, #tpu.memory_space<semaphore_mem>> -> memref<1x!tpu.dma_semaphore, #tpu.memory_space<semaphore_mem>>
    %1 = tpu.memref_squeeze %0 : memref<1x!tpu.dma_semaphore, #tpu.memory_space<semaphore_mem>> -> memref<!tpu.dma_semaphore, #tpu.memory_space<semaphore_mem>>
    tpu.enqueue_dma source(%arg11 : memref<1152x128xbf16, #tpu.memory_space<any>>) target(%arg16 : memref<1152x128xbf16, #tpu.memory_space<vmem>>) target_semaphore(%1 : memref<!tpu.dma_semaphore, #tpu.memory_space<semaphore_mem>>)
    %c1_i32 = arith.constant 1 : i32
    %2 = tpu.memref_slice %arg20[%c1_i32] : memref<4x!tpu.dma_semaphore, #tpu.memory_space<semaphore_mem>> -> memref<1x!tpu.dma_semaphore, #tpu.memory_space<semaphore_mem>>
    %3 = tpu.memref_squeeze %2 : memref<1x!tpu.dma_semaphore, #tpu.memory_space<semaphore_mem>> -> memref<!tpu.dma_semaphore, #tpu.memory_space<semaphore_mem>>
    tpu.enqueue_dma source(%arg12 : memref<1152x128xbf16, #tpu.memory_space<any>>) target(%arg17 : memref<1152x128xbf16, #tpu.memory_space<vmem>>) target_semaphore(%3 : memref<!tpu.dma_semaphore, #tpu.memory_space<semaphore_mem>>)
    %c2_i32 = arith.constant 2 : i32
    %4 = tpu.memref_slice %arg20[%c2_i32] : memref<4x!tpu.dma_semaphore, #tpu.memory_space<semaphore_mem>> -> memref<1x!tpu.dma_semaphore, #tpu.memory_space<semaphore_mem>>
    %5 = tpu.memref_squeeze %4 : memref<1x!tpu.dma_semaphore, #tpu.memory_space<semaphore_mem>> -> memref<!tpu.dma_semaphore, #tpu.memory_space<semaphore_mem>>
    tpu.enqueue_dma source(%arg13 : memref<1152x128xbf16, #tpu.memory_space<any>>) target(%arg18 : memref<1152x128xbf16, #tpu.memory_space<vmem>>) target_semaphore(%5 : memref<!tpu.dma_semaphore, #tpu.memory_space<semaphore_mem>>)
    %c3_i32 = arith.constant 3 : i32
    %6 = tpu.memref_slice %arg20[%c3_i32] : memref<4x!tpu.dma_semaphore, #tpu.memory_space<semaphore_mem>> -> memref<1x!tpu.dma_semaphore, #tpu.memory_space<semaphore_mem>>
    %7 = tpu.memref_squeeze %6 : memref<1x!tpu.dma_semaphore, #tpu.memory_space<semaphore_mem>> -> memref<!tpu.dma_semaphore, #tpu.memory_space<semaphore_mem>>
    tpu.enqueue_dma source(%arg14 : memref<512x256xbf16, #tpu.memory_space<any>>) target(%arg19 : memref<512x256xbf16, #tpu.memory_space<vmem>>) target_semaphore(%7 : memref<!tpu.dma_semaphore, #tpu.memory_space<semaphore_mem>>)
    %c0 = arith.constant 0 : index
    %c0_0 = arith.constant 0 : index
    %8 = vector.load %arg1[%c0, %c0_0] : memref<256x18xbf16, #tpu.memory_space<vmem>>, vector<256x18xbf16>
    %c0_1 = arith.constant 0 : index
    %c0_2 = arith.constant 0 : index
    %9 = vector.load %arg2[%c0_1, %c0_2] : memref<18x128xbf16, #tpu.memory_space<vmem>>, vector<18x128xbf16>
    %cst = arith.constant dense<0.000000e+00> : vector<256x128xf32>
    %10 = tpu.matmul %8, %9, %cst {dimension_numbers = #tpu.dot_dimension_numbers<[1], [0], [0], [1], [0, 0, 1, 1], [], []>} : vector<256x18xbf16>, vector<18x128xbf16>, vector<256x128xf32> -> vector<256x128xf32>
    %c0_3 = arith.constant 0 : index
    %c0_4 = arith.constant 0 : index
    %11 = vector.load %arg3[%c0_3, %c0_4] : memref<1x128xf32, #tpu.memory_space<vmem>>, vector<1x128xf32>
    %12 = vector.broadcast %11 : vector<1x128xf32> to vector<256x128xf32>
    %13 = arith.addf %10, %12 : vector<256x128xf32>
    %cst_5 = arith.constant 0.000000e+00 : f32
    %14 = vector.broadcast %cst_5 : f32 to vector<256x128xf32>
    %15 = arith.maximumf %13, %14 : vector<256x128xf32>
    %c0_6 = arith.constant 0 : index
    %c0_7 = arith.constant 0 : index
    %16 = vector.load %arg4[%c0_6, %c0_7] : memref<576x256xbf16, #tpu.memory_space<vmem>>, vector<576x256xbf16>
    %17 = arith.truncf %15 : vector<256x128xf32> to vector<256x128xbf16>
    %cst_8 = arith.constant dense<0.000000e+00> : vector<576x128xf32>
    %18 = tpu.matmul %16, %17, %cst_8 {dimension_numbers = #tpu.dot_dimension_numbers<[1], [0], [0], [1], [0, 0, 1, 1], [], []>} : vector<576x256xbf16>, vector<256x128xbf16>, vector<576x128xf32> -> vector<576x128xf32>
    %19 = vector.extract_strided_slice %18 {offsets = [0, 0], sizes = [64, 128], strides = [1, 1]} : vector<576x128xf32> to vector<64x128xf32>
    %20 = vector.extract_strided_slice %18 {offsets = [64, 0], sizes = [64, 128], strides = [1, 1]} : vector<576x128xf32> to vector<64x128xf32>
    %21 = vector.extract_strided_slice %18 {offsets = [128, 0], sizes = [64, 128], strides = [1, 1]} : vector<576x128xf32> to vector<64x128xf32>
    %22 = vector.extract_strided_slice %18 {offsets = [192, 0], sizes = [64, 128], strides = [1, 1]} : vector<576x128xf32> to vector<64x128xf32>
    %23 = vector.extract_strided_slice %18 {offsets = [256, 0], sizes = [64, 128], strides = [1, 1]} : vector<576x128xf32> to vector<64x128xf32>
    %24 = vector.extract_strided_slice %18 {offsets = [320, 0], sizes = [64, 128], strides = [1, 1]} : vector<576x128xf32> to vector<64x128xf32>
    %25 = vector.extract_strided_slice %18 {offsets = [384, 0], sizes = [64, 128], strides = [1, 1]} : vector<576x128xf32> to vector<64x128xf32>
    %26 = vector.extract_strided_slice %18 {offsets = [448, 0], sizes = [64, 128], strides = [1, 1]} : vector<576x128xf32> to vector<64x128xf32>
    %27 = vector.extract_strided_slice %18 {offsets = [512, 0], sizes = [64, 128], strides = [1, 1]} : vector<576x128xf32> to vector<64x128xf32>
    %28 = tpu.concatenate %19, %20, %21, %22, %23, %24, %25, %26, %27 in 1 : vector<64x128xf32>, vector<64x128xf32>, vector<64x128xf32>, vector<64x128xf32>, vector<64x128xf32>, vector<64x128xf32>, vector<64x128xf32>, vector<64x128xf32>, vector<64x128xf32> -> vector<64x1152xf32>
    %c0_i32_9 = arith.constant 0 : i32
    %29 = tpu.memref_slice %arg20[%c0_i32_9] : memref<4x!tpu.dma_semaphore, #tpu.memory_space<semaphore_mem>> -> memref<1x!tpu.dma_semaphore, #tpu.memory_space<semaphore_mem>>
    %30 = tpu.memref_squeeze %29 : memref<1x!tpu.dma_semaphore, #tpu.memory_space<semaphore_mem>> -> memref<!tpu.dma_semaphore, #tpu.memory_space<semaphore_mem>>
    tpu.wait_dma2 semaphore(%30 : memref<!tpu.dma_semaphore, #tpu.memory_space<semaphore_mem>>) src(%arg11 : memref<1152x128xbf16, #tpu.memory_space<any>>) dst(%arg16 : memref<1152x128xbf16, #tpu.memory_space<vmem>>)
    %31 = arith.truncf %28 : vector<64x1152xf32> to vector<64x1152xbf16>
    %c0_10 = arith.constant 0 : index
    %c0_11 = arith.constant 0 : index
    %32 = vector.load %arg16[%c0_10, %c0_11] : memref<1152x128xbf16, #tpu.memory_space<vmem>>, vector<1152x128xbf16>
    %cst_12 = arith.constant dense<0.000000e+00> : vector<64x128xf32>
    %33 = tpu.matmul %31, %32, %cst_12 {dimension_numbers = #tpu.dot_dimension_numbers<[1], [0], [0], [1], [0, 0, 1, 1], [], []>} : vector<64x1152xbf16>, vector<1152x128xbf16>, vector<64x128xf32> -> vector<64x128xf32>
    %c0_13 = arith.constant 0 : index
    %c0_14 = arith.constant 0 : index
    %34 = vector.load %arg5[%c0_13, %c0_14] : memref<1x128xf32, #tpu.memory_space<vmem>>, vector<1x128xf32>
    %35 = vector.broadcast %34 : vector<1x128xf32> to vector<64x128xf32>
    %36 = arith.addf %33, %35 : vector<64x128xf32>
    %cst_15 = arith.constant 0.000000e+00 : f32
    %37 = vector.broadcast %cst_15 : f32 to vector<64x128xf32>
    %38 = arith.maximumf %36, %37 : vector<64x128xf32>
    %c0_16 = arith.constant 0 : index
    %c0_17 = arith.constant 0 : index
    %39 = vector.load %arg6[%c0_16, %c0_17] : memref<144x64xbf16, #tpu.memory_space<vmem>>, vector<144x64xbf16>
    %40 = arith.truncf %38 : vector<64x128xf32> to vector<64x128xbf16>
    %cst_18 = arith.constant dense<0.000000e+00> : vector<144x128xf32>
    %41 = tpu.matmul %39, %40, %cst_18 {dimension_numbers = #tpu.dot_dimension_numbers<[1], [0], [0], [1], [0, 0, 1, 1], [], []>} : vector<144x64xbf16>, vector<64x128xbf16>, vector<144x128xf32> -> vector<144x128xf32>
    %42 = vector.extract_strided_slice %41 {offsets = [0, 0], sizes = [16, 128], strides = [1, 1]} : vector<144x128xf32> to vector<16x128xf32>
    %43 = vector.extract_strided_slice %41 {offsets = [16, 0], sizes = [16, 128], strides = [1, 1]} : vector<144x128xf32> to vector<16x128xf32>
    %44 = vector.extract_strided_slice %41 {offsets = [32, 0], sizes = [16, 128], strides = [1, 1]} : vector<144x128xf32> to vector<16x128xf32>
    %45 = vector.extract_strided_slice %41 {offsets = [48, 0], sizes = [16, 128], strides = [1, 1]} : vector<144x128xf32> to vector<16x128xf32>
    %46 = vector.extract_strided_slice %41 {offsets = [64, 0], sizes = [16, 128], strides = [1, 1]} : vector<144x128xf32> to vector<16x128xf32>
    %47 = vector.extract_strided_slice %41 {offsets = [80, 0], sizes = [16, 128], strides = [1, 1]} : vector<144x128xf32> to vector<16x128xf32>
    %48 = vector.extract_strided_slice %41 {offsets = [96, 0], sizes = [16, 128], strides = [1, 1]} : vector<144x128xf32> to vector<16x128xf32>
    %49 = vector.extract_strided_slice %41 {offsets = [112, 0], sizes = [16, 128], strides = [1, 1]} : vector<144x128xf32> to vector<16x128xf32>
    %50 = vector.extract_strided_slice %41 {offsets = [128, 0], sizes = [16, 128], strides = [1, 1]} : vector<144x128xf32> to vector<16x128xf32>
    %51 = tpu.concatenate %42, %43, %44, %45, %46, %47, %48, %49, %50 in 1 : vector<16x128xf32>, vector<16x128xf32>, vector<16x128xf32>, vector<16x128xf32>, vector<16x128xf32>, vector<16x128xf32>, vector<16x128xf32>, vector<16x128xf32>, vector<16x128xf32> -> vector<16x1152xf32>
    %c1_i32_19 = arith.constant 1 : i32
    %52 = tpu.memref_slice %arg20[%c1_i32_19] : memref<4x!tpu.dma_semaphore, #tpu.memory_space<semaphore_mem>> -> memref<1x!tpu.dma_semaphore, #tpu.memory_space<semaphore_mem>>
    %53 = tpu.memref_squeeze %52 : memref<1x!tpu.dma_semaphore, #tpu.memory_space<semaphore_mem>> -> memref<!tpu.dma_semaphore, #tpu.memory_space<semaphore_mem>>
    tpu.wait_dma2 semaphore(%53 : memref<!tpu.dma_semaphore, #tpu.memory_space<semaphore_mem>>) src(%arg12 : memref<1152x128xbf16, #tpu.memory_space<any>>) dst(%arg17 : memref<1152x128xbf16, #tpu.memory_space<vmem>>)
    %54 = arith.truncf %51 : vector<16x1152xf32> to vector<16x1152xbf16>
    %c0_20 = arith.constant 0 : index
    %c0_21 = arith.constant 0 : index
    %55 = vector.load %arg17[%c0_20, %c0_21] : memref<1152x128xbf16, #tpu.memory_space<vmem>>, vector<1152x128xbf16>
    %cst_22 = arith.constant dense<0.000000e+00> : vector<16x128xf32>
    %56 = tpu.matmul %54, %55, %cst_22 {dimension_numbers = #tpu.dot_dimension_numbers<[1], [0], [0], [1], [0, 0, 1, 1], [], []>} : vector<16x1152xbf16>, vector<1152x128xbf16>, vector<16x128xf32> -> vector<16x128xf32>
    %c0_23 = arith.constant 0 : index
    %c0_24 = arith.constant 0 : index
    %57 = vector.load %arg7[%c0_23, %c0_24] : memref<1x128xf32, #tpu.memory_space<vmem>>, vector<1x128xf32>
    %58 = vector.broadcast %57 : vector<1x128xf32> to vector<16x128xf32>
    %59 = arith.addf %56, %58 : vector<16x128xf32>
    %cst_25 = arith.constant 0.000000e+00 : f32
    %60 = vector.broadcast %cst_25 : f32 to vector<16x128xf32>
    %61 = arith.maximumf %59, %60 : vector<16x128xf32>
    %c0_26 = arith.constant 0 : index
    %c0_27 = arith.constant 0 : index
    %62 = vector.load %arg8[%c0_26, %c0_27] : memref<288x16xbf16, #tpu.memory_space<vmem>>, vector<288x16xbf16>
    %63 = arith.truncf %61 : vector<16x128xf32> to vector<16x128xbf16>
    %cst_28 = arith.constant dense<0.000000e+00> : vector<288x128xf32>
    %64 = tpu.matmul %62, %63, %cst_28 {dimension_numbers = #tpu.dot_dimension_numbers<[1], [0], [0], [1], [0, 0, 1, 1], [], []>} : vector<288x16xbf16>, vector<16x128xbf16>, vector<288x128xf32> -> vector<288x128xf32>
    %65 = vector.extract_strided_slice %64 {offsets = [0, 0], sizes = [32, 128], strides = [1, 1]} : vector<288x128xf32> to vector<32x128xf32>
    %66 = vector.extract_strided_slice %64 {offsets = [32, 0], sizes = [32, 128], strides = [1, 1]} : vector<288x128xf32> to vector<32x128xf32>
    %67 = vector.extract_strided_slice %64 {offsets = [64, 0], sizes = [32, 128], strides = [1, 1]} : vector<288x128xf32> to vector<32x128xf32>
    %68 = vector.extract_strided_slice %64 {offsets = [96, 0], sizes = [32, 128], strides = [1, 1]} : vector<288x128xf32> to vector<32x128xf32>
    %69 = vector.extract_strided_slice %64 {offsets = [128, 0], sizes = [32, 128], strides = [1, 1]} : vector<288x128xf32> to vector<32x128xf32>
    %70 = vector.extract_strided_slice %64 {offsets = [160, 0], sizes = [32, 128], strides = [1, 1]} : vector<288x128xf32> to vector<32x128xf32>
    %71 = vector.extract_strided_slice %64 {offsets = [192, 0], sizes = [32, 128], strides = [1, 1]} : vector<288x128xf32> to vector<32x128xf32>
    %72 = vector.extract_strided_slice %64 {offsets = [224, 0], sizes = [32, 128], strides = [1, 1]} : vector<288x128xf32> to vector<32x128xf32>
    %73 = vector.extract_strided_slice %64 {offsets = [256, 0], sizes = [32, 128], strides = [1, 1]} : vector<288x128xf32> to vector<32x128xf32>
    %74 = tpu.concatenate %65, %66, %67, %68, %69, %70, %71, %72, %73 in 1 : vector<32x128xf32>, vector<32x128xf32>, vector<32x128xf32>, vector<32x128xf32>, vector<32x128xf32>, vector<32x128xf32>, vector<32x128xf32>, vector<32x128xf32>, vector<32x128xf32> -> vector<32x1152xf32>
    %c2_i32_29 = arith.constant 2 : i32
    %75 = tpu.memref_slice %arg20[%c2_i32_29] : memref<4x!tpu.dma_semaphore, #tpu.memory_space<semaphore_mem>> -> memref<1x!tpu.dma_semaphore, #tpu.memory_space<semaphore_mem>>
    %76 = tpu.memref_squeeze %75 : memref<1x!tpu.dma_semaphore, #tpu.memory_space<semaphore_mem>> -> memref<!tpu.dma_semaphore, #tpu.memory_space<semaphore_mem>>
    tpu.wait_dma2 semaphore(%76 : memref<!tpu.dma_semaphore, #tpu.memory_space<semaphore_mem>>) src(%arg13 : memref<1152x128xbf16, #tpu.memory_space<any>>) dst(%arg18 : memref<1152x128xbf16, #tpu.memory_space<vmem>>)
    %77 = arith.truncf %74 : vector<32x1152xf32> to vector<32x1152xbf16>
    %c0_30 = arith.constant 0 : index
    %c0_31 = arith.constant 0 : index
    %78 = vector.load %arg18[%c0_30, %c0_31] : memref<1152x128xbf16, #tpu.memory_space<vmem>>, vector<1152x128xbf16>
    %cst_32 = arith.constant dense<0.000000e+00> : vector<32x128xf32>
    %79 = tpu.matmul %77, %78, %cst_32 {dimension_numbers = #tpu.dot_dimension_numbers<[1], [0], [0], [1], [0, 0, 1, 1], [], []>} : vector<32x1152xbf16>, vector<1152x128xbf16>, vector<32x128xf32> -> vector<32x128xf32>
    %c0_33 = arith.constant 0 : index
    %c0_34 = arith.constant 0 : index
    %80 = vector.load %arg9[%c0_33, %c0_34] : memref<1x128xf32, #tpu.memory_space<vmem>>, vector<1x128xf32>
    %81 = vector.broadcast %80 : vector<1x128xf32> to vector<32x128xf32>
    %82 = arith.addf %79, %81 : vector<32x128xf32>
    %cst_35 = arith.constant 0.000000e+00 : f32
    %83 = vector.broadcast %cst_35 : f32 to vector<32x128xf32>
    %84 = arith.maximumf %82, %83 : vector<32x128xf32>
    %85 = vector.extract_strided_slice %84 {offsets = [0, 0], sizes = [8, 128], strides = [1, 1]} : vector<32x128xf32> to vector<8x128xf32>
    %86 = vector.extract_strided_slice %84 {offsets = [8, 0], sizes = [8, 128], strides = [1, 1]} : vector<32x128xf32> to vector<8x128xf32>
    %87 = vector.extract_strided_slice %84 {offsets = [16, 0], sizes = [8, 128], strides = [1, 1]} : vector<32x128xf32> to vector<8x128xf32>
    %88 = vector.extract_strided_slice %84 {offsets = [24, 0], sizes = [8, 128], strides = [1, 1]} : vector<32x128xf32> to vector<8x128xf32>
    %89 = tpu.concatenate %85, %86, %87, %88 in 1 : vector<8x128xf32>, vector<8x128xf32>, vector<8x128xf32>, vector<8x128xf32> -> vector<8x512xf32>
    %c3_i32_36 = arith.constant 3 : i32
    %90 = tpu.memref_slice %arg20[%c3_i32_36] : memref<4x!tpu.dma_semaphore, #tpu.memory_space<semaphore_mem>> -> memref<1x!tpu.dma_semaphore, #tpu.memory_space<semaphore_mem>>
    %91 = tpu.memref_squeeze %90 : memref<1x!tpu.dma_semaphore, #tpu.memory_space<semaphore_mem>> -> memref<!tpu.dma_semaphore, #tpu.memory_space<semaphore_mem>>
    tpu.wait_dma2 semaphore(%91 : memref<!tpu.dma_semaphore, #tpu.memory_space<semaphore_mem>>) src(%arg14 : memref<512x256xbf16, #tpu.memory_space<any>>) dst(%arg19 : memref<512x256xbf16, #tpu.memory_space<vmem>>)
    %92 = arith.truncf %89 : vector<8x512xf32> to vector<8x512xbf16>
    %c0_37 = arith.constant 0 : index
    %c0_38 = arith.constant 0 : index
    %93 = vector.load %arg19[%c0_37, %c0_38] : memref<512x256xbf16, #tpu.memory_space<vmem>>, vector<512x256xbf16>
    %cst_39 = arith.constant dense<0.000000e+00> : vector<8x256xf32>
    %94 = tpu.matmul %92, %93, %cst_39 {dimension_numbers = #tpu.dot_dimension_numbers<[1], [0], [0], [1], [0, 0, 1, 1], [], []>} : vector<8x512xbf16>, vector<512x256xbf16>, vector<8x256xf32> -> vector<8x256xf32>
    %c0_40 = arith.constant 0 : index
    %c0_41 = arith.constant 0 : index
    %95 = vector.load %arg10[%c0_40, %c0_41] : memref<1x256xf32, #tpu.memory_space<vmem>>, vector<1x256xf32>
    %96 = vector.broadcast %95 : vector<1x256xf32> to vector<8x256xf32>
    %97 = arith.addf %94, %96 : vector<8x256xf32>
    %c0_42 = arith.constant 0 : index
    %c0_43 = arith.constant 0 : index
    %98 = vector.load %arg15[%c0_42, %c0_43] : memref<8x256xf32, #tpu.memory_space<vmem>>, vector<8x256xf32>
    tpu.vector_store %arg15[%c0_42, %c0_43], %97 {strides = array<i32>} : memref<8x256xf32, #tpu.memory_space<vmem>>, vector<8x256xf32>,
    return
  }
  func.func @transform_0(%arg0: i32) -> (i32, i32) {
    %c0_i32 = arith.constant 0 : i32
    %c0_i32_0 = arith.constant 0 : i32
    %c0_i32_1 = arith.constant 0 : i32
    return %c0_i32, %c0_i32_0 : i32, i32
  }
  func.func @transform_1(%arg0: i32) -> (i32, i32) {
    %c0_i32 = arith.constant 0 : i32
    %c0_i32_0 = arith.constant 0 : i32
    %c0_i32_1 = arith.constant 0 : i32
    return %c0_i32, %c0_i32_0 : i32, i32
  }
  func.func @transform_2(%arg0: i32) -> (i32, i32) {
    %c0_i32 = arith.constant 0 : i32
    %c0_i32_0 = arith.constant 0 : i32
    %c0_i32_1 = arith.constant 0 : i32
    return %c0_i32, %c0_i32_0 : i32, i32
  }
  func.func @transform_3(%arg0: i32) -> (i32, i32) {
    %c0_i32 = arith.constant 0 : i32
    %c0_i32_0 = arith.constant 0 : i32
    %c0_i32_1 = arith.constant 0 : i32
    return %c0_i32, %c0_i32_0 : i32, i32
  }
  func.func @transform_4(%arg0: i32) -> (i32, i32) {
    %c0_i32 = arith.constant 0 : i32
    %c0_i32_0 = arith.constant 0 : i32
    %c0_i32_1 = arith.constant 0 : i32
    return %c0_i32, %c0_i32_0 : i32, i32
  }
  func.func @transform_5(%arg0: i32) -> (i32, i32) {
    %c0_i32 = arith.constant 0 : i32
    %c0_i32_0 = arith.constant 0 : i32
    %c0_i32_1 = arith.constant 0 : i32
    return %c0_i32, %c0_i32_0 : i32, i32
  }
  func.func @transform_6(%arg0: i32) -> (i32, i32) {
    %c0_i32 = arith.constant 0 : i32
    %c0_i32_0 = arith.constant 0 : i32
    %c0_i32_1 = arith.constant 0 : i32
    return %c0_i32, %c0_i32_0 : i32, i32
  }
  func.func @transform_7(%arg0: i32) -> (i32, i32) {
    %c0_i32 = arith.constant 0 : i32
    %c0_i32_0 = arith.constant 0 : i32
    %c0_i32_1 = arith.constant 0 : i32
    return %c0_i32, %c0_i32_0 : i32, i32
  }
  func.func @transform_8(%arg0: i32) -> (i32, i32) {
    %c0_i32 = arith.constant 0 : i32
    %c0_i32_0 = arith.constant 0 : i32
    %c0_i32_1 = arith.constant 0 : i32
    return %c0_i32, %c0_i32_0 : i32, i32
  }
  func.func @transform_9(%arg0: i32) -> (i32, i32) {
    %c0_i32 = arith.constant 0 : i32
    %c0_i32_0 = arith.constant 0 : i32
    %c0_i32_1 = arith.constant 0 : i32
    return %c0_i32, %c0_i32_0 : i32, i32
  }
  func.func @transform_14(%arg0: i32) -> (i32, i32) {
    %c0_i32 = arith.constant 0 : i32
    %c0_i32_0 = arith.constant 0 : i32
    %c0_i32_1 = arith.constant 0 : i32
    return %c0_i32, %c0_i32_0 : i32, i32
  }
}

</mosaic_0001>

<llo_original>
// kernel: tile.28
$region0: #{tile.28}
  #allocation0 [shape = 's32[1]{0}', space=sflag, size = 0x4, scoped, tag = 'scoped memory for tile.28']
  %s0 = inlined_call_operand.vmem [shape: f32[64], index: 0, kind: input, shape index: {}]
  %s1 = inlined_call_operand.vmem [shape: f32[2,64], index: 1, kind: output, shape index: {}]
  // Predicated region
  $region2: #{tile.28} parent=0 // pred_check
    _
  $region3: #{tile.28} parent=0 // pred_check_branch
    %3 = sbr.rel (0) target = $region5
  $region4: #{tile.28} parent=0 // pred_region
    _
  $region5: #{tile.28} parent=0 // pred_fallthru
    _
  %v4 = vld [vmem:[%s0] ss:$0 sm:$0xff]
  %5 = vst [vmem:[%s1] sm:$0x3] %v4

// kernel: tile.29
$region0: #{tile.29}
  %s0 = inlined_call_operand.vmem [shape: f32[2,64], index: 0, kind: input, shape index: {}]
  %s1 = inlined_call_operand.vmem [shape: f32[1,128], index: 1, kind: output, shape index: {}]
  $region1: #{tile.29} parent=0
    #allocation0 [shape = 'u8[4096]{0}', space=vmem, size = 0x1000, scoped, tag = 'scoped mem for output reshape']
    #allocation1 [shape = 'u8[4096]{0}', space=vmem, size = 0x1000, scoped, tag = 'scoped mem for input reshape']
    %s3 = sshllo.u32 0, 2
    %v4 = vld [vmem:[%s0] sm:%s3]
    %5 = vst [vmem:[#allocation1] sm:%s3] %v4
    %v6 = vld [vmem:[#allocation1] sm:$0x1]
    %vm7 = vcmask 523264
    %8 = vst.msk [vmem:[#allocation0] sm:$0x1] %vm7, %v6
    %s9 = scalar_lea.vmem [#allocation1], 1
    %v10 = vld [vmem:[%s9] sm:$0x1]
    %11 = vrot.lane.b32.xlu0 %v10, 64
    %v12 = vpop.permute.xlu0 %11
    %vm13 = vcmask 1048064
    %14 = vst.msk [vmem:[#allocation0] sm:$0x1] %vm13, %v12
    %s16 = sshllo.u32 0, 1
    %v18 = vld [vmem:[#allocation0] sm:%s16]
    %s19 = sshllo.u32 0, 1
    %20 = vst [vmem:[%s1] sm:%s19] %v18

// kernel: tile.48
$region0: #{tile.48}
  #allocation0 [shape = 's32[1]{0}', space=sflag, size = 0x4, scoped, tag = 'scoped memory for tile.48']
  %s0 = inlined_call_operand.vmem [shape: f32[128], index: 0, kind: input, shape index: {}]
  %s1 = inlined_call_operand.vmem [shape: f32[2,128], index: 1, kind: output, shape index: {}]
  // Predicated region
  $region2: #{tile.48} parent=0 // pred_check
    _
  $region3: #{tile.48} parent=0 // pred_check_branch
    %3 = sbr.rel (0) target = $region5
  $region4: #{tile.48} parent=0 // pred_region
    _
  $region5: #{tile.48} parent=0 // pred_fallthru
    _
  %v4 = vld [vmem:[%s0] ss:$0 sm:$0xff]
  %5 = vst [vmem:[%s1] sm:$0x3] %v4

// kernel: cnn_clf_forward.1
$region0: #{cnn_clf_forward.1}
  #allocation0 [shape = 'u32[]', space=smem, size = 0x4, offset = 0x4, fixed_abs, tag = 'smem constant byte address 0x4 - core index']
  #allocation1 [shape = 'u32[144,128]{1,0:T(1,128)}', space=vmem, size = 0x12000, scoped, tag = 'internal scratch']
  #allocation2 [shape = 'bf16[1152,128]{1,0:T(16,128)(2,1)}', space=vmem, size = 0x48000, scoped, tag = 'scratch operand']
  #allocation3 [shape = 'bf16[1152,128]{1,0:T(16,128)(2,1)}', space=vmem, size = 0x48000, scoped, tag = 'scratch operand']
  #allocation4 [shape = 'bf16[1152,128]{1,0:T(16,128)(2,1)}', space=vmem, size = 0x48000, scoped, tag = 'scratch operand']
  #allocation5 [shape = 'bf16[512,256]{1,0:T(16,128)(2,1)}', space=vmem, size = 0x40000, scoped, tag = 'scratch operand']
  #allocation6 [shape = 's32[4]{0}', space=sflag, size = 0x10, scoped, tag = 'scratch operand']
  #allocation7 [shape = 's32[]', space=sflag, size = 0x4, offset = 0, fixed_abs, tag = 'sflag constant byte address 0x0 - dummy sync flag']
  #allocation8 [shape = 's32[]', space=sflag, size = 0x4, offset = 0, fixed_abs, tag = 'sflag constant byte address 0x0 - dummy sync flag']
  #allocation9 [shape = 's32[]', space=sflag, size = 0x4, offset = 0, fixed_abs, tag = 'sflag constant byte address 0x0 - dummy sync flag']
  #allocation10 [shape = 's32[]', space=sflag, size = 0x4, offset = 0, fixed_abs, tag = 'sflag constant byte address 0x0 - dummy sync flag']
  %s0 = inlined_call_operand.vmem [shape: bf16[256,18], index: 0, kind: input, shape index: {}]
  %s1 = inlined_call_operand.vmem [shape: bf16[18,128], index: 1, kind: input, shape index: {}]
  %s2 = inlined_call_operand.vmem [shape: f32[1,128], index: 2, kind: input, shape index: {}]
  %s3 = inlined_call_operand.vmem [shape: bf16[576,256], index: 3, kind: input, shape index: {}]
  %s4 = inlined_call_operand.vmem [shape: f32[1,128], index: 4, kind: input, shape index: {}]
  %s5 = inlined_call_operand.vmem [shape: bf16[144,64], index: 5, kind: input, shape index: {}]
  %s6 = inlined_call_operand.vmem [shape: f32[1,128], index: 6, kind: input, shape index: {}]
  %s7 = inlined_call_operand.vmem [shape: bf16[288,16], index: 7, kind: input, shape index: {}]
  %s8 = inlined_call_operand.vmem [shape: f32[1,128], index: 8, kind: input, shape index: {}]
  %s9 = inlined_call_operand.vmem [shape: f32[1,256], index: 9, kind: input, shape index: {}]
  %s10 = inlined_call_operand.vmem [shape: bf16[1152,128], index: 10, kind: input, shape index: {}]
  %s11 = inlined_call_operand.vmem [shape: bf16[1152,128], index: 11, kind: input, shape index: {}]
  %s12 = inlined_call_operand.vmem [shape: bf16[1152,128], index: 12, kind: input, shape index: {}]
  %s13 = inlined_call_operand.vmem [shape: bf16[512,256], index: 13, kind: input, shape index: {}]
  %s14 = inlined_call_operand.vmem [shape: f32[8,256], index: 14, kind: output, shape index: {}]
  %s15 = sld [smem:[#allocation0]]
  $region189: #{cnn_clf_forward.1} parent=0
    _
  %s17 = ssub.s32 1, %s15
  %s18 = scalar_select 0, %s17, %s15
  // Predicated region
  $region2: #{cnn_clf_forward.1} parent=0 // pred_check
    _
  $region3: #{cnn_clf_forward.1} parent=0 // pred_check_branch
    %20 = sbr.rel (0) target = $region5
  $region4: #{cnn_clf_forward.1} parent=0 // pred_region
    _
  $region5: #{cnn_clf_forward.1} parent=0 // pred_fallthru
    _
  // Predicated region
  $region6: #{cnn_clf_forward.1} parent=0 // pred_check
    _
  $region7: #{cnn_clf_forward.1} parent=0 // pred_check_branch
    %22 = sbr.rel (0) target = $region9
  $region8: #{cnn_clf_forward.1} parent=0 // pred_region
    _
  $region9: #{cnn_clf_forward.1} parent=0 // pred_fallthru
    _
  // Predicated region
  $region10: #{cnn_clf_forward.1} parent=0 // pred_check
    _
  $region11: #{cnn_clf_forward.1} parent=0 // pred_check_branch
    %24 = sbr.rel (0) target = $region13
  $region12: #{cnn_clf_forward.1} parent=0 // pred_region
    _
  $region13: #{cnn_clf_forward.1} parent=0 // pred_fallthru
    _
  // Predicated region
  $region14: #{cnn_clf_forward.1} parent=0 // pred_check
    _
  $region15: #{cnn_clf_forward.1} parent=0 // pred_check_branch
    %26 = sbr.rel (0) target = $region17
  $region16: #{cnn_clf_forward.1} parent=0 // pred_region
    _
  $region17: #{cnn_clf_forward.1} parent=0 // pred_fallthru
    _
  // Predicated region
  $region18: #{cnn_clf_forward.1} parent=0 // pred_check
    _
  $region19: #{cnn_clf_forward.1} parent=0 // pred_check_branch
    %28 = sbr.rel (0) target = $region21
  $region20: #{cnn_clf_forward.1} parent=0 // pred_region
    _
  $region21: #{cnn_clf_forward.1} parent=0 // pred_fallthru
    _
  // Predicated region
  $region22: #{cnn_clf_forward.1} parent=0 // pred_check
    _
  $region23: #{cnn_clf_forward.1} parent=0 // pred_check_branch
    %30 = sbr.rel (0) target = $region25
  $region24: #{cnn_clf_forward.1} parent=0 // pred_region
    _
  $region25: #{cnn_clf_forward.1} parent=0 // pred_fallthru
    _
  // Predicated region
  $region26: #{cnn_clf_forward.1} parent=0 // pred_check
    _
  $region27: #{cnn_clf_forward.1} parent=0 // pred_check_branch
    %32 = sbr.rel (0) target = $region29
  $region28: #{cnn_clf_forward.1} parent=0 // pred_region
    _
  $region29: #{cnn_clf_forward.1} parent=0 // pred_fallthru
    _
  // Predicated region
  $region30: #{cnn_clf_forward.1} parent=0 // pred_check
    _
  $region31: #{cnn_clf_forward.1} parent=0 // pred_check_branch
    %34 = sbr.rel (0) target = $region33
  $region32: #{cnn_clf_forward.1} parent=0 // pred_region
    _
  $region33: #{cnn_clf_forward.1} parent=0 // pred_fallthru
    _
  // Predicated region
  $region34: #{cnn_clf_forward.1} parent=0 // pred_check
    _
  $region35: #{cnn_clf_forward.1} parent=0 // pred_check_branch
    %36 = sbr.rel (0) target = $region37
  $region36: #{cnn_clf_forward.1} parent=0 // pred_region
    _
  $region37: #{cnn_clf_forward.1} parent=0 // pred_fallthru
    _
  // Predicated region
  $region38: #{cnn_clf_forward.1} parent=0 // pred_check
    _
  $region39: #{cnn_clf_forward.1} parent=0 // pred_check_branch
    %38 = sbr.rel (0) target = $region41
  $region40: #{cnn_clf_forward.1} parent=0 // pred_region
    _
  $region41: #{cnn_clf_forward.1} parent=0 // pred_fallthru
    _
  %p41 = scmp.lt.u32.totalorder 576, 8
  %p42 = pneg %p41
  // Predicated region
  $region42: #{cnn_clf_forward.1} parent=0 // pred_check
    _
  $region43: #{cnn_clf_forward.1} parent=0 // pred_check_branch
    %44 = sbr.rel (%p41) target = $region45
  $region44: #{cnn_clf_forward.1} parent=0 // pred_region
    %s59 = sand.u32 576, 7
    %p60 = scmp.eq.s32.totalorder %s59, 0
    // Predicated region
    $region57: #{cnn_clf_forward.1} parent=44 // pred_check
      %p61 = pneg %p60
    $region58: #{cnn_clf_forward.1} parent=44 // pred_check_branch
      %63 = sbr.rel (%p61) target = $region60
    $region59: #{cnn_clf_forward.1} parent=44 // pred_region
      loop: start=0, step=1, limit=1
      $region61: #{cnn_clf_forward.1} parent=59 // loop_pre_header
        _
      $region62: #{cnn_clf_forward.1} parent=59 // loop_header
        %s65 = sphi 0, %s69
        %p66 = scmp.ge.s32.totalorder %s65, 1
        %s70 = sphi %s10, %s10
        %s71 = sphi [#allocation2], [#allocation2]
      $region63: #{cnn_clf_forward.1} parent=59 // loop_header_branch
        %68 = sbr.rel (%p66) target = $region67
      $region64: #{cnn_clf_forward.1} parent=59 // loop_body
        %v72 = vld [vmem:[%s70] sm:$0xff]
        %73 = vst [vmem:[%s71] sm:$0xff] %v72
        %v74 = vld [vmem:[%s70 + $0x8] sm:$0xff]
        %75 = vst [vmem:[%s71 + $0x8] sm:$0xff] %v74
        %v76 = vld [vmem:[%s70 + $0x10] sm:$0xff]
        %77 = vst [vmem:[%s71 + $0x10] sm:$0xff] %v76
        %v78 = vld [vmem:[%s70 + $0x18] sm:$0xff]
        %79 = vst [vmem:[%s71 + $0x18] sm:$0xff] %v78
        %v80 = vld [vmem:[%s70 + $0x20] sm:$0xff]
        %81 = vst [vmem:[%s71 + $0x20] sm:$0xff] %v80
        %v82 = vld [vmem:[%s70 + $0x28] sm:$0xff]
        %83 = vst [vmem:[%s71 + $0x28] sm:$0xff] %v82
        %v84 = vld [vmem:[%s70 + $0x30] sm:$0xff]
        %85 = vst [vmem:[%s71 + $0x30] sm:$0xff] %v84
        %v86 = vld [vmem:[%s70 + $0x38] sm:$0xff]
        %87 = vst [vmem:[%s71 + $0x38] sm:$0xff] %v86
        %v88 = vld [vmem:[%s70 + $0x40] sm:$0xff]
        %89 = vst [vmem:[%s71 + $0x40] sm:$0xff] %v88
        %v90 = vld [vmem:[%s70 + $0x48] sm:$0xff]
        %91 = vst [vmem:[%s71 + $0x48] sm:$0xff] %v90
        %v92 = vld [vmem:[%s70 + $0x50] sm:$0xff]
        %93 = vst [vmem:[%s71 + $0x50] sm:$0xff] %v92
        %v94 = vld [vmem:[%s70 + $0x58] sm:$0xff]
        %95 = vst [vmem:[%s71 + $0x58] sm:$0xff] %v94
        %v96 = vld [vmem:[%s70 + $0x60] sm:$0xff]
        %97 = vst [vmem:[%s71 + $0x60] sm:$0xff] %v96
        %v98 = vld [vmem:[%s70 + $0x68] sm:$0xff]
        %99 = vst [vmem:[%s71 + $0x68] sm:$0xff] %v98
        %v100 = vld [vmem:[%s70 + $0x70] sm:$0xff]
        %101 = vst [vmem:[%s71 + $0x70] sm:$0xff] %v100
        %v102 = vld [vmem:[%s70 + $0x78] sm:$0xff]
        %103 = vst [vmem:[%s71 + $0x78] sm:$0xff] %v102
        %v104 = vld [vmem:[%s70 + $0x80] sm:$0xff]
        %105 = vst [vmem:[%s71 + $0x80] sm:$0xff] %v104
        %v106 = vld [vmem:[%s70 + $0x88] sm:$0xff]
        %107 = vst [vmem:[%s71 + $0x88] sm:$0xff] %v106
        %v108 = vld [vmem:[%s70 + $0x90] sm:$0xff]
        %109 = vst [vmem:[%s71 + $0x90] sm:$0xff] %v108
        %v110 = vld [vmem:[%s70 + $0x98] sm:$0xff]
        %111 = vst [vmem:[%s71 + $0x98] sm:$0xff] %v110
        %v112 = vld [vmem:[%s70 + $0xa0] sm:$0xff]
        %113 = vst [vmem:[%s71 + $0xa0] sm:$0xff] %v112
        %v114 = vld [vmem:[%s70 + $0xa8] sm:$0xff]
        %115 = vst [vmem:[%s71 + $0xa8] sm:$0xff] %v114
        %v116 = vld [vmem:[%s70 + $0xb0] sm:$0xff]
        %117 = vst [vmem:[%s71 + $0xb0] sm:$0xff] %v116
        %v118 = vld [vmem:[%s70 + $0xb8] sm:$0xff]
        %119 = vst [vmem:[%s71 + $0xb8] sm:$0xff] %v118
        %v120 = vld [vmem:[%s70 + $0xc0] sm:$0xff]
        %121 = vst [vmem:[%s71 + $0xc0] sm:$0xff] %v120
        %v122 = vld [vmem:[%s70 + $0xc8] sm:$0xff]
        %123 = vst [vmem:[%s71 + $0xc8] sm:$0xff] %v122
        %v124 = vld [vmem:[%s70 + $0xd0] sm:$0xff]
        %125 = vst [vmem:[%s71 + $0xd0] sm:$0xff] %v124
        %v126 = vld [vmem:[%s70 + $0xd8] sm:$0xff]
        %127 = vst [vmem:[%s71 + $0xd8] sm:$0xff] %v126
        %v128 = vld [vmem:[%s70 + $0xe0] sm:$0xff]
        %129 = vst [vmem:[%s71 + $0xe0] sm:$0xff] %v128
        %v130 = vld [vmem:[%s70 + $0xe8] sm:$0xff]
        %131 = vst [vmem:[%s71 + $0xe8] sm:$0xff] %v130
        %v132 = vld [vmem:[%s70 + $0xf0] sm:$0xff]
        %133 = vst [vmem:[%s71 + $0xf0] sm:$0xff] %v132
        %v134 = vld [vmem:[%s70 + $0xf8] sm:$0xff]
        %135 = vst [vmem:[%s71 + $0xf8] sm:$0xff] %v134
        %v136 = vld [vmem:[%s70 + $0x100] sm:$0xff]
        %137 = vst [vmem:[%s71 + $0x100] sm:$0xff] %v136
        %v138 = vld [vmem:[%s70 + $0x108] sm:$0xff]
        %139 = vst [vmem:[%s71 + $0x108] sm:$0xff] %v138
        %v140 = vld [vmem:[%s70 + $0x110] sm:$0xff]
        %141 = vst [vmem:[%s71 + $0x110] sm:$0xff] %v140
        %v142 = vld [vmem:[%s70 + $0x118] sm:$0xff]
        %143 = vst [vmem:[%s71 + $0x118] sm:$0xff] %v142
        %v144 = vld [vmem:[%s70 + $0x120] sm:$0xff]
        %145 = vst [vmem:[%s71 + $0x120] sm:$0xff] %v144
        %v146 = vld [vmem:[%s70 + $0x128] sm:$0xff]
        %147 = vst [vmem:[%s71 + $0x128] sm:$0xff] %v146
        %v148 = vld [vmem:[%s70 + $0x130] sm:$0xff]
        %149 = vst [vmem:[%s71 + $0x130] sm:$0xff] %v148
        %v150 = vld [vmem:[%s70 + $0x138] sm:$0xff]
        %151 = vst [vmem:[%s71 + $0x138] sm:$0xff] %v150
        %v152 = vld [vmem:[%s70 + $0x140] sm:$0xff]
        %153 = vst [vmem:[%s71 + $0x140] sm:$0xff] %v152
        %v154 = vld [vmem:[%s70 + $0x148] sm:$0xff]
        %155 = vst [vmem:[%s71 + $0x148] sm:$0xff] %v154
        %v156 = vld [vmem:[%s70 + $0x150] sm:$0xff]
        %157 = vst [vmem:[%s71 + $0x150] sm:$0xff] %v156
        %v158 = vld [vmem:[%s70 + $0x158] sm:$0xff]
        %159 = vst [vmem:[%s71 + $0x158] sm:$0xff] %v158
        %v160 = vld [vmem:[%s70 + $0x160] sm:$0xff]
        %161 = vst [vmem:[%s71 + $0x160] sm:$0xff] %v160
        %v162 = vld [vmem:[%s70 + $0x168] sm:$0xff]
        %163 = vst [vmem:[%s71 + $0x168] sm:$0xff] %v162
        %v164 = vld [vmem:[%s70 + $0x170] sm:$0xff]
        %165 = vst [vmem:[%s71 + $0x170] sm:$0xff] %v164
        %v166 = vld [vmem:[%s70 + $0x178] sm:$0xff]
        %167 = vst [vmem:[%s71 + $0x178] sm:$0xff] %v166
        %v168 = vld [vmem:[%s70 + $0x180] sm:$0xff]
        %169 = vst [vmem:[%s71 + $0x180] sm:$0xff] %v168
        %v170 = vld [vmem:[%s70 + $0x188] sm:$0xff]
        %171 = vst [vmem:[%s71 + $0x188] sm:$0xff] %v170
        %v172 = vld [vmem:[%s70 + $0x190] sm:$0xff]
        %173 = vst [vmem:[%s71 + $0x190] sm:$0xff] %v172
        %v174 = vld [vmem:[%s70 + $0x198] sm:$0xff]
        %175 = vst [vmem:[%s71 + $0x198] sm:$0xff] %v174
        %v176 = vld [vmem:[%s70 + $0x1a0] sm:$0xff]
        %177 = vst [vmem:[%s71 + $0x1a0] sm:$0xff] %v176
        %v178 = vld [vmem:[%s70 + $0x1a8] sm:$0xff]
        %179 = vst [vmem:[%s71 + $0x1a8] sm:$0xff] %v178
        %v180 = vld [vmem:[%s70 + $0x1b0] sm:$0xff]
        %181 = vst [vmem:[%s71 + $0x1b0] sm:$0xff] %v180
        %v182 = vld [vmem:[%s70 + $0x1b8] sm:$0xff]
        %183 = vst [vmem:[%s71 + $0x1b8] sm:$0xff] %v182
        %v184 = vld [vmem:[%s70 + $0x1c0] sm:$0xff]
        %185 = vst [vmem:[%s71 + $0x1c0] sm:$0xff] %v184
        %v186 = vld [vmem:[%s70 + $0x1c8] sm:$0xff]
        %187 = vst [vmem:[%s71 + $0x1c8] sm:$0xff] %v186
        %v188 = vld [vmem:[%s70 + $0x1d0] sm:$0xff]
        %189 = vst [vmem:[%s71 + $0x1d0] sm:$0xff] %v188
        %v190 = vld [vmem:[%s70 + $0x1d8] sm:$0xff]
        %191 = vst [vmem:[%s71 + $0x1d8] sm:$0xff] %v190
        %v192 = vld [vmem:[%s70 + $0x1e0] sm:$0xff]
        %193 = vst [vmem:[%s71 + $0x1e0] sm:$0xff] %v192
        %v194 = vld [vmem:[%s70 + $0x1e8] sm:$0xff]
        %195 = vst [vmem:[%s71 + $0x1e8] sm:$0xff] %v194
        %v196 = vld [vmem:[%s70 + $0x1f0] sm:$0xff]
        %197 = vst [vmem:[%s71 + $0x1f0] sm:$0xff] %v196
        %v198 = vld [vmem:[%s70 + $0x1f8] sm:$0xff]
        %199 = vst [vmem:[%s71 + $0x1f8] sm:$0xff] %v198
        %v200 = vld [vmem:[%s70 + $0x200] sm:$0xff]
        %201 = vst [vmem:[%s71 + $0x200] sm:$0xff] %v200
        %v202 = vld [vmem:[%s70 + $0x208] sm:$0xff]
        %203 = vst [vmem:[%s71 + $0x208] sm:$0xff] %v202
        %v204 = vld [vmem:[%s70 + $0x210] sm:$0xff]
        %205 = vst [vmem:[%s71 + $0x210] sm:$0xff] %v204
        %v206 = vld [vmem:[%s70 + $0x218] sm:$0xff]
        %207 = vst [vmem:[%s71 + $0x218] sm:$0xff] %v206
        %v208 = vld [vmem:[%s70 + $0x220] sm:$0xff]
        %209 = vst [vmem:[%s71 + $0x220] sm:$0xff] %v208
        %v210 = vld [vmem:[%s70 + $0x228] sm:$0xff]
        %211 = vst [vmem:[%s71 + $0x228] sm:$0xff] %v210
        %v212 = vld [vmem:[%s70 + $0x230] sm:$0xff]
        %213 = vst [vmem:[%s71 + $0x230] sm:$0xff] %v212
        %v214 = vld [vmem:[%s70 + $0x238] sm:$0xff]
        %215 = vst [vmem:[%s71 + $0x238] sm:$0xff] %v214
      $region65: #{cnn_clf_forward.1} parent=59 // loop_footer
        %s69 = sadd.s32 1, %s65
      $region66: #{cnn_clf_forward.1} parent=59 // loop_footer_branch
        %64 = sbr.rel target = $region62
      $region67: #{cnn_clf_forward.1} parent=59 // loop_exit
        _
    $region60: #{cnn_clf_forward.1} parent=44 // pred_fallthru
      _
    %p216 = pneg %p60
    // Predicated region
    $region68: #{cnn_clf_forward.1} parent=44 // pred_check
      _
    $region69: #{cnn_clf_forward.1} parent=44 // pred_check_branch
      %218 = sbr.rel (%p60) target = $region71
    $region70: #{cnn_clf_forward.1} parent=44 // pred_region
      %s219 = sand.u32 576, 7
    $region71: #{cnn_clf_forward.1} parent=44 // pred_fallthru
      _
  $region45: #{cnn_clf_forward.1} parent=0 // pred_fallthru
    _
  // Predicated region
  $region46: #{cnn_clf_forward.1} parent=0 // pred_check
    %p45 = pneg %p41
  $region47: #{cnn_clf_forward.1} parent=0 // pred_check_branch
    %47 = sbr.rel (%p45) target = $region49
  $region48: #{cnn_clf_forward.1} parent=0 // pred_region
    %s48 = sshllo.u32 0, 576
    loop: start=0, step=1, limit=1
    $region50: #{cnn_clf_forward.1} parent=48 // loop_pre_header
      _
    $region51: #{cnn_clf_forward.1} parent=48 // loop_header
      %s50 = sphi 0, %s54
      %p51 = scmp.ge.s32.totalorder %s50, 1
      %s55 = sphi %s10, %s10
      %s56 = sphi [#allocation2], [#allocation2]
    $region52: #{cnn_clf_forward.1} parent=48 // loop_header_branch
      %53 = sbr.rel (%p51) target = $region56
    $region53: #{cnn_clf_forward.1} parent=48 // loop_body
      %v57 = vld [vmem:[%s55] sm:%s48]
      %58 = vst [vmem:[%s56] sm:%s48] %v57
    $region54: #{cnn_clf_forward.1} parent=48 // loop_footer
      %s54 = sadd.s32 1, %s50
    $region55: #{cnn_clf_forward.1} parent=48 // loop_footer_branch
      %49 = sbr.rel target = $region51
    $region56: #{cnn_clf_forward.1} parent=48 // loop_exit
      _
  $region49: #{cnn_clf_forward.1} parent=0 // pred_fallthru
    _
  // Predicated region
  $region72: #{cnn_clf_forward.1} parent=0 // pred_check
    _
  $region73: #{cnn_clf_forward.1} parent=0 // pred_check_branch
    %222 = sbr.rel (0) target = $region75
  $region74: #{cnn_clf_forward.1} parent=0 // pred_region
    %223 = vsyncadd [#allocation6], 9216
  $region75: #{cnn_clf_forward.1} parent=0 // pred_fallthru
    _
  %s224 = scalar_lea.sflag [#allocation6], 1
  %p226 = scmp.lt.u32.totalorder 576, 8
  %p227 = pneg %p226
  // Predicated region
  $region76: #{cnn_clf_forward.1} parent=0 // pred_check
    _
  $region77: #{cnn_clf_forward.1} parent=0 // pred_check_branch
    %229 = sbr.rel (%p226) target = $region79
  $region78: #{cnn_clf_forward.1} parent=0 // pred_region
    %s244 = sand.u32 576, 7
    %p245 = scmp.eq.s32.totalorder %s244, 0
    // Predicated region
    $region91: #{cnn_clf_forward.1} parent=78 // pred_check
      %p246 = pneg %p245
    $region92: #{cnn_clf_forward.1} parent=78 // pred_check_branch
      %248 = sbr.rel (%p246) target = $region94
    $region93: #{cnn_clf_forward.1} parent=78 // pred_region
      loop: start=0, step=1, limit=1
      $region95: #{cnn_clf_forward.1} parent=93 // loop_pre_header
        _
      $region96: #{cnn_clf_forward.1} parent=93 // loop_header
        %s250 = sphi 0, %s254
        %p251 = scmp.ge.s32.totalorder %s250, 1
        %s255 = sphi %s11, %s11
        %s256 = sphi [#allocation3], [#allocation3]
      $region97: #{cnn_clf_forward.1} parent=93 // loop_header_branch
        %253 = sbr.rel (%p251) target = $region101
      $region98: #{cnn_clf_forward.1} parent=93 // loop_body
        %v257 = vld [vmem:[%s255] sm:$0xff]
        %258 = vst [vmem:[%s256] sm:$0xff] %v257
        %v259 = vld [vmem:[%s255 + $0x8] sm:$0xff]
        %260 = vst [vmem:[%s256 + $0x8] sm:$0xff] %v259
        %v261 = vld [vmem:[%s255 + $0x10] sm:$0xff]
        %262 = vst [vmem:[%s256 + $0x10] sm:$0xff] %v261
        %v263 = vld [vmem:[%s255 + $0x18] sm:$0xff]
        %264 = vst [vmem:[%s256 + $0x18] sm:$0xff] %v263
        %v265 = vld [vmem:[%s255 + $0x20] sm:$0xff]
        %266 = vst [vmem:[%s256 + $0x20] sm:$0xff] %v265
        %v267 = vld [vmem:[%s255 + $0x28] sm:$0xff]
        %268 = vst [vmem:[%s256 + $0x28] sm:$0xff] %v267
        %v269 = vld [vmem:[%s255 + $0x30] sm:$0xff]
        %270 = vst [vmem:[%s256 + $0x30] sm:$0xff] %v269
        %v271 = vld [vmem:[%s255 + $0x38] sm:$0xff]
        %272 = vst [vmem:[%s256 + $0x38] sm:$0xff] %v271
        %v273 = vld [vmem:[%s255 + $0x40] sm:$0xff]
        %274 = vst [vmem:[%s256 + $0x40] sm:$0xff] %v273
        %v275 = vld [vmem:[%s255 + $0x48] sm:$0xff]
        %276 = vst [vmem:[%s256 + $0x48] sm:$0xff] %v275
        %v277 = vld [vmem:[%s255 + $0x50] sm:$0xff]
        %278 = vst [vmem:[%s256 + $0x50] sm:$0xff] %v277
        %v279 = vld [vmem:[%s255 + $0x58] sm:$0xff]
        %280 = vst [vmem:[%s256 + $0x58] sm:$0xff] %v279
        %v281 = vld [vmem:[%s255 + $0x60] sm:$0xff]
        %282 = vst [vmem:[%s256 + $0x60] sm:$0xff] %v281
        %v283 = vld [vmem:[%s255 + $0x68] sm:$0xff]
        %284 = vst [vmem:[%s256 + $0x68] sm:$0xff] %v283
        %v285 = vld [vmem:[%s255 + $0x70] sm:$0xff]
        %286 = vst [vmem:[%s256 + $0x70] sm:$0xff] %v285
        %v287 = vld [vmem:[%s255 + $0x78] sm:$0xff]
        %288 = vst [vmem:[%s256 + $0x78] sm:$0xff] %v287
        %v289 = vld [vmem:[%s255 + $0x80] sm:$0xff]
        %290 = vst [vmem:[%s256 + $0x80] sm:$0xff] %v289
        %v291 = vld [vmem:[%s255 + $0x88] sm:$0xff]
        %292 = vst [vmem:[%s256 + $0x88] sm:$0xff] %v291
        %v293 = vld [vmem:[%s255 + $0x90] sm:$0xff]
        %294 = vst [vmem:[%s256 + $0x90] sm:$0xff] %v293
        %v295 = vld [vmem:[%s255 + $0x98] sm:$0xff]
        %296 = vst [vmem:[%s256 + $0x98] sm:$0xff] %v295
        %v297 = vld [vmem:[%s255 + $0xa0] sm:$0xff]
        %298 = vst [vmem:[%s256 + $0xa0] sm:$0xff] %v297
        %v299 = vld [vmem:[%s255 + $0xa8] sm:$0xff]
        %300 = vst [vmem:[%s256 + $0xa8] sm:$0xff] %v299
        %v301 = vld [vmem:[%s255 + $0xb0] sm:$0xff]
        %302 = vst [vmem:[%s256 + $0xb0] sm:$0xff] %v301
        %v303 = vld [vmem:[%s255 + $0xb8] sm:$0xff]
        %304 = vst [vmem:[%s256 + $0xb8] sm:$0xff] %v303
        %v305 = vld [vmem:[%s255 + $0xc0] sm:$0xff]
        %306 = vst [vmem:[%s256 + $0xc0] sm:$0xff] %v305
        %v307 = vld [vmem:[%s255 + $0xc8] sm:$0xff]
        %308 = vst [vmem:[%s256 + $0xc8] sm:$0xff] %v307
        %v309 = vld [vmem:[%s255 + $0xd0] sm:$0xff]
        %310 = vst [vmem:[%s256 + $0xd0] sm:$0xff] %v309
        %v311 = vld [vmem:[%s255 + $0xd8] sm:$0xff]
        %312 = vst [vmem:[%s256 + $0xd8] sm:$0xff] %v311
        %v313 = vld [vmem:[%s255 + $0xe0] sm:$0xff]
        %314 = vst [vmem:[%s256 + $0xe0] sm:$0xff] %v313
        %v315 = vld [vmem:[%s255 + $0xe8] sm:$0xff]
        %316 = vst [vmem:[%s256 + $0xe8] sm:$0xff] %v315
        %v317 = vld [vmem:[%s255 + $0xf0] sm:$0xff]
        %318 = vst [vmem:[%s256 + $0xf0] sm:$0xff] %v317
        %v319 = vld [vmem:[%s255 + $0xf8] sm:$0xff]
        %320 = vst [vmem:[%s256 + $0xf8] sm:$0xff] %v319
        %v321 = vld [vmem:[%s255 + $0x100] sm:$0xff]
        %322 = vst [vmem:[%s256 + $0x100] sm:$0xff] %v321
        %v323 = vld [vmem:[%s255 + $0x108] sm:$0xff]
        %324 = vst [vmem:[%s256 + $0x108] sm:$0xff] %v323
        %v325 = vld [vmem:[%s255 + $0x110] sm:$0xff]
        %326 = vst [vmem:[%s256 + $0x110] sm:$0xff] %v325
        %v327 = vld [vmem:[%s255 + $0x118] sm:$0xff]
        %328 = vst [vmem:[%s256 + $0x118] sm:$0xff] %v327
        %v329 = vld [vmem:[%s255 + $0x120] sm:$0xff]
        %330 = vst [vmem:[%s256 + $0x120] sm:$0xff] %v329
        %v331 = vld [vmem:[%s255 + $0x128] sm:$0xff]
        %332 = vst [vmem:[%s256 + $0x128] sm:$0xff] %v331
        %v333 = vld [vmem:[%s255 + $0x130] sm:$0xff]
        %334 = vst [vmem:[%s256 + $0x130] sm:$0xff] %v333
        %v335 = vld [vmem:[%s255 + $0x138] sm:$0xff]
        %336 = vst [vmem:[%s256 + $0x138] sm:$0xff] %v335
        %v337 = vld [vmem:[%s255 + $0x140] sm:$0xff]
        %338 = vst [vmem:[%s256 + $0x140] sm:$0xff] %v337
        %v339 = vld [vmem:[%s255 + $0x148] sm:$0xff]
        %340 = vst [vmem:[%s256 + $0x148] sm:$0xff] %v339
        %v341 = vld [vmem:[%s255 + $0x150] sm:$0xff]
        %342 = vst [vmem:[%s256 + $0x150] sm:$0xff] %v341
        %v343 = vld [vmem:[%s255 + $0x158] sm:$0xff]
        %344 = vst [vmem:[%s256 + $0x158] sm:$0xff] %v343
        %v345 = vld [vmem:[%s255 + $0x160] sm:$0xff]
        %346 = vst [vmem:[%s256 + $0x160] sm:$0xff] %v345
        %v347 = vld [vmem:[%s255 + $0x168] sm:$0xff]
        %348 = vst [vmem:[%s256 + $0x168] sm:$0xff] %v347
        %v349 = vld [vmem:[%s255 + $0x170] sm:$0xff]
        %350 = vst [vmem:[%s256 + $0x170] sm:$0xff] %v349
        %v351 = vld [vmem:[%s255 + $0x178] sm:$0xff]
        %352 = vst [vmem:[%s256 + $0x178] sm:$0xff] %v351
        %v353 = vld [vmem:[%s255 + $0x180] sm:$0xff]
        %354 = vst [vmem:[%s256 + $0x180] sm:$0xff] %v353
        %v355 = vld [vmem:[%s255 + $0x188] sm:$0xff]
        %356 = vst [vmem:[%s256 + $0x188] sm:$0xff] %v355
        %v357 = vld [vmem:[%s255 + $0x190] sm:$0xff]
        %358 = vst [vmem:[%s256 + $0x190] sm:$0xff] %v357
        %v359 = vld [vmem:[%s255 + $0x198] sm:$0xff]
        %360 = vst [vmem:[%s256 + $0x198] sm:$0xff] %v359
        %v361 = vld [vmem:[%s255 + $0x1a0] sm:$0xff]
        %362 = vst [vmem:[%s256 + $0x1a0] sm:$0xff] %v361
        %v363 = vld [vmem:[%s255 + $0x1a8] sm:$0xff]
        %364 = vst [vmem:[%s256 + $0x1a8] sm:$0xff] %v363
        %v365 = vld [vmem:[%s255 + $0x1b0] sm:$0xff]
        %366 = vst [vmem:[%s256 + $0x1b0] sm:$0xff] %v365
        %v367 = vld [vmem:[%s255 + $0x1b8] sm:$0xff]
        %368 = vst [vmem:[%s256 + $0x1b8] sm:$0xff] %v367
        %v369 = vld [vmem:[%s255 + $0x1c0] sm:$0xff]
        %370 = vst [vmem:[%s256 + $0x1c0] sm:$0xff] %v369
        %v371 = vld [vmem:[%s255 + $0x1c8] sm:$0xff]
        %372 = vst [vmem:[%s256 + $0x1c8] sm:$0xff] %v371
        %v373 = vld [vmem:[%s255 + $0x1d0] sm:$0xff]
        %374 = vst [vmem:[%s256 + $0x1d0] sm:$0xff] %v373
        %v375 = vld [vmem:[%s255 + $0x1d8] sm:$0xff]
        %376 = vst [vmem:[%s256 + $0x1d8] sm:$0xff] %v375
        %v377 = vld [vmem:[%s255 + $0x1e0] sm:$0xff]
        %378 = vst [vmem:[%s256 + $0x1e0] sm:$0xff] %v377
        %v379 = vld [vmem:[%s255 + $0x1e8] sm:$0xff]
        %380 = vst [vmem:[%s256 + $0x1e8] sm:$0xff] %v379
        %v381 = vld [vmem:[%s255 + $0x1f0] sm:$0xff]
        %382 = vst [vmem:[%s256 + $0x1f0] sm:$0xff] %v381
        %v383 = vld [vmem:[%s255 + $0x1f8] sm:$0xff]
        %384 = vst [vmem:[%s256 + $0x1f8] sm:$0xff] %v383
        %v385 = vld [vmem:[%s255 + $0x200] sm:$0xff]
        %386 = vst [vmem:[%s256 + $0x200] sm:$0xff] %v385
        %v387 = vld [vmem:[%s255 + $0x208] sm:$0xff]
        %388 = vst [vmem:[%s256 + $0x208] sm:$0xff] %v387
        %v389 = vld [vmem:[%s255 + $0x210] sm:$0xff]
        %390 = vst [vmem:[%s256 + $0x210] sm:$0xff] %v389
        %v391 = vld [vmem:[%s255 + $0x218] sm:$0xff]
        %392 = vst [vmem:[%s256 + $0x218] sm:$0xff] %v391
        %v393 = vld [vmem:[%s255 + $0x220] sm:$0xff]
        %394 = vst [vmem:[%s256 + $0x220] sm:$0xff] %v393
        %v395 = vld [vmem:[%s255 + $0x228] sm:$0xff]
        %396 = vst [vmem:[%s256 + $0x228] sm:$0xff] %v395
        %v397 = vld [vmem:[%s255 + $0x230] sm:$0xff]
        %398 = vst [vmem:[%s256 + $0x230] sm:$0xff] %v397
        %v399 = vld [vmem:[%s255 + $0x238] sm:$0xff]
        %400 = vst [vmem:[%s256 + $0x238] sm:$0xff] %v399
      $region99: #{cnn_clf_forward.1} parent=93 // loop_footer
        %s254 = sadd.s32 1, %s250
      $region100: #{cnn_clf_forward.1} parent=93 // loop_footer_branch
        %249 = sbr.rel target = $region96
      $region101: #{cnn_clf_forward.1} parent=93 // loop_exit
        _
    $region94: #{cnn_clf_forward.1} parent=78 // pred_fallthru
      _
    %p401 = pneg %p245
    // Predicated region
    $region102: #{cnn_clf_forward.1} parent=78 // pred_check
      _
    $region103: #{cnn_clf_forward.1} parent=78 // pred_check_branch
      %403 = sbr.rel (%p245) target = $region105
    $region104: #{cnn_clf_forward.1} parent=78 // pred_region
      %s404 = sand.u32 576, 7
    $region105: #{cnn_clf_forward.1} parent=78 // pred_fallthru
      _
  $region79: #{cnn_clf_forward.1} parent=0 // pred_fallthru
    _
  // Predicated region
  $region80: #{cnn_clf_forward.1} parent=0 // pred_check
    %p230 = pneg %p226
  $region81: #{cnn_clf_forward.1} parent=0 // pred_check_branch
    %232 = sbr.rel (%p230) target = $region83
  $region82: #{cnn_clf_forward.1} parent=0 // pred_region
    %s233 = sshllo.u32 0, 576
    loop: start=0, step=1, limit=1
    $region84: #{cnn_clf_forward.1} parent=82 // loop_pre_header
      _
    $region85: #{cnn_clf_forward.1} parent=82 // loop_header
      %s235 = sphi 0, %s239
      %p236 = scmp.ge.s32.totalorder %s235, 1
      %s240 = sphi %s11, %s11
      %s241 = sphi [#allocation3], [#allocation3]
    $region86: #{cnn_clf_forward.1} parent=82 // loop_header_branch
      %238 = sbr.rel (%p236) target = $region90
    $region87: #{cnn_clf_forward.1} parent=82 // loop_body
      %v242 = vld [vmem:[%s240] sm:%s233]
      %243 = vst [vmem:[%s241] sm:%s233] %v242
    $region88: #{cnn_clf_forward.1} parent=82 // loop_footer
      %s239 = sadd.s32 1, %s235
    $region89: #{cnn_clf_forward.1} parent=82 // loop_footer_branch
      %234 = sbr.rel target = $region85
    $region90: #{cnn_clf_forward.1} parent=82 // loop_exit
      _
  $region83: #{cnn_clf_forward.1} parent=0 // pred_fallthru
    _
  // Predicated region
  $region106: #{cnn_clf_forward.1} parent=0 // pred_check
    _
  $region107: #{cnn_clf_forward.1} parent=0 // pred_check_branch
    %407 = sbr.rel (0) target = $region109
  $region108: #{cnn_clf_forward.1} parent=0 // pred_region
    %408 = vsyncadd %s224, 9216
  $region109: #{cnn_clf_forward.1} parent=0 // pred_fallthru
    _
  %s409 = scalar_lea.sflag [#allocation6], 2
  %p411 = scmp.lt.u32.totalorder 576, 8
  %p412 = pneg %p411
  // Predicated region
  $region110: #{cnn_clf_forward.1} parent=0 // pred_check
    _
  $region111: #{cnn_clf_forward.1} parent=0 // pred_check_branch
    %414 = sbr.rel (%p411) target = $region113
  $region112: #{cnn_clf_forward.1} parent=0 // pred_region
    %s429 = sand.u32 576, 7
    %p430 = scmp.eq.s32.totalorder %s429, 0
    // Predicated region
    $region125: #{cnn_clf_forward.1} parent=112 // pred_check
      %p431 = pneg %p430
    $region126: #{cnn_clf_forward.1} parent=112 // pred_check_branch
      %433 = sbr.rel (%p431) target = $region128
    $region127: #{cnn_clf_forward.1} parent=112 // pred_region
      loop: start=0, step=1, limit=1
      $region129: #{cnn_clf_forward.1} parent=127 // loop_pre_header
        _
      $region130: #{cnn_clf_forward.1} parent=127 // loop_header
        %s435 = sphi 0, %s439
        %p436 = scmp.ge.s32.totalorder %s435, 1
        %s440 = sphi %s12, %s12
        %s441 = sphi [#allocation4], [#allocation4]
      $region131: #{cnn_clf_forward.1} parent=127 // loop_header_branch
        %438 = sbr.rel (%p436) target = $region135
      $region132: #{cnn_clf_forward.1} parent=127 // loop_body
        %v442 = vld [vmem:[%s440] sm:$0xff]
        %443 = vst [vmem:[%s441] sm:$0xff] %v442
        %v444 = vld [vmem:[%s440 + $0x8] sm:$0xff]
        %445 = vst [vmem:[%s441 + $0x8] sm:$0xff] %v444
        %v446 = vld [vmem:[%s440 + $0x10] sm:$0xff]
        %447 = vst [vmem:[%s441 + $0x10] sm:$0xff] %v446
        %v448 = vld [vmem:[%s440 + $0x18] sm:$0xff]
        %449 = vst [vmem:[%s441 + $0x18] sm:$0xff] %v448
        %v450 = vld [vmem:[%s440 + $0x20] sm:$0xff]
        %451 = vst [vmem:[%s441 + $0x20] sm:$0xff] %v450
        %v452 = vld [vmem:[%s440 + $0x28] sm:$0xff]
        %453 = vst [vmem:[%s441 + $0x28] sm:$0xff] %v452
        %v454 = vld [vmem:[%s440 + $0x30] sm:$0xff]
        %455 = vst [vmem:[%s441 + $0x30] sm:$0xff] %v454
        %v456 = vld [vmem:[%s440 + $0x38] sm:$0xff]
        %457 = vst [vmem:[%s441 + $0x38] sm:$0xff] %v456
        %v458 = vld [vmem:[%s440 + $0x40] sm:$0xff]
        %459 = vst [vmem:[%s441 + $0x40] sm:$0xff] %v458
        %v460 = vld [vmem:[%s440 + $0x48] sm:$0xff]
        %461 = vst [vmem:[%s441 + $0x48] sm:$0xff] %v460
        %v462 = vld [vmem:[%s440 + $0x50] sm:$0xff]
        %463 = vst [vmem:[%s441 + $0x50] sm:$0xff] %v462
        %v464 = vld [vmem:[%s440 + $0x58] sm:$0xff]
        %465 = vst [vmem:[%s441 + $0x58] sm:$0xff] %v464
        %v466 = vld [vmem:[%s440 + $0x60] sm:$0xff]
        %467 = vst [vmem:[%s441 + $0x60] sm:$0xff] %v466
        %v468 = vld [vmem:[%s440 + $0x68] sm:$0xff]
        %469 = vst [vmem:[%s441 + $0x68] sm:$0xff] %v468
        %v470 = vld [vmem:[%s440 + $0x70] sm:$0xff]
        %471 = vst [vmem:[%s441 + $0x70] sm:$0xff] %v470
        %v472 = vld [vmem:[%s440 + $0x78] sm:$0xff]
        %473 = vst [vmem:[%s441 + $0x78] sm:$0xff] %v472
        %v474 = vld [vmem:[%s440 + $0x80] sm:$0xff]
        %475 = vst [vmem:[%s441 + $0x80] sm:$0xff] %v474
        %v476 = vld [vmem:[%s440 + $0x88] sm:$0xff]
        %477 = vst [vmem:[%s441 + $0x88] sm:$0xff] %v476
        %v478 = vld [vmem:[%s440 + $0x90] sm:$0xff]
        %479 = vst [vmem:[%s441 + $0x90] sm:$0xff] %v478
        %v480 = vld [vmem:[%s440 + $0x98] sm:$0xff]
        %481 = vst [vmem:[%s441 + $0x98] sm:$0xff] %v480
        %v482 = vld [vmem:[%s440 + $0xa0] sm:$0xff]
        %483 = vst [vmem:[%s441 + $0xa0] sm:$0xff] %v482
        %v484 = vld [vmem:[%s440 + $0xa8] sm:$0xff]
        %485 = vst [vmem:[%s441 + $0xa8] sm:$0xff] %v484
        %v486 = vld [vmem:[%s440 + $0xb0] sm:$0xff]
        %487 = vst [vmem:[%s441 + $0xb0] sm:$0xff] %v486
        %v488 = vld [vmem:[%s440 + $0xb8] sm:$0xff]
        %489 = vst [vmem:[%s441 + $0xb8] sm:$0xff] %v488
        %v490 = vld [vmem:[%s440 + $0xc0] sm:$0xff]
        %491 = vst [vmem:[%s441 + $0xc0] sm:$0xff] %v490
        %v492 = vld [vmem:[%s440 + $0xc8] sm:$0xff]
        %493 = vst [vmem:[%s441 + $0xc8] sm:$0xff] %v492
        %v494 = vld [vmem:[%s440 + $0xd0] sm:$0xff]
        %495 = vst [vmem:[%s441 + $0xd0] sm:$0xff] %v494
        %v496 = vld [vmem:[%s440 + $0xd8] sm:$0xff]
        %497 = vst [vmem:[%s441 + $0xd8] sm:$0xff] %v496
        %v498 = vld [vmem:[%s440 + $0xe0] sm:$0xff]
        %499 = vst [vmem:[%s441 + $0xe0] sm:$0xff] %v498
        %v500 = vld [vmem:[%s440 + $0xe8] sm:$0xff]
        %501 = vst [vmem:[%s441 + $0xe8] sm:$0xff] %v500
        %v502 = vld [vmem:[%s440 + $0xf0] sm:$0xff]
        %503 = vst [vmem:[%s441 + $0xf0] sm:$0xff] %v502
        %v504 = vld [vmem:[%s440 + $0xf8] sm:$0xff]
        %505 = vst [vmem:[%s441 + $0xf8] sm:$0xff] %v504
        %v506 = vld [vmem:[%s440 + $0x100] sm:$0xff]
        %507 = vst [vmem:[%s441 + $0x100] sm:$0xff] %v506
        %v508 = vld [vmem:[%s440 + $0x108] sm:$0xff]
        %509 = vst [vmem:[%s441 + $0x108] sm:$0xff] %v508
        %v510 = vld [vmem:[%s440 + $0x110] sm:$0xff]
        %511 = vst [vmem:[%s441 + $0x110] sm:$0xff] %v510
        %v512 = vld [vmem:[%s440 + $0x118] sm:$0xff]
        %513 = vst [vmem:[%s441 + $0x118] sm:$0xff] %v512
        %v514 = vld [vmem:[%s440 + $0x120] sm:$0xff]
        %515 = vst [vmem:[%s441 + $0x120] sm:$0xff] %v514
        %v516 = vld [vmem:[%s440 + $0x128] sm:$0xff]
        %517 = vst [vmem:[%s441 + $0x128] sm:$0xff] %v516
        %v518 = vld [vmem:[%s440 + $0x130] sm:$0xff]
        %519 = vst [vmem:[%s441 + $0x130] sm:$0xff] %v518
        %v520 = vld [vmem:[%s440 + $0x138] sm:$0xff]
        %521 = vst [vmem:[%s441 + $0x138] sm:$0xff] %v520
        %v522 = vld [vmem:[%s440 + $0x140] sm:$0xff]
        %523 = vst [vmem:[%s441 + $0x140] sm:$0xff] %v522
        %v524 = vld [vmem:[%s440 + $0x148] sm:$0xff]
        %525 = vst [vmem:[%s441 + $0x148] sm:$0xff] %v524
        %v526 = vld [vmem:[%s440 + $0x150] sm:$0xff]
        %527 = vst [vmem:[%s441 + $0x150] sm:$0xff] %v526
        %v528 = vld [vmem:[%s440 + $0x158] sm:$0xff]
        %529 = vst [vmem:[%s441 + $0x158] sm:$0xff] %v528
        %v530 = vld [vmem:[%s440 + $0x160] sm:$0xff]
        %531 = vst [vmem:[%s441 + $0x160] sm:$0xff] %v530
        %v532 = vld [vmem:[%s440 + $0x168] sm:$0xff]
        %533 = vst [vmem:[%s441 + $0x168] sm:$0xff] %v532
        %v534 = vld [vmem:[%s440 + $0x170] sm:$0xff]
        %535 = vst [vmem:[%s441 + $0x170] sm:$0xff] %v534
        %v536 = vld [vmem:[%s440 + $0x178] sm:$0xff]
        %537 = vst [vmem:[%s441 + $0x178] sm:$0xff] %v536
        %v538 = vld [vmem:[%s440 + $0x180] sm:$0xff]
        %539 = vst [vmem:[%s441 + $0x180] sm:$0xff] %v538
        %v540 = vld [vmem:[%s440 + $0x188] sm:$0xff]
        %541 = vst [vmem:[%s441 + $0x188] sm:$0xff] %v540
        %v542 = vld [vmem:[%s440 + $0x190] sm:$0xff]
        %543 = vst [vmem:[%s441 + $0x190] sm:$0xff] %v542
        %v544 = vld [vmem:[%s440 + $0x198] sm:$0xff]
        %545 = vst [vmem:[%s441 + $0x198] sm:$0xff] %v544
        %v546 = vld [vmem:[%s440 + $0x1a0] sm:$0xff]
        %547 = vst [vmem:[%s441 + $0x1a0] sm:$0xff] %v546
        %v548 = vld [vmem:[%s440 + $0x1a8] sm:$0xff]
        %549 = vst [vmem:[%s441 + $0x1a8] sm:$0xff] %v548
        %v550 = vld [vmem:[%s440 + $0x1b0] sm:$0xff]
        %551 = vst [vmem:[%s441 + $0x1b0] sm:$0xff] %v550
        %v552 = vld [vmem:[%s440 + $0x1b8] sm:$0xff]
        %553 = vst [vmem:[%s441 + $0x1b8] sm:$0xff] %v552
        %v554 = vld [vmem:[%s440 + $0x1c0] sm:$0xff]
        %555 = vst [vmem:[%s441 + $0x1c0] sm:$0xff] %v554
        %v556 = vld [vmem:[%s440 + $0x1c8] sm:$0xff]
        %557 = vst [vmem:[%s441 + $0x1c8] sm:$0xff] %v556
        %v558 = vld [vmem:[%s440 + $0x1d0] sm:$0xff]
        %559 = vst [vmem:[%s441 + $0x1d0] sm:$0xff] %v558
        %v560 = vld [vmem:[%s440 + $0x1d8] sm:$0xff]
        %561 = vst [vmem:[%s441 + $0x1d8] sm:$0xff] %v560
        %v562 = vld [vmem:[%s440 + $0x1e0] sm:$0xff]
        %563 = vst [vmem:[%s441 + $0x1e0] sm:$0xff] %v562
        %v564 = vld [vmem:[%s440 + $0x1e8] sm:$0xff]
        %565 = vst [vmem:[%s441 + $0x1e8] sm:$0xff] %v564
        %v566 = vld [vmem:[%s440 + $0x1f0] sm:$0xff]
        %567 = vst [vmem:[%s441 + $0x1f0] sm:$0xff] %v566
        %v568 = vld [vmem:[%s440 + $0x1f8] sm:$0xff]
        %569 = vst [vmem:[%s441 + $0x1f8] sm:$0xff] %v568
        %v570 = vld [vmem:[%s440 + $0x200] sm:$0xff]
        %571 = vst [vmem:[%s441 + $0x200] sm:$0xff] %v570
        %v572 = vld [vmem:[%s440 + $0x208] sm:$0xff]
        %573 = vst [vmem:[%s441 + $0x208] sm:$0xff] %v572
        %v574 = vld [vmem:[%s440 + $0x210] sm:$0xff]
        %575 = vst [vmem:[%s441 + $0x210] sm:$0xff] %v574
        %v576 = vld [vmem:[%s440 + $0x218] sm:$0xff]
        %577 = vst [vmem:[%s441 + $0x218] sm:$0xff] %v576
        %v578 = vld [vmem:[%s440 + $0x220] sm:$0xff]
        %579 = vst [vmem:[%s441 + $0x220] sm:$0xff] %v578
        %v580 = vld [vmem:[%s440 + $0x228] sm:$0xff]
        %581 = vst [vmem:[%s441 + $0x228] sm:$0xff] %v580
        %v582 = vld [vmem:[%s440 + $0x230] sm:$0xff]
        %583 = vst [vmem:[%s441 + $0x230] sm:$0xff] %v582
        %v584 = vld [vmem:[%s440 + $0x238] sm:$0xff]
        %585 = vst [vmem:[%s441 + $0x238] sm:$0xff] %v584
      $region133: #{cnn_clf_forward.1} parent=127 // loop_footer
        %s439 = sadd.s32 1, %s435
      $region134: #{cnn_clf_forward.1} parent=127 // loop_footer_branch
        %434 = sbr.rel target = $region130
      $region135: #{cnn_clf_forward.1} parent=127 // loop_exit
        _
    $region128: #{cnn_clf_forward.1} parent=112 // pred_fallthru
      _
    %p586 = pneg %p430
    // Predicated region
    $region136: #{cnn_clf_forward.1} parent=112 // pred_check
      _
    $region137: #{cnn_clf_forward.1} parent=112 // pred_check_branch
      %588 = sbr.rel (%p430) target = $region139
    $region138: #{cnn_clf_forward.1} parent=112 // pred_region
      %s589 = sand.u32 576, 7
    $region139: #{cnn_clf_forward.1} parent=112 // pred_fallthru
      _
  $region113: #{cnn_clf_forward.1} parent=0 // pred_fallthru
    _
  // Predicated region
  $region114: #{cnn_clf_forward.1} parent=0 // pred_check
    %p415 = pneg %p411
  $region115: #{cnn_clf_forward.1} parent=0 // pred_check_branch
    %417 = sbr.rel (%p415) target = $region117
  $region116: #{cnn_clf_forward.1} parent=0 // pred_region
    %s418 = sshllo.u32 0, 576
    loop: start=0, step=1, limit=1
    $region118: #{cnn_clf_forward.1} parent=116 // loop_pre_header
      _
    $region119: #{cnn_clf_forward.1} parent=116 // loop_header
      %s420 = sphi 0, %s424
      %p421 = scmp.ge.s32.totalorder %s420, 1
      %s425 = sphi %s12, %s12
      %s426 = sphi [#allocation4], [#allocation4]
    $region120: #{cnn_clf_forward.1} parent=116 // loop_header_branch
      %423 = sbr.rel (%p421) target = $region124
    $region121: #{cnn_clf_forward.1} parent=116 // loop_body
      %v427 = vld [vmem:[%s425] sm:%s418]
      %428 = vst [vmem:[%s426] sm:%s418] %v427
    $region122: #{cnn_clf_forward.1} parent=116 // loop_footer
      %s424 = sadd.s32 1, %s420
    $region123: #{cnn_clf_forward.1} parent=116 // loop_footer_branch
      %419 = sbr.rel target = $region119
    $region124: #{cnn_clf_forward.1} parent=116 // loop_exit
      _
  $region117: #{cnn_clf_forward.1} parent=0 // pred_fallthru
    _
  // Predicated region
  $region140: #{cnn_clf_forward.1} parent=0 // pred_check
    _
  $region141: #{cnn_clf_forward.1} parent=0 // pred_check_branch
    %592 = sbr.rel (0) target = $region143
  $region142: #{cnn_clf_forward.1} parent=0 // pred_region
    %593 = vsyncadd %s409, 9216
  $region143: #{cnn_clf_forward.1} parent=0 // pred_fallthru
    _
  %s594 = scalar_lea.sflag [#allocation6], 3
  %p596 = scmp.lt.u32.totalorder 4, 8
  %p597 = pneg %p596
  // Predicated region
  $region144: #{cnn_clf_forward.1} parent=0 // pred_check
    _
  $region145: #{cnn_clf_forward.1} parent=0 // pred_check_branch
    %599 = sbr.rel (%p596) target = $region147
  $region146: #{cnn_clf_forward.1} parent=0 // pred_region
    %s868 = sand.u32 4, 7
    %p869 = scmp.eq.s32.totalorder %s868, 0
    %p870 = pneg %p869
    // Predicated region
    $region159: #{cnn_clf_forward.1} parent=146 // pred_check
      _
    $region160: #{cnn_clf_forward.1} parent=146 // pred_check_branch
      %872 = sbr.rel (%p869) target = $region162
    $region161: #{cnn_clf_forward.1} parent=146 // pred_region
      %s873 = sand.u32 4, 7
      %s874 = ssub.s32 4, %s873
      %s875 = scalar_lea.vmem %s13, %s874
      %s876 = ssub.s32 4, %s873
      %s877 = scalar_lea.vmem [#allocation5], %s876
      loop: start=0, step=1, limit=1
      $region163: #{cnn_clf_forward.1} parent=161 // loop_pre_header
        _
      $region164: #{cnn_clf_forward.1} parent=161 // loop_header
        %s879 = sphi 0, %s883
        %p880 = scmp.ge.s32.totalorder %s879, 1
        %s884 = sphi %s13, %s13
        %s885 = sphi [#allocation5], [#allocation5]
      $region165: #{cnn_clf_forward.1} parent=161 // loop_header_branch
        %882 = sbr.rel (%p880) target = $region169
      $region166: #{cnn_clf_forward.1} parent=161 // loop_body
        _
      $region167: #{cnn_clf_forward.1} parent=161 // loop_footer
        %s883 = sadd.s32 1, %s879
      $region168: #{cnn_clf_forward.1} parent=161 // loop_footer_branch
        %878 = sbr.rel target = $region164
      $region169: #{cnn_clf_forward.1} parent=161 // loop_exit
        _
      %s886 = sshllo.u32 0, %s873
      loop: start=0, step=1, limit=1
      $region170: #{cnn_clf_forward.1} parent=161 // loop_pre_header
        _
      $region171: #{cnn_clf_forward.1} parent=161 // loop_header
        %s888 = sphi 0, %s892
        %p889 = scmp.ge.s32.totalorder %s888, 1
        %s893 = sphi %s875, %s875
        %s894 = sphi %s877, %s877
      $region172: #{cnn_clf_forward.1} parent=161 // loop_header_branch
        %891 = sbr.rel (%p889) target = $region176
      $region173: #{cnn_clf_forward.1} parent=161 // loop_body
        %v895 = vld [vmem:[%s893] sm:%s886]
        %896 = vst [vmem:[%s894] sm:%s886] %v895
        %v897 = vld [vmem:[%s893 + $0x8] sm:%s886]
        %898 = vst [vmem:[%s894 + $0x4] sm:%s886] %v897
        %v899 = vld [vmem:[%s893 + $0x4] sm:%s886]
        %900 = vst [vmem:[%s894 + $0x8] sm:%s886] %v899
        %v901 = vld [vmem:[%s893 + $0xc] sm:%s886]
        %902 = vst [vmem:[%s894 + $0xc] sm:%s886] %v901
        %v903 = vld [vmem:[%s893 + $0x10] sm:%s886]
        %904 = vst [vmem:[%s894 + $0x10] sm:%s886] %v903
        %v905 = vld [vmem:[%s893 + $0x18] sm:%s886]
        %906 = vst [vmem:[%s894 + $0x14] sm:%s886] %v905
        %v907 = vld [vmem:[%s893 + $0x14] sm:%s886]
        %908 = vst [vmem:[%s894 + $0x18] sm:%s886] %v907
        %v909 = vld [vmem:[%s893 + $0x1c] sm:%s886]
        %910 = vst [vmem:[%s894 + $0x1c] sm:%s886] %v909
        %v911 = vld [vmem:[%s893 + $0x20] sm:%s886]
        %912 = vst [vmem:[%s894 + $0x20] sm:%s886] %v911
        %v913 = vld [vmem:[%s893 + $0x28] sm:%s886]
        %914 = vst [vmem:[%s894 + $0x24] sm:%s886] %v913
        %v915 = vld [vmem:[%s893 + $0x24] sm:%s886]
        %916 = vst [vmem:[%s894 + $0x28] sm:%s886] %v915
        %v917 = vld [vmem:[%s893 + $0x2c] sm:%s886]
        %918 = vst [vmem:[%s894 + $0x2c] sm:%s886] %v917
        %v919 = vld [vmem:[%s893 + $0x30] sm:%s886]
        %920 = vst [vmem:[%s894 + $0x30] sm:%s886] %v919
        %v921 = vld [vmem:[%s893 + $0x38] sm:%s886]
        %922 = vst [vmem:[%s894 + $0x34] sm:%s886] %v921
        %v923 = vld [vmem:[%s893 + $0x34] sm:%s886]
        %924 = vst [vmem:[%s894 + $0x38] sm:%s886] %v923
        %v925 = vld [vmem:[%s893 + $0x3c] sm:%s886]
        %926 = vst [vmem:[%s894 + $0x3c] sm:%s886] %v925
        %v927 = vld [vmem:[%s893 + $0x40] sm:%s886]
        %928 = vst [vmem:[%s894 + $0x40] sm:%s886] %v927
        %v929 = vld [vmem:[%s893 + $0x48] sm:%s886]
        %930 = vst [vmem:[%s894 + $0x44] sm:%s886] %v929
        %v931 = vld [vmem:[%s893 + $0x44] sm:%s886]
        %932 = vst [vmem:[%s894 + $0x48] sm:%s886] %v931
        %v933 = vld [vmem:[%s893 + $0x4c] sm:%s886]
        %934 = vst [vmem:[%s894 + $0x4c] sm:%s886] %v933
        %v935 = vld [vmem:[%s893 + $0x50] sm:%s886]
        %936 = vst [vmem:[%s894 + $0x50] sm:%s886] %v935
        %v937 = vld [vmem:[%s893 + $0x58] sm:%s886]
        %938 = vst [vmem:[%s894 + $0x54] sm:%s886] %v937
        %v939 = vld [vmem:[%s893 + $0x54] sm:%s886]
        %940 = vst [vmem:[%s894 + $0x58] sm:%s886] %v939
        %v941 = vld [vmem:[%s893 + $0x5c] sm:%s886]
        %942 = vst [vmem:[%s894 + $0x5c] sm:%s886] %v941
        %v943 = vld [vmem:[%s893 + $0x60] sm:%s886]
        %944 = vst [vmem:[%s894 + $0x60] sm:%s886] %v943
        %v945 = vld [vmem:[%s893 + $0x68] sm:%s886]
        %946 = vst [vmem:[%s894 + $0x64] sm:%s886] %v945
        %v947 = vld [vmem:[%s893 + $0x64] sm:%s886]
        %948 = vst [vmem:[%s894 + $0x68] sm:%s886] %v947
        %v949 = vld [vmem:[%s893 + $0x6c] sm:%s886]
        %950 = vst [vmem:[%s894 + $0x6c] sm:%s886] %v949
        %v951 = vld [vmem:[%s893 + $0x70] sm:%s886]
        %952 = vst [vmem:[%s894 + $0x70] sm:%s886] %v951
        %v953 = vld [vmem:[%s893 + $0x78] sm:%s886]
        %954 = vst [vmem:[%s894 + $0x74] sm:%s886] %v953
        %v955 = vld [vmem:[%s893 + $0x74] sm:%s886]
        %956 = vst [vmem:[%s894 + $0x78] sm:%s886] %v955
        %v957 = vld [vmem:[%s893 + $0x7c] sm:%s886]
        %958 = vst [vmem:[%s894 + $0x7c] sm:%s886] %v957
        %v959 = vld [vmem:[%s893 + $0x80] sm:%s886]
        %960 = vst [vmem:[%s894 + $0x80] sm:%s886] %v959
        %v961 = vld [vmem:[%s893 + $0x88] sm:%s886]
        %962 = vst [vmem:[%s894 + $0x84] sm:%s886] %v961
        %v963 = vld [vmem:[%s893 + $0x84] sm:%s886]
        %964 = vst [vmem:[%s894 + $0x88] sm:%s886] %v963
        %v965 = vld [vmem:[%s893 + $0x8c] sm:%s886]
        %966 = vst [vmem:[%s894 + $0x8c] sm:%s886] %v965
        %v967 = vld [vmem:[%s893 + $0x90] sm:%s886]
        %968 = vst [vmem:[%s894 + $0x90] sm:%s886] %v967
        %v969 = vld [vmem:[%s893 + $0x98] sm:%s886]
        %970 = vst [vmem:[%s894 + $0x94] sm:%s886] %v969
        %v971 = vld [vmem:[%s893 + $0x94] sm:%s886]
        %972 = vst [vmem:[%s894 + $0x98] sm:%s886] %v971
        %v973 = vld [vmem:[%s893 + $0x9c] sm:%s886]
        %974 = vst [vmem:[%s894 + $0x9c] sm:%s886] %v973
        %v975 = vld [vmem:[%s893 + $0xa0] sm:%s886]
        %976 = vst [vmem:[%s894 + $0xa0] sm:%s886] %v975
        %v977 = vld [vmem:[%s893 + $0xa8] sm:%s886]
        %978 = vst [vmem:[%s894 + $0xa4] sm:%s886] %v977
        %v979 = vld [vmem:[%s893 + $0xa4] sm:%s886]
        %980 = vst [vmem:[%s894 + $0xa8] sm:%s886] %v979
        %v981 = vld [vmem:[%s893 + $0xac] sm:%s886]
        %982 = vst [vmem:[%s894 + $0xac] sm:%s886] %v981
        %v983 = vld [vmem:[%s893 + $0xb0] sm:%s886]
        %984 = vst [vmem:[%s894 + $0xb0] sm:%s886] %v983
        %v985 = vld [vmem:[%s893 + $0xb8] sm:%s886]
        %986 = vst [vmem:[%s894 + $0xb4] sm:%s886] %v985
        %v987 = vld [vmem:[%s893 + $0xb4] sm:%s886]
        %988 = vst [vmem:[%s894 + $0xb8] sm:%s886] %v987
        %v989 = vld [vmem:[%s893 + $0xbc] sm:%s886]
        %990 = vst [vmem:[%s894 + $0xbc] sm:%s886] %v989
        %v991 = vld [vmem:[%s893 + $0xc0] sm:%s886]
        %992 = vst [vmem:[%s894 + $0xc0] sm:%s886] %v991
        %v993 = vld [vmem:[%s893 + $0xc8] sm:%s886]
        %994 = vst [vmem:[%s894 + $0xc4] sm:%s886] %v993
        %v995 = vld [vmem:[%s893 + $0xc4] sm:%s886]
        %996 = vst [vmem:[%s894 + $0xc8] sm:%s886] %v995
        %v997 = vld [vmem:[%s893 + $0xcc] sm:%s886]
        %998 = vst [vmem:[%s894 + $0xcc] sm:%s886] %v997
        %v999 = vld [vmem:[%s893 + $0xd0] sm:%s886]
        %1000 = vst [vmem:[%s894 + $0xd0] sm:%s886] %v999
        %v1001 = vld [vmem:[%s893 + $0xd8] sm:%s886]
        %1002 = vst [vmem:[%s894 + $0xd4] sm:%s886] %v1001
        %v1003 = vld [vmem:[%s893 + $0xd4] sm:%s886]
        %1004 = vst [vmem:[%s894 + $0xd8] sm:%s886] %v1003
        %v1005 = vld [vmem:[%s893 + $0xdc] sm:%s886]
        %1006 = vst [vmem:[%s894 + $0xdc] sm:%s886] %v1005
        %v1007 = vld [vmem:[%s893 + $0xe0] sm:%s886]
        %1008 = vst [vmem:[%s894 + $0xe0] sm:%s886] %v1007
        %v1009 = vld [vmem:[%s893 + $0xe8] sm:%s886]
        %1010 = vst [vmem:[%s894 + $0xe4] sm:%s886] %v1009
        %v1011 = vld [vmem:[%s893 + $0xe4] sm:%s886]
        %1012 = vst [vmem:[%s894 + $0xe8] sm:%s886] %v1011
        %v1013 = vld [vmem:[%s893 + $0xec] sm:%s886]
        %1014 = vst [vmem:[%s894 + $0xec] sm:%s886] %v1013
        %v1015 = vld [vmem:[%s893 + $0xf0] sm:%s886]
        %1016 = vst [vmem:[%s894 + $0xf0] sm:%s886] %v1015
        %v1017 = vld [vmem:[%s893 + $0xf8] sm:%s886]
        %1018 = vst [vmem:[%s894 + $0xf4] sm:%s886] %v1017
        %v1019 = vld [vmem:[%s893 + $0xf4] sm:%s886]
        %1020 = vst [vmem:[%s894 + $0xf8] sm:%s886] %v1019
        %v1021 = vld [vmem:[%s893 + $0xfc] sm:%s886]
        %1022 = vst [vmem:[%s894 + $0xfc] sm:%s886] %v1021
        %v1023 = vld [vmem:[%s893 + $0x100] sm:%s886]
        %1024 = vst [vmem:[%s894 + $0x100] sm:%s886] %v1023
        %v1025 = vld [vmem:[%s893 + $0x108] sm:%s886]
        %1026 = vst [vmem:[%s894 + $0x104] sm:%s886] %v1025
        %v1027 = vld [vmem:[%s893 + $0x104] sm:%s886]
        %1028 = vst [vmem:[%s894 + $0x108] sm:%s886] %v1027
        %v1029 = vld [vmem:[%s893 + $0x10c] sm:%s886]
        %1030 = vst [vmem:[%s894 + $0x10c] sm:%s886] %v1029
        %v1031 = vld [vmem:[%s893 + $0x110] sm:%s886]
        %1032 = vst [vmem:[%s894 + $0x110] sm:%s886] %v1031
        %v1033 = vld [vmem:[%s893 + $0x118] sm:%s886]
        %1034 = vst [vmem:[%s894 + $0x114] sm:%s886] %v1033
        %v1035 = vld [vmem:[%s893 + $0x114] sm:%s886]
        %1036 = vst [vmem:[%s894 + $0x118] sm:%s886] %v1035
        %v1037 = vld [vmem:[%s893 + $0x11c] sm:%s886]
        %1038 = vst [vmem:[%s894 + $0x11c] sm:%s886] %v1037
        %v1039 = vld [vmem:[%s893 + $0x120] sm:%s886]
        %1040 = vst [vmem:[%s894 + $0x120] sm:%s886] %v1039
        %v1041 = vld [vmem:[%s893 + $0x128] sm:%s886]
        %1042 = vst [vmem:[%s894 + $0x124] sm:%s886] %v1041
        %v1043 = vld [vmem:[%s893 + $0x124] sm:%s886]
        %1044 = vst [vmem:[%s894 + $0x128] sm:%s886] %v1043
        %v1045 = vld [vmem:[%s893 + $0x12c] sm:%s886]
        %1046 = vst [vmem:[%s894 + $0x12c] sm:%s886] %v1045
        %v1047 = vld [vmem:[%s893 + $0x130] sm:%s886]
        %1048 = vst [vmem:[%s894 + $0x130] sm:%s886] %v1047
        %v1049 = vld [vmem:[%s893 + $0x138] sm:%s886]
        %1050 = vst [vmem:[%s894 + $0x134] sm:%s886] %v1049
        %v1051 = vld [vmem:[%s893 + $0x134] sm:%s886]
        %1052 = vst [vmem:[%s894 + $0x138] sm:%s886] %v1051
        %v1053 = vld [vmem:[%s893 + $0x13c] sm:%s886]
        %1054 = vst [vmem:[%s894 + $0x13c] sm:%s886] %v1053
        %v1055 = vld [vmem:[%s893 + $0x140] sm:%s886]
        %1056 = vst [vmem:[%s894 + $0x140] sm:%s886] %v1055
        %v1057 = vld [vmem:[%s893 + $0x148] sm:%s886]
        %1058 = vst [vmem:[%s894 + $0x144] sm:%s886] %v1057
        %v1059 = vld [vmem:[%s893 + $0x144] sm:%s886]
        %1060 = vst [vmem:[%s894 + $0x148] sm:%s886] %v1059
        %v1061 = vld [vmem:[%s893 + $0x14c] sm:%s886]
        %1062 = vst [vmem:[%s894 + $0x14c] sm:%s886] %v1061
        %v1063 = vld [vmem:[%s893 + $0x150] sm:%s886]
        %1064 = vst [vmem:[%s894 + $0x150] sm:%s886] %v1063
        %v1065 = vld [vmem:[%s893 + $0x158] sm:%s886]
        %1066 = vst [vmem:[%s894 + $0x154] sm:%s886] %v1065
        %v1067 = vld [vmem:[%s893 + $0x154] sm:%s886]
        %1068 = vst [vmem:[%s894 + $0x158] sm:%s886] %v1067
        %v1069 = vld [vmem:[%s893 + $0x15c] sm:%s886]
        %1070 = vst [vmem:[%s894 + $0x15c] sm:%s886] %v1069
        %v1071 = vld [vmem:[%s893 + $0x160] sm:%s886]
        %1072 = vst [vmem:[%s894 + $0x160] sm:%s886] %v1071
        %v1073 = vld [vmem:[%s893 + $0x168] sm:%s886]
        %1074 = vst [vmem:[%s894 + $0x164] sm:%s886] %v1073
        %v1075 = vld [vmem:[%s893 + $0x164] sm:%s886]
        %1076 = vst [vmem:[%s894 + $0x168] sm:%s886] %v1075
        %v1077 = vld [vmem:[%s893 + $0x16c] sm:%s886]
        %1078 = vst [vmem:[%s894 + $0x16c] sm:%s886] %v1077
        %v1079 = vld [vmem:[%s893 + $0x170] sm:%s886]
        %1080 = vst [vmem:[%s894 + $0x170] sm:%s886] %v1079
        %v1081 = vld [vmem:[%s893 + $0x178] sm:%s886]
        %1082 = vst [vmem:[%s894 + $0x174] sm:%s886] %v1081
        %v1083 = vld [vmem:[%s893 + $0x174] sm:%s886]
        %1084 = vst [vmem:[%s894 + $0x178] sm:%s886] %v1083
        %v1085 = vld [vmem:[%s893 + $0x17c] sm:%s886]
        %1086 = vst [vmem:[%s894 + $0x17c] sm:%s886] %v1085
        %v1087 = vld [vmem:[%s893 + $0x180] sm:%s886]
        %1088 = vst [vmem:[%s894 + $0x180] sm:%s886] %v1087
        %v1089 = vld [vmem:[%s893 + $0x188] sm:%s886]
        %1090 = vst [vmem:[%s894 + $0x184] sm:%s886] %v1089
        %v1091 = vld [vmem:[%s893 + $0x184] sm:%s886]
        %1092 = vst [vmem:[%s894 + $0x188] sm:%s886] %v1091
        %v1093 = vld [vmem:[%s893 + $0x18c] sm:%s886]
        %1094 = vst [vmem:[%s894 + $0x18c] sm:%s886] %v1093
        %v1095 = vld [vmem:[%s893 + $0x190] sm:%s886]
        %1096 = vst [vmem:[%s894 + $0x190] sm:%s886] %v1095
        %v1097 = vld [vmem:[%s893 + $0x198] sm:%s886]
        %1098 = vst [vmem:[%s894 + $0x194] sm:%s886] %v1097
        %v1099 = vld [vmem:[%s893 + $0x194] sm:%s886]
        %1100 = vst [vmem:[%s894 + $0x198] sm:%s886] %v1099
        %v1101 = vld [vmem:[%s893 + $0x19c] sm:%s886]
        %1102 = vst [vmem:[%s894 + $0x19c] sm:%s886] %v1101
        %v1103 = vld [vmem:[%s893 + $0x1a0] sm:%s886]
        %1104 = vst [vmem:[%s894 + $0x1a0] sm:%s886] %v1103
        %v1105 = vld [vmem:[%s893 + $0x1a8] sm:%s886]
        %1106 = vst [vmem:[%s894 + $0x1a4] sm:%s886] %v1105
        %v1107 = vld [vmem:[%s893 + $0x1a4] sm:%s886]
        %1108 = vst [vmem:[%s894 + $0x1a8] sm:%s886] %v1107
        %v1109 = vld [vmem:[%s893 + $0x1ac] sm:%s886]
        %1110 = vst [vmem:[%s894 + $0x1ac] sm:%s886] %v1109
        %v1111 = vld [vmem:[%s893 + $0x1b0] sm:%s886]
        %1112 = vst [vmem:[%s894 + $0x1b0] sm:%s886] %v1111
        %v1113 = vld [vmem:[%s893 + $0x1b8] sm:%s886]
        %1114 = vst [vmem:[%s894 + $0x1b4] sm:%s886] %v1113
        %v1115 = vld [vmem:[%s893 + $0x1b4] sm:%s886]
        %1116 = vst [vmem:[%s894 + $0x1b8] sm:%s886] %v1115
        %v1117 = vld [vmem:[%s893 + $0x1bc] sm:%s886]
        %1118 = vst [vmem:[%s894 + $0x1bc] sm:%s886] %v1117
        %v1119 = vld [vmem:[%s893 + $0x1c0] sm:%s886]
        %1120 = vst [vmem:[%s894 + $0x1c0] sm:%s886] %v1119
        %v1121 = vld [vmem:[%s893 + $0x1c8] sm:%s886]
        %1122 = vst [vmem:[%s894 + $0x1c4] sm:%s886] %v1121
        %v1123 = vld [vmem:[%s893 + $0x1c4] sm:%s886]
        %1124 = vst [vmem:[%s894 + $0x1c8] sm:%s886] %v1123
        %v1125 = vld [vmem:[%s893 + $0x1cc] sm:%s886]
        %1126 = vst [vmem:[%s894 + $0x1cc] sm:%s886] %v1125
        %v1127 = vld [vmem:[%s893 + $0x1d0] sm:%s886]
        %1128 = vst [vmem:[%s894 + $0x1d0] sm:%s886] %v1127
        %v1129 = vld [vmem:[%s893 + $0x1d8] sm:%s886]
        %1130 = vst [vmem:[%s894 + $0x1d4] sm:%s886] %v1129
        %v1131 = vld [vmem:[%s893 + $0x1d4] sm:%s886]
        %1132 = vst [vmem:[%s894 + $0x1d8] sm:%s886] %v1131
        %v1133 = vld [vmem:[%s893 + $0x1dc] sm:%s886]
        %1134 = vst [vmem:[%s894 + $0x1dc] sm:%s886] %v1133
        %v1135 = vld [vmem:[%s893 + $0x1e0] sm:%s886]
        %1136 = vst [vmem:[%s894 + $0x1e0] sm:%s886] %v1135
        %v1137 = vld [vmem:[%s893 + $0x1e8] sm:%s886]
        %1138 = vst [vmem:[%s894 + $0x1e4] sm:%s886] %v1137
        %v1139 = vld [vmem:[%s893 + $0x1e4] sm:%s886]
        %1140 = vst [vmem:[%s894 + $0x1e8] sm:%s886] %v1139
        %v1141 = vld [vmem:[%s893 + $0x1ec] sm:%s886]
        %1142 = vst [vmem:[%s894 + $0x1ec] sm:%s886] %v1141
        %v1143 = vld [vmem:[%s893 + $0x1f0] sm:%s886]
        %1144 = vst [vmem:[%s894 + $0x1f0] sm:%s886] %v1143
        %v1145 = vld [vmem:[%s893 + $0x1f8] sm:%s886]
        %1146 = vst [vmem:[%s894 + $0x1f4] sm:%s886] %v1145
        %v1147 = vld [vmem:[%s893 + $0x1f4] sm:%s886]
        %1148 = vst [vmem:[%s894 + $0x1f8] sm:%s886] %v1147
        %v1149 = vld [vmem:[%s893 + $0x1fc] sm:%s886]
        %1150 = vst [vmem:[%s894 + $0x1fc] sm:%s886] %v1149
      $region174: #{cnn_clf_forward.1} parent=161 // loop_footer
        %s892 = sadd.s32 1, %s888
      $region175: #{cnn_clf_forward.1} parent=161 // loop_footer_branch
        %887 = sbr.rel target = $region171
      $region176: #{cnn_clf_forward.1} parent=161 // loop_exit
        _
    $region162: #{cnn_clf_forward.1} parent=146 // pred_fallthru
      _
  $region147: #{cnn_clf_forward.1} parent=0 // pred_fallthru
    _
  // Predicated region
  $region148: #{cnn_clf_forward.1} parent=0 // pred_check
    %p600 = pneg %p596
  $region149: #{cnn_clf_forward.1} parent=0 // pred_check_branch
    %602 = sbr.rel (%p600) target = $region151
  $region150: #{cnn_clf_forward.1} parent=0 // pred_region
    %s603 = sshllo.u32 0, 4
    loop: start=0, step=1, limit=1
    $region152: #{cnn_clf_forward.1} parent=150 // loop_pre_header
      _
    $region153: #{cnn_clf_forward.1} parent=150 // loop_header
      %s605 = sphi 0, %s609
      %p606 = scmp.ge.s32.totalorder %s605, 1
      %s610 = sphi %s13, %s13
      %s611 = sphi [#allocation5], [#allocation5]
    $region154: #{cnn_clf_forward.1} parent=150 // loop_header_branch
      %608 = sbr.rel (%p606) target = $region158
    $region155: #{cnn_clf_forward.1} parent=150 // loop_body
      %v612 = vld [vmem:[%s610] sm:%s603]
      %613 = vst [vmem:[%s611] sm:%s603] %v612
      %v614 = vld [vmem:[%s610 + $0x8] sm:%s603]
      %615 = vst [vmem:[%s611 + $0x4] sm:%s603] %v614
      %v616 = vld [vmem:[%s610 + $0x4] sm:%s603]
      %617 = vst [vmem:[%s611 + $0x8] sm:%s603] %v616
      %v618 = vld [vmem:[%s610 + $0xc] sm:%s603]
      %619 = vst [vmem:[%s611 + $0xc] sm:%s603] %v618
      %v620 = vld [vmem:[%s610 + $0x10] sm:%s603]
      %621 = vst [vmem:[%s611 + $0x10] sm:%s603] %v620
      %v622 = vld [vmem:[%s610 + $0x18] sm:%s603]
      %623 = vst [vmem:[%s611 + $0x14] sm:%s603] %v622
      %v624 = vld [vmem:[%s610 + $0x14] sm:%s603]
      %625 = vst [vmem:[%s611 + $0x18] sm:%s603] %v624
      %v626 = vld [vmem:[%s610 + $0x1c] sm:%s603]
      %627 = vst [vmem:[%s611 + $0x1c] sm:%s603] %v626
      %v628 = vld [vmem:[%s610 + $0x20] sm:%s603]
      %629 = vst [vmem:[%s611 + $0x20] sm:%s603] %v628
      %v630 = vld [vmem:[%s610 + $0x28] sm:%s603]
      %631 = vst [vmem:[%s611 + $0x24] sm:%s603] %v630
      %v632 = vld [vmem:[%s610 + $0x24] sm:%s603]
      %633 = vst [vmem:[%s611 + $0x28] sm:%s603] %v632
      %v634 = vld [vmem:[%s610 + $0x2c] sm:%s603]
      %635 = vst [vmem:[%s611 + $0x2c] sm:%s603] %v634
      %v636 = vld [vmem:[%s610 + $0x30] sm:%s603]
      %637 = vst [vmem:[%s611 + $0x30] sm:%s603] %v636
      %v638 = vld [vmem:[%s610 + $0x38] sm:%s603]
      %639 = vst [vmem:[%s611 + $0x34] sm:%s603] %v638
      %v640 = vld [vmem:[%s610 + $0x34] sm:%s603]
      %641 = vst [vmem:[%s611 + $0x38] sm:%s603] %v640
      %v642 = vld [vmem:[%s610 + $0x3c] sm:%s603]
      %643 = vst [vmem:[%s611 + $0x3c] sm:%s603] %v642
      %v644 = vld [vmem:[%s610 + $0x40] sm:%s603]
      %645 = vst [vmem:[%s611 + $0x40] sm:%s603] %v644
      %v646 = vld [vmem:[%s610 + $0x48] sm:%s603]
      %647 = vst [vmem:[%s611 + $0x44] sm:%s603] %v646
      %v648 = vld [vmem:[%s610 + $0x44] sm:%s603]
      %649 = vst [vmem:[%s611 + $0x48] sm:%s603] %v648
      %v650 = vld [vmem:[%s610 + $0x4c] sm:%s603]
      %651 = vst [vmem:[%s611 + $0x4c] sm:%s603] %v650
      %v652 = vld [vmem:[%s610 + $0x50] sm:%s603]
      %653 = vst [vmem:[%s611 + $0x50] sm:%s603] %v652
      %v654 = vld [vmem:[%s610 + $0x58] sm:%s603]
      %655 = vst [vmem:[%s611 + $0x54] sm:%s603] %v654
      %v656 = vld [vmem:[%s610 + $0x54] sm:%s603]
      %657 = vst [vmem:[%s611 + $0x58] sm:%s603] %v656
      %v658 = vld [vmem:[%s610 + $0x5c] sm:%s603]
      %659 = vst [vmem:[%s611 + $0x5c] sm:%s603] %v658
      %v660 = vld [vmem:[%s610 + $0x60] sm:%s603]
      %661 = vst [vmem:[%s611 + $0x60] sm:%s603] %v660
      %v662 = vld [vmem:[%s610 + $0x68] sm:%s603]
      %663 = vst [vmem:[%s611 + $0x64] sm:%s603] %v662
      %v664 = vld [vmem:[%s610 + $0x64] sm:%s603]
      %665 = vst [vmem:[%s611 + $0x68] sm:%s603] %v664
      %v666 = vld [vmem:[%s610 + $0x6c] sm:%s603]
      %667 = vst [vmem:[%s611 + $0x6c] sm:%s603] %v666
      %v668 = vld [vmem:[%s610 + $0x70] sm:%s603]
      %669 = vst [vmem:[%s611 + $0x70] sm:%s603] %v668
      %v670 = vld [vmem:[%s610 + $0x78] sm:%s603]
      %671 = vst [vmem:[%s611 + $0x74] sm:%s603] %v670
      %v672 = vld [vmem:[%s610 + $0x74] sm:%s603]
      %673 = vst [vmem:[%s611 + $0x78] sm:%s603] %v672
      %v674 = vld [vmem:[%s610 + $0x7c] sm:%s603]
      %675 = vst [vmem:[%s611 + $0x7c] sm:%s603] %v674
      %v676 = vld [vmem:[%s610 + $0x80] sm:%s603]
      %677 = vst [vmem:[%s611 + $0x80] sm:%s603] %v676
      %v678 = vld [vmem:[%s610 + $0x88] sm:%s603]
      %679 = vst [vmem:[%s611 + $0x84] sm:%s603] %v678
      %v680 = vld [vmem:[%s610 + $0x84] sm:%s603]
      %681 = vst [vmem:[%s611 + $0x88] sm:%s603] %v680
      %v682 = vld [vmem:[%s610 + $0x8c] sm:%s603]
      %683 = vst [vmem:[%s611 + $0x8c] sm:%s603] %v682
      %v684 = vld [vmem:[%s610 + $0x90] sm:%s603]
      %685 = vst [vmem:[%s611 + $0x90] sm:%s603] %v684
      %v686 = vld [vmem:[%s610 + $0x98] sm:%s603]
      %687 = vst [vmem:[%s611 + $0x94] sm:%s603] %v686
      %v688 = vld [vmem:[%s610 + $0x94] sm:%s603]
      %689 = vst [vmem:[%s611 + $0x98] sm:%s603] %v688
      %v690 = vld [vmem:[%s610 + $0x9c] sm:%s603]
      %691 = vst [vmem:[%s611 + $0x9c] sm:%s603] %v690
      %v692 = vld [vmem:[%s610 + $0xa0] sm:%s603]
      %693 = vst [vmem:[%s611 + $0xa0] sm:%s603] %v692
      %v694 = vld [vmem:[%s610 + $0xa8] sm:%s603]
      %695 = vst [vmem:[%s611 + $0xa4] sm:%s603] %v694
      %v696 = vld [vmem:[%s610 + $0xa4] sm:%s603]
      %697 = vst [vmem:[%s611 + $0xa8] sm:%s603] %v696
      %v698 = vld [vmem:[%s610 + $0xac] sm:%s603]
      %699 = vst [vmem:[%s611 + $0xac] sm:%s603] %v698
      %v700 = vld [vmem:[%s610 + $0xb0] sm:%s603]
      %701 = vst [vmem:[%s611 + $0xb0] sm:%s603] %v700
      %v702 = vld [vmem:[%s610 + $0xb8] sm:%s603]
      %703 = vst [vmem:[%s611 + $0xb4] sm:%s603] %v702
      %v704 = vld [vmem:[%s610 + $0xb4] sm:%s603]
      %705 = vst [vmem:[%s611 + $0xb8] sm:%s603] %v704
      %v706 = vld [vmem:[%s610 + $0xbc] sm:%s603]
      %707 = vst [vmem:[%s611 + $0xbc] sm:%s603] %v706
      %v708 = vld [vmem:[%s610 + $0xc0] sm:%s603]
      %709 = vst [vmem:[%s611 + $0xc0] sm:%s603] %v708
      %v710 = vld [vmem:[%s610 + $0xc8] sm:%s603]
      %711 = vst [vmem:[%s611 + $0xc4] sm:%s603] %v710
      %v712 = vld [vmem:[%s610 + $0xc4] sm:%s603]
      %713 = vst [vmem:[%s611 + $0xc8] sm:%s603] %v712
      %v714 = vld [vmem:[%s610 + $0xcc] sm:%s603]
      %715 = vst [vmem:[%s611 + $0xcc] sm:%s603] %v714
      %v716 = vld [vmem:[%s610 + $0xd0] sm:%s603]
      %717 = vst [vmem:[%s611 + $0xd0] sm:%s603] %v716
      %v718 = vld [vmem:[%s610 + $0xd8] sm:%s603]
      %719 = vst [vmem:[%s611 + $0xd4] sm:%s603] %v718
      %v720 = vld [vmem:[%s610 + $0xd4] sm:%s603]
      %721 = vst [vmem:[%s611 + $0xd8] sm:%s603] %v720
      %v722 = vld [vmem:[%s610 + $0xdc] sm:%s603]
      %723 = vst [vmem:[%s611 + $0xdc] sm:%s603] %v722
      %v724 = vld [vmem:[%s610 + $0xe0] sm:%s603]
      %725 = vst [vmem:[%s611 + $0xe0] sm:%s603] %v724
      %v726 = vld [vmem:[%s610 + $0xe8] sm:%s603]
      %727 = vst [vmem:[%s611 + $0xe4] sm:%s603] %v726
      %v728 = vld [vmem:[%s610 + $0xe4] sm:%s603]
      %729 = vst [vmem:[%s611 + $0xe8] sm:%s603] %v728
      %v730 = vld [vmem:[%s610 + $0xec] sm:%s603]
      %731 = vst [vmem:[%s611 + $0xec] sm:%s603] %v730
      %v732 = vld [vmem:[%s610 + $0xf0] sm:%s603]
      %733 = vst [vmem:[%s611 + $0xf0] sm:%s603] %v732
      %v734 = vld [vmem:[%s610 + $0xf8] sm:%s603]
      %735 = vst [vmem:[%s611 + $0xf4] sm:%s603] %v734
      %v736 = vld [vmem:[%s610 + $0xf4] sm:%s603]
      %737 = vst [vmem:[%s611 + $0xf8] sm:%s603] %v736
      %v738 = vld [vmem:[%s610 + $0xfc] sm:%s603]
      %739 = vst [vmem:[%s611 + $0xfc] sm:%s603] %v738
      %v740 = vld [vmem:[%s610 + $0x100] sm:%s603]
      %741 = vst [vmem:[%s611 + $0x100] sm:%s603] %v740
      %v742 = vld [vmem:[%s610 + $0x108] sm:%s603]
      %743 = vst [vmem:[%s611 + $0x104] sm:%s603] %v742
      %v744 = vld [vmem:[%s610 + $0x104] sm:%s603]
      %745 = vst [vmem:[%s611 + $0x108] sm:%s603] %v744
      %v746 = vld [vmem:[%s610 + $0x10c] sm:%s603]
      %747 = vst [vmem:[%s611 + $0x10c] sm:%s603] %v746
      %v748 = vld [vmem:[%s610 + $0x110] sm:%s603]
      %749 = vst [vmem:[%s611 + $0x110] sm:%s603] %v748
      %v750 = vld [vmem:[%s610 + $0x118] sm:%s603]
      %751 = vst [vmem:[%s611 + $0x114] sm:%s603] %v750
      %v752 = vld [vmem:[%s610 + $0x114] sm:%s603]
      %753 = vst [vmem:[%s611 + $0x118] sm:%s603] %v752
      %v754 = vld [vmem:[%s610 + $0x11c] sm:%s603]
      %755 = vst [vmem:[%s611 + $0x11c] sm:%s603] %v754
      %v756 = vld [vmem:[%s610 + $0x120] sm:%s603]
      %757 = vst [vmem:[%s611 + $0x120] sm:%s603] %v756
      %v758 = vld [vmem:[%s610 + $0x128] sm:%s603]
      %759 = vst [vmem:[%s611 + $0x124] sm:%s603] %v758
      %v760 = vld [vmem:[%s610 + $0x124] sm:%s603]
      %761 = vst [vmem:[%s611 + $0x128] sm:%s603] %v760
      %v762 = vld [vmem:[%s610 + $0x12c] sm:%s603]
      %763 = vst [vmem:[%s611 + $0x12c] sm:%s603] %v762
      %v764 = vld [vmem:[%s610 + $0x130] sm:%s603]
      %765 = vst [vmem:[%s611 + $0x130] sm:%s603] %v764
      %v766 = vld [vmem:[%s610 + $0x138] sm:%s603]
      %767 = vst [vmem:[%s611 + $0x134] sm:%s603] %v766
      %v768 = vld [vmem:[%s610 + $0x134] sm:%s603]
      %769 = vst [vmem:[%s611 + $0x138] sm:%s603] %v768
      %v770 = vld [vmem:[%s610 + $0x13c] sm:%s603]
      %771 = vst [vmem:[%s611 + $0x13c] sm:%s603] %v770
      %v772 = vld [vmem:[%s610 + $0x140] sm:%s603]
      %773 = vst [vmem:[%s611 + $0x140] sm:%s603] %v772
      %v774 = vld [vmem:[%s610 + $0x148] sm:%s603]
      %775 = vst [vmem:[%s611 + $0x144] sm:%s603] %v774
      %v776 = vld [vmem:[%s610 + $0x144] sm:%s603]
      %777 = vst [vmem:[%s611 + $0x148] sm:%s603] %v776
      %v778 = vld [vmem:[%s610 + $0x14c] sm:%s603]
      %779 = vst [vmem:[%s611 + $0x14c] sm:%s603] %v778
      %v780 = vld [vmem:[%s610 + $0x150] sm:%s603]
      %781 = vst [vmem:[%s611 + $0x150] sm:%s603] %v780
      %v782 = vld [vmem:[%s610 + $0x158] sm:%s603]
      %783 = vst [vmem:[%s611 + $0x154] sm:%s603] %v782
      %v784 = vld [vmem:[%s610 + $0x154] sm:%s603]
      %785 = vst [vmem:[%s611 + $0x158] sm:%s603] %v784
      %v786 = vld [vmem:[%s610 + $0x15c] sm:%s603]
      %787 = vst [vmem:[%s611 + $0x15c] sm:%s603] %v786
      %v788 = vld [vmem:[%s610 + $0x160] sm:%s603]
      %789 = vst [vmem:[%s611 + $0x160] sm:%s603] %v788
      %v790 = vld [vmem:[%s610 + $0x168] sm:%s603]
      %791 = vst [vmem:[%s611 + $0x164] sm:%s603] %v790
      %v792 = vld [vmem:[%s610 + $0x164] sm:%s603]
      %793 = vst [vmem:[%s611 + $0x168] sm:%s603] %v792
      %v794 = vld [vmem:[%s610 + $0x16c] sm:%s603]
      %795 = vst [vmem:[%s611 + $0x16c] sm:%s603] %v794
      %v796 = vld [vmem:[%s610 + $0x170] sm:%s603]
      %797 = vst [vmem:[%s611 + $0x170] sm:%s603] %v796
      %v798 = vld [vmem:[%s610 + $0x178] sm:%s603]
      %799 = vst [vmem:[%s611 + $0x174] sm:%s603] %v798
      %v800 = vld [vmem:[%s610 + $0x174] sm:%s603]
      %801 = vst [vmem:[%s611 + $0x178] sm:%s603] %v800
      %v802 = vld [vmem:[%s610 + $0x17c] sm:%s603]
      %803 = vst [vmem:[%s611 + $0x17c] sm:%s603] %v802
      %v804 = vld [vmem:[%s610 + $0x180] sm:%s603]
      %805 = vst [vmem:[%s611 + $0x180] sm:%s603] %v804
      %v806 = vld [vmem:[%s610 + $0x188] sm:%s603]
      %807 = vst [vmem:[%s611 + $0x184] sm:%s603] %v806
      %v808 = vld [vmem:[%s610 + $0x184] sm:%s603]
      %809 = vst [vmem:[%s611 + $0x188] sm:%s603] %v808
      %v810 = vld [vmem:[%s610 + $0x18c] sm:%s603]
      %811 = vst [vmem:[%s611 + $0x18c] sm:%s603] %v810
      %v812 = vld [vmem:[%s610 + $0x190] sm:%s603]
      %813 = vst [vmem:[%s611 + $0x190] sm:%s603] %v812
      %v814 = vld [vmem:[%s610 + $0x198] sm:%s603]
      %815 = vst [vmem:[%s611 + $0x194] sm:%s603] %v814
      %v816 = vld [vmem:[%s610 + $0x194] sm:%s603]
      %817 = vst [vmem:[%s611 + $0x198] sm:%s603] %v816
      %v818 = vld [vmem:[%s610 + $0x19c] sm:%s603]
      %819 = vst [vmem:[%s611 + $0x19c] sm:%s603] %v818
      %v820 = vld [vmem:[%s610 + $0x1a0] sm:%s603]
      %821 = vst [vmem:[%s611 + $0x1a0] sm:%s603] %v820
      %v822 = vld [vmem:[%s610 + $0x1a8] sm:%s603]
      %823 = vst [vmem:[%s611 + $0x1a4] sm:%s603] %v822
      %v824 = vld [vmem:[%s610 + $0x1a4] sm:%s603]
      %825 = vst [vmem:[%s611 + $0x1a8] sm:%s603] %v824
      %v826 = vld [vmem:[%s610 + $0x1ac] sm:%s603]
      %827 = vst [vmem:[%s611 + $0x1ac] sm:%s603] %v826
      %v828 = vld [vmem:[%s610 + $0x1b0] sm:%s603]
      %829 = vst [vmem:[%s611 + $0x1b0] sm:%s603] %v828
      %v830 = vld [vmem:[%s610 + $0x1b8] sm:%s603]
      %831 = vst [vmem:[%s611 + $0x1b4] sm:%s603] %v830
      %v832 = vld [vmem:[%s610 + $0x1b4] sm:%s603]
      %833 = vst [vmem:[%s611 + $0x1b8] sm:%s603] %v832
      %v834 = vld [vmem:[%s610 + $0x1bc] sm:%s603]
      %835 = vst [vmem:[%s611 + $0x1bc] sm:%s603] %v834
      %v836 = vld [vmem:[%s610 + $0x1c0] sm:%s603]
      %837 = vst [vmem:[%s611 + $0x1c0] sm:%s603] %v836
      %v838 = vld [vmem:[%s610 + $0x1c8] sm:%s603]
      %839 = vst [vmem:[%s611 + $0x1c4] sm:%s603] %v838
      %v840 = vld [vmem:[%s610 + $0x1c4] sm:%s603]
      %841 = vst [vmem:[%s611 + $0x1c8] sm:%s603] %v840
      %v842 = vld [vmem:[%s610 + $0x1cc] sm:%s603]
      %843 = vst [vmem:[%s611 + $0x1cc] sm:%s603] %v842
      %v844 = vld [vmem:[%s610 + $0x1d0] sm:%s603]
      %845 = vst [vmem:[%s611 + $0x1d0] sm:%s603] %v844
      %v846 = vld [vmem:[%s610 + $0x1d8] sm:%s603]
      %847 = vst [vmem:[%s611 + $0x1d4] sm:%s603] %v846
      %v848 = vld [vmem:[%s610 + $0x1d4] sm:%s603]
      %849 = vst [vmem:[%s611 + $0x1d8] sm:%s603] %v848
      %v850 = vld [vmem:[%s610 + $0x1dc] sm:%s603]
      %851 = vst [vmem:[%s611 + $0x1dc] sm:%s603] %v850
      %v852 = vld [vmem:[%s610 + $0x1e0] sm:%s603]
      %853 = vst [vmem:[%s611 + $0x1e0] sm:%s603] %v852
      %v854 = vld [vmem:[%s610 + $0x1e8] sm:%s603]
      %855 = vst [vmem:[%s611 + $0x1e4] sm:%s603] %v854
      %v856 = vld [vmem:[%s610 + $0x1e4] sm:%s603]
      %857 = vst [vmem:[%s611 + $0x1e8] sm:%s603] %v856
      %v858 = vld [vmem:[%s610 + $0x1ec] sm:%s603]
      %859 = vst [vmem:[%s611 + $0x1ec] sm:%s603] %v858
      %v860 = vld [vmem:[%s610 + $0x1f0] sm:%s603]
      %861 = vst [vmem:[%s611 + $0x1f0] sm:%s603] %v860
      %v862 = vld [vmem:[%s610 + $0x1f8] sm:%s603]
      %863 = vst [vmem:[%s611 + $0x1f4] sm:%s603] %v862
      %v864 = vld [vmem:[%s610 + $0x1f4] sm:%s603]
      %865 = vst [vmem:[%s611 + $0x1f8] sm:%s603] %v864
      %v866 = vld [vmem:[%s610 + $0x1fc] sm:%s603]
      %867 = vst [vmem:[%s611 + $0x1fc] sm:%s603] %v866
    $region156: #{cnn_clf_forward.1} parent=150 // loop_footer
      %s609 = sadd.s32 1, %s605
    $region157: #{cnn_clf_forward.1} parent=150 // loop_footer_branch
      %604 = sbr.rel target = $region153
    $region158: #{cnn_clf_forward.1} parent=150 // loop_exit
      _
  $region151: #{cnn_clf_forward.1} parent=0 // pred_fallthru
    _
  // Predicated region
  $region177: #{cnn_clf_forward.1} parent=0 // pred_check
    _
  $region178: #{cnn_clf_forward.1} parent=0 // pred_check_branch
    %1153 = sbr.rel (0) target = $region180
  $region179: #{cnn_clf_forward.1} parent=0 // pred_region
    %1154 = vsyncadd %s594, 8192
  $region180: #{cnn_clf_forward.1} parent=0 // pred_fallthru
    _
  %v1155 = vld [vmem:[%s0] sm:$0xf]
  %v1156 = vld [vmem:[%s0 + $0x4] sm:$0xf]
  %v1157 = vld [vmem:[%s0 + $0x8] sm:$0xf]
  %v1158 = vld [vmem:[%s0 + $0xc] sm:$0xf]
  %v1159 = vld [vmem:[%s0 + $0x10] sm:$0xf]
  %v1160 = vld [vmem:[%s0 + $0x14] sm:$0xf]
  %v1161 = vld [vmem:[%s0 + $0x18] sm:$0xf]
  %v1162 = vld [vmem:[%s0 + $0x1c] sm:$0xf]
  %v1163 = vld [vmem:[%s0 + $0x20] sm:$0xf]
  %v1164 = vld [vmem:[%s0 + $0x24] sm:$0xf]
  %v1165 = vld [vmem:[%s0 + $0x28] sm:$0xf]
  %v1166 = vld [vmem:[%s0 + $0x2c] sm:$0xf]
  %v1167 = vld [vmem:[%s0 + $0x30] sm:$0xf]
  %v1168 = vld [vmem:[%s0 + $0x34] sm:$0xf]
  %v1169 = vld [vmem:[%s0 + $0x38] sm:$0xf]
  %v1170 = vld [vmem:[%s0 + $0x3c] sm:$0xf]
  %v1171 = vld [vmem:[%s0 + $0x40] sm:$0xf]
  %v1172 = vld [vmem:[%s0 + $0x44] sm:$0xf]
  %v1173 = vld [vmem:[%s0 + $0x48] sm:$0xf]
  %v1174 = vld [vmem:[%s0 + $0x4c] sm:$0xf]
  %v1175 = vld [vmem:[%s0 + $0x50] sm:$0xf]
  %v1176 = vld [vmem:[%s0 + $0x54] sm:$0xf]
  %v1177 = vld [vmem:[%s0 + $0x58] sm:$0xf]
  %v1178 = vld [vmem:[%s0 + $0x5c] sm:$0xf]
  %v1179 = vld [vmem:[%s0 + $0x60] sm:$0xf]
  %v1180 = vld [vmem:[%s0 + $0x64] sm:$0xf]
  %v1181 = vld [vmem:[%s0 + $0x68] sm:$0xf]
  %v1182 = vld [vmem:[%s0 + $0x6c] sm:$0xf]
  %v1183 = vld [vmem:[%s0 + $0x70] sm:$0xf]
  %v1184 = vld [vmem:[%s0 + $0x74] sm:$0xf]
  %v1185 = vld [vmem:[%s0 + $0x78] sm:$0xf]
  %v1186 = vld [vmem:[%s0 + $0x7c] sm:$0xf]
  %v1187 = vld [vmem:[%s1] sm:$0xf]
  %v1188 = vld [vmem:[%s1 + $0x4] sm:$0xf]
  %v1189 = vld [vmem:[%s1 + $0x8] sm:$0x1]
  %v1190 = vld [vmem:[%s2] sm:$0x1]
  %v1192 = vlaneseq
  %v1193 = vshrl.u32 %v1192, 7
  %v1194 = vsub.s32 0, %v1193
  %v1195 = vrot.slane %v1190, %v1194
  %v1229 = vunpack.c.l.b16 %v1155
  %v1230 = vunpack.c.l.b16 %v1156
  %v1231 = vunpack.c.l.b16 %v1157
  %v1232 = vunpack.c.l.b16 %v1158
  %v1233 = vunpack.c.l.b16 %v1159
  %v1234 = vunpack.c.l.b16 %v1160
  %v1235 = vunpack.c.l.b16 %v1161
  %v1236 = vunpack.c.l.b16 %v1162
  %v1237 = vunpack.c.l.b16 %v1163
  %v1238 = vunpack.c.l.b16 %v1164
  %v1239 = vunpack.c.l.b16 %v1165
  %v1240 = vunpack.c.l.b16 %v1166
  %v1241 = vunpack.c.l.b16 %v1167
  %v1242 = vunpack.c.l.b16 %v1168
  %v1243 = vunpack.c.l.b16 %v1169
  %v1244 = vunpack.c.l.b16 %v1170
  %v1245 = vunpack.c.l.b16 %v1171
  %v1246 = vunpack.c.l.b16 %v1172
  %v1247 = vunpack.c.l.b16 %v1173
  %v1248 = vunpack.c.l.b16 %v1174
  %v1249 = vunpack.c.l.b16 %v1175
  %v1250 = vunpack.c.l.b16 %v1176
  %v1251 = vunpack.c.l.b16 %v1177
  %v1252 = vunpack.c.l.b16 %v1178
  %v1253 = vunpack.c.l.b16 %v1179
  %v1254 = vunpack.c.l.b16 %v1180
  %v1255 = vunpack.c.l.b16 %v1181
  %v1256 = vunpack.c.l.b16 %v1182
  %v1257 = vunpack.c.l.b16 %v1183
  %v1258 = vunpack.c.l.b16 %v1184
  %v1259 = vunpack.c.l.b16 %v1185
  %v1260 = vunpack.c.l.b16 %v1186
  %v1261 = vpack.c.b16 %v1230, %v1229
  %v1262 = vpack.c.b16 %v1232, %v1231
  %v1263 = vpack.c.b16 %v1234, %v1233
  %v1264 = vpack.c.b16 %v1236, %v1235
  %v1265 = vpack.c.b16 %v1238, %v1237
  %v1266 = vpack.c.b16 %v1240, %v1239
  %v1267 = vpack.c.b16 %v1242, %v1241
  %v1268 = vpack.c.b16 %v1244, %v1243
  %v1269 = vpack.c.b16 %v1246, %v1245
  %v1270 = vpack.c.b16 %v1248, %v1247
  %v1271 = vpack.c.b16 %v1250, %v1249
  %v1272 = vpack.c.b16 %v1252, %v1251
  %v1273 = vpack.c.b16 %v1254, %v1253
  %v1274 = vpack.c.b16 %v1256, %v1255
  %v1275 = vpack.c.b16 %v1258, %v1257
  %v1276 = vpack.c.b16 %v1260, %v1259
  %v1280 = vunpack.c.l.b16 %v1187
  %v1281 = vunpack.c.l.b16 %v1188
  %v1282 = vunpack.c.l.b16 %v1189
  %v1283 = vpack.c.b16 %v1281, %v1280
  %v1284 = vpack.c.b16 %v1282, %v1282
  %vm1286 = vcmask 146432
  %v1288 = vsel %vm1286, %v1261, 0
  %v1291 = vsel %vm1286, %v1262, 0
  %v1294 = vsel %vm1286, %v1263, 0
  %v1297 = vsel %vm1286, %v1264, 0
  %v1300 = vsel %vm1286, %v1265, 0
  %v1303 = vsel %vm1286, %v1266, 0
  %v1306 = vsel %vm1286, %v1267, 0
  %v1309 = vsel %vm1286, %v1268, 0
  %v1312 = vsel %vm1286, %v1269, 0
  %v1315 = vsel %vm1286, %v1270, 0
  %v1318 = vsel %vm1286, %v1271, 0
  %v1321 = vsel %vm1286, %v1272, 0
  %v1324 = vsel %vm1286, %v1273, 0
  %v1327 = vsel %vm1286, %v1274, 0
  %v1330 = vsel %vm1286, %v1275, 0
  %v1333 = vsel %vm1286, %v1276, 0
  %vm1335 = vcmask 1040384
  %v1337 = vsel %vm1335, %v1284, 0
  %1339 = vmatprep.subr.bf16.mxu0 0
  %1340 = vmatpush1.bf16.msra.mxu0 %v1283
  %1341 = vmatprep.subr.bf16.mxu0 0
  %1342 = vmatpush1.bf16.msra.mxu0 %v1337
  %1343 = vmatprep.subr.bf16.mxu0 0
  %1344 = vmatpush1.bf16.msra.mxu0 0
  %1345 = vmatprep.subr.bf16.mxu0 0
  %1346 = vmatpush1.bf16.msra.mxu0 0
  %1347 = vmatprep.subr.bf16.mxu0 0
  %1348 = vmatpush1.bf16.msra.mxu0 0
  %1349 = vmatprep.subr.bf16.mxu0 0
  %1350 = vmatpush1.bf16.msra.mxu0 0
  %1351 = vmatprep.subr.bf16.mxu0 0
  %1352 = vmatpush1.bf16.msra.mxu0 0
  %1353 = vmatprep.subr.bf16.mxu0 0
  %1354 = vmatpush1.bf16.msra.mxu0 0
  %1355 = vmatprep.subr.bf16.mxu0 0
  %1356 = vmatpush1.bf16.msra.mxu0 0
  %1357 = vmatprep.subr.bf16.mxu0 0
  %1358 = vmatpush1.bf16.msra.mxu0 0
  %1359 = vmatprep.subr.bf16.mxu0 0
  %1360 = vmatpush1.bf16.msra.mxu0 0
  %1361 = vmatprep.subr.bf16.mxu0 0
  %1362 = vmatpush1.bf16.msra.mxu0 0
  %1363 = vmatprep.subr.bf16.mxu0 0
  %1364 = vmatpush1.bf16.msra.mxu0 0
  %1365 = vmatprep.subr.bf16.mxu0 0
  %1366 = vmatpush1.bf16.msra.mxu0 0
  %1367 = vmatprep.subr.bf16.mxu0 0
  %1368 = vmatpush1.bf16.msra.mxu0 0
  %1369 = vmatprep.subr.bf16.mxu0 0
  %1370 = vmatpush1.bf16.msra.mxu0 0
  %1371 = vmatprep.mubr.bf16.mxu0 0
  %1372 = vmatmul.mubr.bf16.gmra.mrb[0].mxu0 %v1288
  %v1373 = vpop.f32.mrb[0].mxu0
  %v1374 = vadd.f32 %v1195, %v1373
  %v1375 = vpop.f32.mrb[0].mxu0
  %v1376 = vpop.f32.mrb[0].mxu0
  %v1377 = vadd.f32 %v1195, %v1376
  %v1378 = vpop.f32.mrb[0].mxu0
  %1379 = vmatprep.mubr.bf16.mxu0 0
  %1380 = vmatmul.mubr.bf16.gmra.mrb[0].mxu0 %v1291
  %v1381 = vpop.f32.mrb[0].mxu0
  %v1382 = vadd.f32 %v1195, %v1381
  %v1383 = vpop.f32.mrb[0].mxu0
  %v1384 = vpop.f32.mrb[0].mxu0
  %v1385 = vadd.f32 %v1195, %v1384
  %v1386 = vpop.f32.mrb[0].mxu0
  %1387 = vmatprep.mubr.bf16.mxu0 0
  %1388 = vmatmul.mubr.bf16.gmra.mrb[0].mxu0 %v1294
  %v1389 = vpop.f32.mrb[0].mxu0
  %v1390 = vadd.f32 %v1195, %v1389
  %v1391 = vpop.f32.mrb[0].mxu0
  %v1392 = vpop.f32.mrb[0].mxu0
  %v1393 = vadd.f32 %v1195, %v1392
  %v1394 = vpop.f32.mrb[0].mxu0
  %1395 = vmatprep.mubr.bf16.mxu0 0
  %1396 = vmatmul.mubr.bf16.gmra.mrb[0].mxu0 %v1297
  %v1397 = vpop.f32.mrb[0].mxu0
  %v1398 = vadd.f32 %v1195, %v1397
  %v1399 = vpop.f32.mrb[0].mxu0
  %v1400 = vpop.f32.mrb[0].mxu0
  %v1401 = vadd.f32 %v1195, %v1400
  %v1402 = vpop.f32.mrb[0].mxu0
  %1403 = vmatprep.mubr.bf16.mxu0 0
  %1404 = vmatmul.mubr.bf16.gmra.mrb[0].mxu0 %v1300
  %v1405 = vpop.f32.mrb[0].mxu0
  %v1406 = vadd.f32 %v1195, %v1405
  %v1407 = vpop.f32.mrb[0].mxu0
  %v1408 = vpop.f32.mrb[0].mxu0
  %v1409 = vadd.f32 %v1195, %v1408
  %v1410 = vpop.f32.mrb[0].mxu0
  %1411 = vmatprep.mubr.bf16.mxu0 0
  %1412 = vmatmul.mubr.bf16.gmra.mrb[0].mxu0 %v1303
  %v1413 = vpop.f32.mrb[0].mxu0
  %v1414 = vadd.f32 %v1195, %v1413
  %v1415 = vpop.f32.mrb[0].mxu0
  %v1416 = vpop.f32.mrb[0].mxu0
  %v1417 = vadd.f32 %v1195, %v1416
  %v1418 = vpop.f32.mrb[0].mxu0
  %1419 = vmatprep.mubr.bf16.mxu0 0
  %1420 = vmatmul.mubr.bf16.gmra.mrb[0].mxu0 %v1306
  %v1421 = vpop.f32.mrb[0].mxu0
  %v1422 = vadd.f32 %v1195, %v1421
  %v1423 = vpop.f32.mrb[0].mxu0
  %v1424 = vpop.f32.mrb[0].mxu0
  %v1425 = vadd.f32 %v1195, %v1424
  %v1426 = vpop.f32.mrb[0].mxu0
  %1427 = vmatprep.mubr.bf16.mxu0 0
  %1428 = vmatmul.mubr.bf16.gmra.mrb[0].mxu0 %v1309
  %v1429 = vpop.f32.mrb[0].mxu0
  %v1430 = vadd.f32 %v1195, %v1429
  %v1431 = vpop.f32.mrb[0].mxu0
  %v1432 = vpop.f32.mrb[0].mxu0
  %v1433 = vadd.f32 %v1195, %v1432
  %v1434 = vpop.f32.mrb[0].mxu0
  %1435 = vmatprep.mubr.bf16.mxu0 0
  %1436 = vmatmul.mubr.bf16.gmra.mrb[0].mxu0 %v1312
  %v1437 = vpop.f32.mrb[0].mxu0
  %v1438 = vadd.f32 %v1195, %v1437
  %v1439 = vpop.f32.mrb[0].mxu0
  %v1440 = vpop.f32.mrb[0].mxu0
  %v1441 = vadd.f32 %v1195, %v1440
  %v1442 = vpop.f32.mrb[0].mxu0
  %1443 = vmatprep.mubr.bf16.mxu0 0
  %1444 = vmatmul.mubr.bf16.gmra.mrb[0].mxu0 %v1315
  %v1445 = vpop.f32.mrb[0].mxu0
  %v1446 = vadd.f32 %v1195, %v1445
  %v1447 = vpop.f32.mrb[0].mxu0
  %v1448 = vpop.f32.mrb[0].mxu0
  %v1449 = vadd.f32 %v1195, %v1448
  %v1450 = vpop.f32.mrb[0].mxu0
  %1451 = vmatprep.mubr.bf16.mxu0 0
  %1452 = vmatmul.mubr.bf16.gmra.mrb[0].mxu0 %v1318
  %v1453 = vpop.f32.mrb[0].mxu0
  %v1454 = vadd.f32 %v1195, %v1453
  %v1455 = vpop.f32.mrb[0].mxu0
  %v1456 = vpop.f32.mrb[0].mxu0
  %v1457 = vadd.f32 %v1195, %v1456
  %v1458 = vpop.f32.mrb[0].mxu0
  %1459 = vmatprep.mubr.bf16.mxu0 0
  %1460 = vmatmul.mubr.bf16.gmra.mrb[0].mxu0 %v1321
  %v1461 = vpop.f32.mrb[0].mxu0
  %v1462 = vadd.f32 %v1195, %v1461
  %v1463 = vpop.f32.mrb[0].mxu0
  %v1464 = vpop.f32.mrb[0].mxu0
  %v1465 = vadd.f32 %v1195, %v1464
  %v1466 = vpop.f32.mrb[0].mxu0
  %1467 = vmatprep.mubr.bf16.mxu0 0
  %1468 = vmatmul.mubr.bf16.gmra.mrb[0].mxu0 %v1324
  %v1469 = vpop.f32.mrb[0].mxu0
  %v1470 = vadd.f32 %v1195, %v1469
  %v1471 = vpop.f32.mrb[0].mxu0
  %v1472 = vpop.f32.mrb[0].mxu0
  %v1473 = vadd.f32 %v1195, %v1472
  %v1474 = vpop.f32.mrb[0].mxu0
  %1475 = vmatprep.mubr.bf16.mxu0 0
  %1476 = vmatmul.mubr.bf16.gmra.mrb[0].mxu0 %v1327
  %v1477 = vpop.f32.mrb[0].mxu0
  %v1478 = vadd.f32 %v1195, %v1477
  %v1479 = vpop.f32.mrb[0].mxu0
  %v1480 = vpop.f32.mrb[0].mxu0
  %v1481 = vadd.f32 %v1195, %v1480
  %v1482 = vpop.f32.mrb[0].mxu0
  %1483 = vmatprep.mubr.bf16.mxu0 0
  %1484 = vmatmul.mubr.bf16.gmra.mrb[0].mxu0 %v1330
  %v1485 = vpop.f32.mrb[0].mxu0
  %v1486 = vadd.f32 %v1195, %v1485
  %v1487 = vpop.f32.mrb[0].mxu0
  %v1488 = vpop.f32.mrb[0].mxu0
  %v1489 = vadd.f32 %v1195, %v1488
  %v1490 = vpop.f32.mrb[0].mxu0
  %1491 = vmatprep.mubr.bf16.mxu0 0
  %1492 = vmatmul.mubr.bf16.gmra.mrb[0].mxu0 %v1333
  %v1493 = vpop.f32.mrb[0].mxu0
  %v1494 = vadd.f32 %v1195, %v1493
  %v1495 = vpop.f32.mrb[0].mxu0
  %v1496 = vpop.f32.mrb[0].mxu0
  %v1497 = vadd.f32 %v1195, %v1496
  %v1498 = vpop.f32.mrb[0].mxu0
  %1499 = vdwg.mxu0
  %v1500 = vmax.f32 %v1374, 0.0
  %v1501 = vmax.f32 %v1377, 0.0
  %v1502 = vmax.f32 %v1382, 0.0
  %v1503 = vmax.f32 %v1385, 0.0
  %v1504 = vmax.f32 %v1390, 0.0
  %v1505 = vmax.f32 %v1393, 0.0
  %v1506 = vmax.f32 %v1398, 0.0
  %v1507 = vmax.f32 %v1401, 0.0
  %v1508 = vmax.f32 %v1406, 0.0
  %v1509 = vmax.f32 %v1409, 0.0
  %v1510 = vmax.f32 %v1414, 0.0
  %v1511 = vmax.f32 %v1417, 0.0
  %v1512 = vmax.f32 %v1422, 0.0
  %v1513 = vmax.f32 %v1425, 0.0
  %v1514 = vmax.f32 %v1430, 0.0
  %v1515 = vmax.f32 %v1433, 0.0
  %v1516 = vmax.f32 %v1438, 0.0
  %v1517 = vmax.f32 %v1441, 0.0
  %v1518 = vmax.f32 %v1446, 0.0
  %v1519 = vmax.f32 %v1449, 0.0
  %v1520 = vmax.f32 %v1454, 0.0
  %v1521 = vmax.f32 %v1457, 0.0
  %v1522 = vmax.f32 %v1462, 0.0
  %v1523 = vmax.f32 %v1465, 0.0
  %v1524 = vmax.f32 %v1470, 0.0
  %v1525 = vmax.f32 %v1473, 0.0
  %v1526 = vmax.f32 %v1478, 0.0
  %v1527 = vmax.f32 %v1481, 0.0
  %v1528 = vmax.f32 %v1486, 0.0
  %v1529 = vmax.f32 %v1489, 0.0
  %v1530 = vmax.f32 %v1494, 0.0
  %v1531 = vmax.f32 %v1497, 0.0
  %v1532 = vld [vmem:[%s3] sm:$0xff]
  %v1533 = vld [vmem:[%s3 + $0x8] sm:$0xff]
  %v1534 = vld [vmem:[%s3 + $0x10] sm:$0xff]
  %v1535 = vld [vmem:[%s3 + $0x18] sm:$0xff]
  %v1536 = vld [vmem:[%s3 + $0x20] sm:$0xff]
  %v1537 = vld [vmem:[%s3 + $0x28] sm:$0xff]
  %v1538 = vld [vmem:[%s3 + $0x30] sm:$0xff]
  %v1539 = vld [vmem:[%s3 + $0x38] sm:$0xff]
  %v1540 = vld [vmem:[%s3 + $0x40] sm:$0xff]
  %v1541 = vld [vmem:[%s3 + $0x48] sm:$0xff]
  %v1542 = vld [vmem:[%s3 + $0x50] sm:$0xff]
  %v1543 = vld [vmem:[%s3 + $0x58] sm:$0xff]
  %v1544 = vld [vmem:[%s3 + $0x60] sm:$0xff]
  %v1545 = vld [vmem:[%s3 + $0x68] sm:$0xff]
  %v1546 = vld [vmem:[%s3 + $0x70] sm:$0xff]
  %v1547 = vld [vmem:[%s3 + $0x78] sm:$0xff]
  %v1548 = vld [vmem:[%s3 + $0x80] sm:$0xff]
  %v1549 = vld [vmem:[%s3 + $0x88] sm:$0xff]
  %v1550 = vld [vmem:[%s3 + $0x90] sm:$0xff]
  %v1551 = vld [vmem:[%s3 + $0x98] sm:$0xff]
  %v1552 = vld [vmem:[%s3 + $0xa0] sm:$0xff]
  %v1553 = vld [vmem:[%s3 + $0xa8] sm:$0xff]
  %v1554 = vld [vmem:[%s3 + $0xb0] sm:$0xff]
  %v1555 = vld [vmem:[%s3 + $0xb8] sm:$0xff]
  %v1556 = vld [vmem:[%s3 + $0xc0] sm:$0xff]
  %v1557 = vld [vmem:[%s3 + $0xc8] sm:$0xff]
  %v1558 = vld [vmem:[%s3 + $0xd0] sm:$0xff]
  %v1559 = vld [vmem:[%s3 + $0xd8] sm:$0xff]
  %v1560 = vld [vmem:[%s3 + $0xe0] sm:$0xff]
  %v1561 = vld [vmem:[%s3 + $0xe8] sm:$0xff]
  %v1562 = vld [vmem:[%s3 + $0xf0] sm:$0xff]
  %v1563 = vld [vmem:[%s3 + $0xf8] sm:$0xff]
  %v1564 = vld [vmem:[%s3 + $0x100] sm:$0xff]
  %v1565 = vld [vmem:[%s3 + $0x108] sm:$0xff]
  %v1566 = vld [vmem:[%s3 + $0x110] sm:$0xff]
  %v1567 = vld [vmem:[%s3 + $0x118] sm:$0xff]
  %v1568 = vld [vmem:[%s3 + $0x120] sm:$0xff]
  %v1569 = vld [vmem:[%s3 + $0x128] sm:$0xff]
  %v1570 = vld [vmem:[%s3 + $0x130] sm:$0xff]
  %v1571 = vld [vmem:[%s3 + $0x138] sm:$0xff]
  %v1572 = vld [vmem:[%s3 + $0x140] sm:$0xff]
  %v1573 = vld [vmem:[%s3 + $0x148] sm:$0xff]
  %v1574 = vld [vmem:[%s3 + $0x150] sm:$0xff]
  %v1575 = vld [vmem:[%s3 + $0x158] sm:$0xff]
  %v1576 = vld [vmem:[%s3 + $0x160] sm:$0xff]
  %v1577 = vld [vmem:[%s3 + $0x168] sm:$0xff]
  %v1578 = vld [vmem:[%s3 + $0x170] sm:$0xff]
  %v1579 = vld [vmem:[%s3 + $0x178] sm:$0xff]
  %v1580 = vld [vmem:[%s3 + $0x180] sm:$0xff]
  %v1581 = vld [vmem:[%s3 + $0x188] sm:$0xff]
  %v1582 = vld [vmem:[%s3 + $0x190] sm:$0xff]
  %v1583 = vld [vmem:[%s3 + $0x198] sm:$0xff]
  %v1584 = vld [vmem:[%s3 + $0x1a0] sm:$0xff]
  %v1585 = vld [vmem:[%s3 + $0x1a8] sm:$0xff]
  %v1586 = vld [vmem:[%s3 + $0x1b0] sm:$0xff]
  %v1587 = vld [vmem:[%s3 + $0x1b8] sm:$0xff]
  %v1588 = vld [vmem:[%s3 + $0x1c0] sm:$0xff]
  %v1589 = vld [vmem:[%s3 + $0x1c8] sm:$0xff]
  %v1590 = vld [vmem:[%s3 + $0x1d0] sm:$0xff]
  %v1591 = vld [vmem:[%s3 + $0x1d8] sm:$0xff]
  %v1592 = vld [vmem:[%s3 + $0x1e0] sm:$0xff]
  %v1593 = vld [vmem:[%s3 + $0x1e8] sm:$0xff]
  %v1594 = vld [vmem:[%s3 + $0x1f0] sm:$0xff]
  %v1595 = vld [vmem:[%s3 + $0x1f8] sm:$0xff]
  %v1596 = vld [vmem:[%s3 + $0x200] sm:$0xff]
  %v1597 = vld [vmem:[%s3 + $0x208] sm:$0xff]
  %v1598 = vld [vmem:[%s3 + $0x210] sm:$0xff]
  %v1599 = vld [vmem:[%s3 + $0x218] sm:$0xff]
  %v1600 = vld [vmem:[%s3 + $0x220] sm:$0xff]
  %v1601 = vld [vmem:[%s3 + $0x228] sm:$0xff]
  %v1602 = vld [vmem:[%s3 + $0x230] sm:$0xff]
  %v1603 = vld [vmem:[%s3 + $0x238] sm:$0xff]
  %v1604 = vpack.c.bf16 %v1501, %v1500
  %v1605 = vpack.c.bf16 %v1503, %v1502
  %v1606 = vpack.c.bf16 %v1505, %v1504
  %v1607 = vpack.c.bf16 %v1507, %v1506
  %v1608 = vpack.c.bf16 %v1509, %v1508
  %v1609 = vpack.c.bf16 %v1511, %v1510
  %v1610 = vpack.c.bf16 %v1513, %v1512
  %v1611 = vpack.c.bf16 %v1515, %v1514
  %v1612 = vpack.c.bf16 %v1517, %v1516
  %v1613 = vpack.c.bf16 %v1519, %v1518
  %v1614 = vpack.c.bf16 %v1521, %v1520
  %v1615 = vpack.c.bf16 %v1523, %v1522
  %v1616 = vpack.c.bf16 %v1525, %v1524
  %v1617 = vpack.c.bf16 %v1527, %v1526
  %v1618 = vpack.c.bf16 %v1529, %v1528
  %v1619 = vpack.c.bf16 %v1531, %v1530
  %v1692 = vunpack.c.l.b16 %v1532
  %v1693 = vunpack.c.h.b16 %v1532
  %v1694 = vunpack.c.l.b16 %v1533
  %v1695 = vunpack.c.h.b16 %v1533
  %v1696 = vunpack.c.l.b16 %v1534
  %v1697 = vunpack.c.h.b16 %v1534
  %v1698 = vunpack.c.l.b16 %v1535
  %v1699 = vunpack.c.h.b16 %v1535
  %v1700 = vunpack.c.l.b16 %v1536
  %v1701 = vunpack.c.h.b16 %v1536
  %v1702 = vunpack.c.l.b16 %v1537
  %v1703 = vunpack.c.h.b16 %v1537
  %v1704 = vunpack.c.l.b16 %v1538
  %v1705 = vunpack.c.h.b16 %v1538
  %v1706 = vunpack.c.l.b16 %v1539
  %v1707 = vunpack.c.h.b16 %v1539
  %v1708 = vunpack.c.l.b16 %v1540
  %v1709 = vunpack.c.h.b16 %v1540
  %v1710 = vunpack.c.l.b16 %v1541
  %v1711 = vunpack.c.h.b16 %v1541
  %v1712 = vunpack.c.l.b16 %v1542
  %v1713 = vunpack.c.h.b16 %v1542
  %v1714 = vunpack.c.l.b16 %v1543
  %v1715 = vunpack.c.h.b16 %v1543
  %v1716 = vunpack.c.l.b16 %v1544
  %v1717 = vunpack.c.h.b16 %v1544
  %v1718 = vunpack.c.l.b16 %v1545
  %v1719 = vunpack.c.h.b16 %v1545
  %v1720 = vunpack.c.l.b16 %v1546
  %v1721 = vunpack.c.h.b16 %v1546
  %v1722 = vunpack.c.l.b16 %v1547
  %v1723 = vunpack.c.h.b16 %v1547
  %v1724 = vunpack.c.l.b16 %v1548
  %v1725 = vunpack.c.h.b16 %v1548
  %v1726 = vunpack.c.l.b16 %v1549
  %v1727 = vunpack.c.h.b16 %v1549
  %v1728 = vunpack.c.l.b16 %v1550
  %v1729 = vunpack.c.h.b16 %v1550
  %v1730 = vunpack.c.l.b16 %v1551
  %v1731 = vunpack.c.h.b16 %v1551
  %v1732 = vunpack.c.l.b16 %v1552
  %v1733 = vunpack.c.h.b16 %v1552
  %v1734 = vunpack.c.l.b16 %v1553
  %v1735 = vunpack.c.h.b16 %v1553
  %v1736 = vunpack.c.l.b16 %v1554
  %v1737 = vunpack.c.h.b16 %v1554
  %v1738 = vunpack.c.l.b16 %v1555
  %v1739 = vunpack.c.h.b16 %v1555
  %v1740 = vunpack.c.l.b16 %v1556
  %v1741 = vunpack.c.h.b16 %v1556
  %v1742 = vunpack.c.l.b16 %v1557
  %v1743 = vunpack.c.h.b16 %v1557
  %v1744 = vunpack.c.l.b16 %v1558
  %v1745 = vunpack.c.h.b16 %v1558
  %v1746 = vunpack.c.l.b16 %v1559
  %v1747 = vunpack.c.h.b16 %v1559
  %v1748 = vunpack.c.l.b16 %v1560
  %v1749 = vunpack.c.h.b16 %v1560
  %v1750 = vunpack.c.l.b16 %v1561
  %v1751 = vunpack.c.h.b16 %v1561
  %v1752 = vunpack.c.l.b16 %v1562
  %v1753 = vunpack.c.h.b16 %v1562
  %v1754 = vunpack.c.l.b16 %v1563
  %v1755 = vunpack.c.h.b16 %v1563
  %v1756 = vunpack.c.l.b16 %v1564
  %v1757 = vunpack.c.h.b16 %v1564
  %v1758 = vunpack.c.l.b16 %v1565
  %v1759 = vunpack.c.h.b16 %v1565
  %v1760 = vunpack.c.l.b16 %v1566
  %v1761 = vunpack.c.h.b16 %v1566
  %v1762 = vunpack.c.l.b16 %v1567
  %v1763 = vunpack.c.h.b16 %v1567
  %v1764 = vunpack.c.l.b16 %v1568
  %v1765 = vunpack.c.h.b16 %v1568
  %v1766 = vunpack.c.l.b16 %v1569
  %v1767 = vunpack.c.h.b16 %v1569
  %v1768 = vunpack.c.l.b16 %v1570
  %v1769 = vunpack.c.h.b16 %v1570
  %v1770 = vunpack.c.l.b16 %v1571
  %v1771 = vunpack.c.h.b16 %v1571
  %v1772 = vunpack.c.l.b16 %v1572
  %v1773 = vunpack.c.h.b16 %v1572
  %v1774 = vunpack.c.l.b16 %v1573
  %v1775 = vunpack.c.h.b16 %v1573
  %v1776 = vunpack.c.l.b16 %v1574
  %v1777 = vunpack.c.h.b16 %v1574
  %v1778 = vunpack.c.l.b16 %v1575
  %v1779 = vunpack.c.h.b16 %v1575
  %v1780 = vunpack.c.l.b16 %v1576
  %v1781 = vunpack.c.h.b16 %v1576
  %v1782 = vunpack.c.l.b16 %v1577
  %v1783 = vunpack.c.h.b16 %v1577
  %v1784 = vunpack.c.l.b16 %v1578
  %v1785 = vunpack.c.h.b16 %v1578
  %v1786 = vunpack.c.l.b16 %v1579
  %v1787 = vunpack.c.h.b16 %v1579
  %v1788 = vunpack.c.l.b16 %v1580
  %v1789 = vunpack.c.h.b16 %v1580
  %v1790 = vunpack.c.l.b16 %v1581
  %v1791 = vunpack.c.h.b16 %v1581
  %v1792 = vunpack.c.l.b16 %v1582
  %v1793 = vunpack.c.h.b16 %v1582
  %v1794 = vunpack.c.l.b16 %v1583
  %v1795 = vunpack.c.h.b16 %v1583
  %v1796 = vunpack.c.l.b16 %v1584
  %v1797 = vunpack.c.h.b16 %v1584
  %v1798 = vunpack.c.l.b16 %v1585
  %v1799 = vunpack.c.h.b16 %v1585
  %v1800 = vunpack.c.l.b16 %v1586
  %v1801 = vunpack.c.h.b16 %v1586
  %v1802 = vunpack.c.l.b16 %v1587
  %v1803 = vunpack.c.h.b16 %v1587
  %v1804 = vunpack.c.l.b16 %v1588
  %v1805 = vunpack.c.h.b16 %v1588
  %v1806 = vunpack.c.l.b16 %v1589
  %v1807 = vunpack.c.h.b16 %v1589
  %v1808 = vunpack.c.l.b16 %v1590
  %v1809 = vunpack.c.h.b16 %v1590
  %v1810 = vunpack.c.l.b16 %v1591
  %v1811 = vunpack.c.h.b16 %v1591
  %v1812 = vunpack.c.l.b16 %v1592
  %v1813 = vunpack.c.h.b16 %v1592
  %v1814 = vunpack.c.l.b16 %v1593
  %v1815 = vunpack.c.h.b16 %v1593
  %v1816 = vunpack.c.l.b16 %v1594
  %v1817 = vunpack.c.h.b16 %v1594
  %v1818 = vunpack.c.l.b16 %v1595
  %v1819 = vunpack.c.h.b16 %v1595
  %v1820 = vunpack.c.l.b16 %v1596
  %v1821 = vunpack.c.h.b16 %v1596
  %v1822 = vunpack.c.l.b16 %v1597
  %v1823 = vunpack.c.h.b16 %v1597
  %v1824 = vunpack.c.l.b16 %v1598
  %v1825 = vunpack.c.h.b16 %v1598
  %v1826 = vunpack.c.l.b16 %v1599
  %v1827 = vunpack.c.h.b16 %v1599
  %v1828 = vunpack.c.l.b16 %v1600
  %v1829 = vunpack.c.h.b16 %v1600
  %v1830 = vunpack.c.l.b16 %v1601
  %v1831 = vunpack.c.h.b16 %v1601
  %v1832 = vunpack.c.l.b16 %v1602
  %v1833 = vunpack.c.h.b16 %v1602
  %v1834 = vunpack.c.l.b16 %v1603
  %v1835 = vunpack.c.h.b16 %v1603
  %v1836 = vpack.c.b16 %v1694, %v1692
  %v1837 = vpack.c.b16 %v1695, %v1693
  %v1838 = vpack.c.b16 %v1698, %v1696
  %v1839 = vpack.c.b16 %v1699, %v1697
  %v1840 = vpack.c.b16 %v1702, %v1700
  %v1841 = vpack.c.b16 %v1703, %v1701
  %v1842 = vpack.c.b16 %v1706, %v1704
  %v1843 = vpack.c.b16 %v1707, %v1705
  %v1844 = vpack.c.b16 %v1710, %v1708
  %v1845 = vpack.c.b16 %v1711, %v1709
  %v1846 = vpack.c.b16 %v1714, %v1712
  %v1847 = vpack.c.b16 %v1715, %v1713
  %v1848 = vpack.c.b16 %v1718, %v1716
  %v1849 = vpack.c.b16 %v1719, %v1717
  %v1850 = vpack.c.b16 %v1722, %v1720
  %v1851 = vpack.c.b16 %v1723, %v1721
  %v1852 = vpack.c.b16 %v1726, %v1724
  %v1853 = vpack.c.b16 %v1727, %v1725
  %v1854 = vpack.c.b16 %v1730, %v1728
  %v1855 = vpack.c.b16 %v1731, %v1729
  %v1856 = vpack.c.b16 %v1734, %v1732
  %v1857 = vpack.c.b16 %v1735, %v1733
  %v1858 = vpack.c.b16 %v1738, %v1736
  %v1859 = vpack.c.b16 %v1739, %v1737
  %v1860 = vpack.c.b16 %v1742, %v1740
  %v1861 = vpack.c.b16 %v1743, %v1741
  %v1862 = vpack.c.b16 %v1746, %v1744
  %v1863 = vpack.c.b16 %v1747, %v1745
  %v1864 = vpack.c.b16 %v1750, %v1748
  %v1865 = vpack.c.b16 %v1751, %v1749
  %v1866 = vpack.c.b16 %v1754, %v1752
  %v1867 = vpack.c.b16 %v1755, %v1753
  %v1868 = vpack.c.b16 %v1758, %v1756
  %v1869 = vpack.c.b16 %v1759, %v1757
  %v1870 = vpack.c.b16 %v1762, %v1760
  %v1871 = vpack.c.b16 %v1763, %v1761
  %v1872 = vpack.c.b16 %v1766, %v1764
  %v1873 = vpack.c.b16 %v1767, %v1765
  %v1874 = vpack.c.b16 %v1770, %v1768
  %v1875 = vpack.c.b16 %v1771, %v1769
  %v1876 = vpack.c.b16 %v1774, %v1772
  %v1877 = vpack.c.b16 %v1775, %v1773
  %v1878 = vpack.c.b16 %v1778, %v1776
  %v1879 = vpack.c.b16 %v1779, %v1777
  %v1880 = vpack.c.b16 %v1782, %v1780
  %v1881 = vpack.c.b16 %v1783, %v1781
  %v1882 = vpack.c.b16 %v1786, %v1784
  %v1883 = vpack.c.b16 %v1787, %v1785
  %v1884 = vpack.c.b16 %v1790, %v1788
  %v1885 = vpack.c.b16 %v1791, %v1789
  %v1886 = vpack.c.b16 %v1794, %v1792
  %v1887 = vpack.c.b16 %v1795, %v1793
  %v1888 = vpack.c.b16 %v1798, %v1796
  %v1889 = vpack.c.b16 %v1799, %v1797
  %v1890 = vpack.c.b16 %v1802, %v1800
  %v1891 = vpack.c.b16 %v1803, %v1801
  %v1892 = vpack.c.b16 %v1806, %v1804
  %v1893 = vpack.c.b16 %v1807, %v1805
  %v1894 = vpack.c.b16 %v1810, %v1808
  %v1895 = vpack.c.b16 %v1811, %v1809
  %v1896 = vpack.c.b16 %v1814, %v1812
  %v1897 = vpack.c.b16 %v1815, %v1813
  %v1898 = vpack.c.b16 %v1818, %v1816
  %v1899 = vpack.c.b16 %v1819, %v1817
  %v1900 = vpack.c.b16 %v1822, %v1820
  %v1901 = vpack.c.b16 %v1823, %v1821
  %v1902 = vpack.c.b16 %v1826, %v1824
  %v1903 = vpack.c.b16 %v1827, %v1825
  %v1904 = vpack.c.b16 %v1830, %v1828
  %v1905 = vpack.c.b16 %v1831, %v1829
  %v1906 = vpack.c.b16 %v1834, %v1832
  %v1907 = vpack.c.b16 %v1835, %v1833
  %1980 = vmatprep.subr.bf16.mxu0 0
  %1981 = vmatpush1.bf16.msra.mxu0 %v1604
  %1982 = vmatprep.subr.bf16.mxu0 0
  %1983 = vmatpush1.bf16.msra.mxu0 %v1605
  %1984 = vmatprep.subr.bf16.mxu0 0
  %1985 = vmatpush1.bf16.msra.mxu0 %v1606
  %1986 = vmatprep.subr.bf16.mxu0 0
  %1987 = vmatpush1.bf16.msra.mxu0 %v1607
  %1988 = vmatprep.subr.bf16.mxu0 0
  %1989 = vmatpush1.bf16.msra.mxu0 %v1608
  %1990 = vmatprep.subr.bf16.mxu0 0
  %1991 = vmatpush1.bf16.msra.mxu0 %v1609
  %1992 = vmatprep.subr.bf16.mxu0 0
  %1993 = vmatpush1.bf16.msra.mxu0 %v1610
  %1994 = vmatprep.subr.bf16.mxu0 0
  %1995 = vmatpush1.bf16.msra.mxu0 %v1611
  %1996 = vmatprep.subr.bf16.mxu0 0
  %1997 = vmatpush1.bf16.msra.mxu0 %v1612
  %1998 = vmatprep.subr.bf16.mxu0 0
  %1999 = vmatpush1.bf16.msra.mxu0 %v1613
  %2000 = vmatprep.subr.bf16.mxu0 0
  %2001 = vmatpush1.bf16.msra.mxu0 %v1614
  %2002 = vmatprep.subr.bf16.mxu0 0
  %2003 = vmatpush1.bf16.msra.mxu0 %v1615
  %2004 = vmatprep.subr.bf16.mxu0 0
  %2005 = vmatpush1.bf16.msra.mxu0 %v1616
  %2006 = vmatprep.subr.bf16.mxu0 0
  %2007 = vmatpush1.bf16.msra.mxu0 %v1617
  %2008 = vmatprep.subr.bf16.mxu0 0
  %2009 = vmatpush1.bf16.msra.mxu0 %v1618
  %2010 = vmatprep.subr.bf16.mxu0 0
  %2011 = vmatpush1.bf16.msra.mxu0 %v1619
  %2012 = vmatprep.mubr.bf16.mxu0 %v1837
  %2013 = vmatmul.mubr.bf16.gmra.mrb[0].mxu0 %v1836
  %v2014 = vpop.f32.mrb[0].mxu0
  %v2015 = vadd.f32 0.0, %v2014
  %v2016 = vpop.f32.mrb[0].mxu0
  %v2017 = vpop.f32.mrb[0].mxu0
  %v2018 = vadd.f32 0.0, %v2017
  %v2019 = vpop.f32.mrb[0].mxu0
  %2020 = vmatprep.mubr.bf16.mxu0 %v1839
  %2021 = vmatmul.mubr.bf16.gmra.mrb[0].mxu0 %v1838
  %v2022 = vpop.f32.mrb[0].mxu0
  %v2023 = vadd.f32 0.0, %v2022
  %v2024 = vpop.f32.mrb[0].mxu0
  %v2025 = vpop.f32.mrb[0].mxu0
  %v2026 = vadd.f32 0.0, %v2025
  %v2027 = vpop.f32.mrb[0].mxu0
  %2028 = vmatprep.mubr.bf16.mxu0 %v1841
  %2029 = vmatmul.mubr.bf16.gmra.mrb[0].mxu0 %v1840
  %v2030 = vpop.f32.mrb[0].mxu0
  %v2031 = vadd.f32 0.0, %v2030
  %v2032 = vpop.f32.mrb[0].mxu0
  %v2033 = vpop.f32.mrb[0].mxu0
  %v2034 = vadd.f32 0.0, %v2033
  %v2035 = vpop.f32.mrb[0].mxu0
  %2036 = vmatprep.mubr.bf16.mxu0 %v1843
  %2037 = vmatmul.mubr.bf16.gmra.mrb[0].mxu0 %v1842
  %v2038 = vpop.f32.mrb[0].mxu0
  %v2039 = vadd.f32 0.0, %v2038
  %v2040 = vpop.f32.mrb[0].mxu0
  %v2041 = vpop.f32.mrb[0].mxu0
  %v2042 = vadd.f32 0.0, %v2041
  %v2043 = vpop.f32.mrb[0].mxu0
  %2044 = vmatprep.mubr.bf16.mxu0 %v1845
  %2045 = vmatmul.mubr.bf16.gmra.mrb[0].mxu0 %v1844
  %v2046 = vpop.f32.mrb[0].mxu0
  %v2047 = vadd.f32 0.0, %v2046
  %v2048 = vpop.f32.mrb[0].mxu0
  %v2049 = vpop.f32.mrb[0].mxu0
  %v2050 = vadd.f32 0.0, %v2049
  %v2051 = vpop.f32.mrb[0].mxu0
  %2052 = vmatprep.mubr.bf16.mxu0 %v1847
  %2053 = vmatmul.mubr.bf16.gmra.mrb[0].mxu0 %v1846
  %v2054 = vpop.f32.mrb[0].mxu0
  %v2055 = vadd.f32 0.0, %v2054
  %v2056 = vpop.f32.mrb[0].mxu0
  %v2057 = vpop.f32.mrb[0].mxu0
  %v2058 = vadd.f32 0.0, %v2057
  %v2059 = vpop.f32.mrb[0].mxu0
  %2060 = vmatprep.mubr.bf16.mxu0 %v1849
  %2061 = vmatmul.mubr.bf16.gmra.mrb[0].mxu0 %v1848
  %v2062 = vpop.f32.mrb[0].mxu0
  %v2063 = vadd.f32 0.0, %v2062
  %v2064 = vpop.f32.mrb[0].mxu0
  %v2065 = vpop.f32.mrb[0].mxu0
  %v2066 = vadd.f32 0.0, %v2065
  %v2067 = vpop.f32.mrb[0].mxu0
  %2068 = vmatprep.mubr.bf16.mxu0 %v1851
  %2069 = vmatmul.mubr.bf16.gmra.mrb[0].mxu0 %v1850
  %v2070 = vpop.f32.mrb[0].mxu0
  %v2071 = vadd.f32 0.0, %v2070
  %v2072 = vpop.f32.mrb[0].mxu0
  %v2073 = vpop.f32.mrb[0].mxu0
  %v2074 = vadd.f32 0.0, %v2073
  %v2075 = vpop.f32.mrb[0].mxu0
  %2076 = vmatprep.mubr.bf16.mxu0 %v1853
  %2077 = vmatmul.mubr.bf16.gmra.mrb[0].mxu0 %v1852
  %v2078 = vpop.f32.mrb[0].mxu0
  %v2079 = vadd.f32 0.0, %v2078
  %v2080 = vpop.f32.mrb[0].mxu0
  %v2081 = vpop.f32.mrb[0].mxu0
  %v2082 = vadd.f32 0.0, %v2081
  %v2083 = vpop.f32.mrb[0].mxu0
  %2084 = vmatprep.mubr.bf16.mxu0 %v1855
  %2085 = vmatmul.mubr.bf16.gmra.mrb[0].mxu0 %v1854
  %v2086 = vpop.f32.mrb[0].mxu0
  %v2087 = vadd.f32 0.0, %v2086
  %v2088 = vpop.f32.mrb[0].mxu0
  %v2089 = vpop.f32.mrb[0].mxu0
  %v2090 = vadd.f32 0.0, %v2089
  %v2091 = vpop.f32.mrb[0].mxu0
  %2092 = vmatprep.mubr.bf16.mxu0 %v1857
  %2093 = vmatmul.mubr.bf16.gmra.mrb[0].mxu0 %v1856
  %v2094 = vpop.f32.mrb[0].mxu0
  %v2095 = vadd.f32 0.0, %v2094
  %v2096 = vpop.f32.mrb[0].mxu0
  %v2097 = vpop.f32.mrb[0].mxu0
  %v2098 = vadd.f32 0.0, %v2097
  %v2099 = vpop.f32.mrb[0].mxu0
  %2100 = vmatprep.mubr.bf16.mxu0 %v1859
  %2101 = vmatmul.mubr.bf16.gmra.mrb[0].mxu0 %v1858
  %v2102 = vpop.f32.mrb[0].mxu0
  %v2103 = vadd.f32 0.0, %v2102
  %v2104 = vpop.f32.mrb[0].mxu0
  %v2105 = vpop.f32.mrb[0].mxu0
  %v2106 = vadd.f32 0.0, %v2105
  %v2107 = vpop.f32.mrb[0].mxu0
  %2108 = vmatprep.mubr.bf16.mxu0 %v1861
  %2109 = vmatmul.mubr.bf16.gmra.mrb[0].mxu0 %v1860
  %v2110 = vpop.f32.mrb[0].mxu0
  %v2111 = vadd.f32 0.0, %v2110
  %v2112 = vpop.f32.mrb[0].mxu0
  %v2113 = vpop.f32.mrb[0].mxu0
  %v2114 = vadd.f32 0.0, %v2113
  %v2115 = vpop.f32.mrb[0].mxu0
  %2116 = vmatprep.mubr.bf16.mxu0 %v1863
  %2117 = vmatmul.mubr.bf16.gmra.mrb[0].mxu0 %v1862
  %v2118 = vpop.f32.mrb[0].mxu0
  %v2119 = vadd.f32 0.0, %v2118
  %v2120 = vpop.f32.mrb[0].mxu0
  %v2121 = vpop.f32.mrb[0].mxu0
  %v2122 = vadd.f32 0.0, %v2121
  %v2123 = vpop.f32.mrb[0].mxu0
  %2124 = vmatprep.mubr.bf16.mxu0 %v1865
  %2125 = vmatmul.mubr.bf16.gmra.mrb[0].mxu0 %v1864
  %v2126 = vpop.f32.mrb[0].mxu0
  %v2127 = vadd.f32 0.0, %v2126
  %v2128 = vpop.f32.mrb[0].mxu0
  %v2129 = vpop.f32.mrb[0].mxu0
  %v2130 = vadd.f32 0.0, %v2129
  %v2131 = vpop.f32.mrb[0].mxu0
  %2132 = vmatprep.mubr.bf16.mxu0 %v1867
  %2133 = vmatmul.mubr.bf16.gmra.mrb[0].mxu0 %v1866
  %v2134 = vpop.f32.mrb[0].mxu0
  %v2135 = vadd.f32 0.0, %v2134
  %v2136 = vpop.f32.mrb[0].mxu0
  %v2137 = vpop.f32.mrb[0].mxu0
  %v2138 = vadd.f32 0.0, %v2137
  %v2139 = vpop.f32.mrb[0].mxu0
  %2140 = vmatprep.mubr.bf16.mxu0 %v1869
  %2141 = vmatmul.mubr.bf16.gmra.mrb[0].mxu0 %v1868
  %v2142 = vpop.f32.mrb[0].mxu0
  %v2143 = vadd.f32 0.0, %v2142
  %v2144 = vpop.f32.mrb[0].mxu0
  %v2145 = vpop.f32.mrb[0].mxu0
  %v2146 = vadd.f32 0.0, %v2145
  %v2147 = vpop.f32.mrb[0].mxu0
  %2148 = vmatprep.mubr.bf16.mxu0 %v1871
  %2149 = vmatmul.mubr.bf16.gmra.mrb[0].mxu0 %v1870
  %v2150 = vpop.f32.mrb[0].mxu0
  %v2151 = vadd.f32 0.0, %v2150
  %v2152 = vpop.f32.mrb[0].mxu0
  %v2153 = vpop.f32.mrb[0].mxu0
  %v2154 = vadd.f32 0.0, %v2153
  %v2155 = vpop.f32.mrb[0].mxu0
  %2156 = vmatprep.mubr.bf16.mxu0 %v1873
  %2157 = vmatmul.mubr.bf16.gmra.mrb[0].mxu0 %v1872
  %v2158 = vpop.f32.mrb[0].mxu0
  %v2159 = vadd.f32 0.0, %v2158
  %v2160 = vpop.f32.mrb[0].mxu0
  %v2161 = vpop.f32.mrb[0].mxu0
  %v2162 = vadd.f32 0.0, %v2161
  %v2163 = vpop.f32.mrb[0].mxu0
  %2164 = vmatprep.mubr.bf16.mxu0 %v1875
  %2165 = vmatmul.mubr.bf16.gmra.mrb[0].mxu0 %v1874
  %v2166 = vpop.f32.mrb[0].mxu0
  %v2167 = vadd.f32 0.0, %v2166
  %v2168 = vpop.f32.mrb[0].mxu0
  %v2169 = vpop.f32.mrb[0].mxu0
  %v2170 = vadd.f32 0.0, %v2169
  %v2171 = vpop.f32.mrb[0].mxu0
  %2172 = vmatprep.mubr.bf16.mxu0 %v1877
  %2173 = vmatmul.mubr.bf16.gmra.mrb[0].mxu0 %v1876
  %v2174 = vpop.f32.mrb[0].mxu0
  %v2175 = vadd.f32 0.0, %v2174
  %v2176 = vpop.f32.mrb[0].mxu0
  %v2177 = vpop.f32.mrb[0].mxu0
  %v2178 = vadd.f32 0.0, %v2177
  %v2179 = vpop.f32.mrb[0].mxu0
  %2180 = vmatprep.mubr.bf16.mxu0 %v1879
  %2181 = vmatmul.mubr.bf16.gmra.mrb[0].mxu0 %v1878
  %v2182 = vpop.f32.mrb[0].mxu0
  %v2183 = vadd.f32 0.0, %v2182
  %v2184 = vpop.f32.mrb[0].mxu0
  %v2185 = vpop.f32.mrb[0].mxu0
  %v2186 = vadd.f32 0.0, %v2185
  %v2187 = vpop.f32.mrb[0].mxu0
  %2188 = vmatprep.mubr.bf16.mxu0 %v1881
  %2189 = vmatmul.mubr.bf16.gmra.mrb[0].mxu0 %v1880
  %v2190 = vpop.f32.mrb[0].mxu0
  %v2191 = vadd.f32 0.0, %v2190
  %v2192 = vpop.f32.mrb[0].mxu0
  %v2193 = vpop.f32.mrb[0].mxu0
  %v2194 = vadd.f32 0.0, %v2193
  %v2195 = vpop.f32.mrb[0].mxu0
  %2196 = vmatprep.mubr.bf16.mxu0 %v1883
  %2197 = vmatmul.mubr.bf16.gmra.mrb[0].mxu0 %v1882
  %v2198 = vpop.f32.mrb[0].mxu0
  %v2199 = vadd.f32 0.0, %v2198
  %v2200 = vpop.f32.mrb[0].mxu0
  %v2201 = vpop.f32.mrb[0].mxu0
  %v2202 = vadd.f32 0.0, %v2201
  %v2203 = vpop.f32.mrb[0].mxu0
  %2204 = vmatprep.mubr.bf16.mxu0 %v1885
  %2205 = vmatmul.mubr.bf16.gmra.mrb[0].mxu0 %v1884
  %v2206 = vpop.f32.mrb[0].mxu0
  %v2207 = vadd.f32 0.0, %v2206
  %v2208 = vpop.f32.mrb[0].mxu0
  %v2209 = vpop.f32.mrb[0].mxu0
  %v2210 = vadd.f32 0.0, %v2209
  %v2211 = vpop.f32.mrb[0].mxu0
  %2212 = vmatprep.mubr.bf16.mxu0 %v1887
  %2213 = vmatmul.mubr.bf16.gmra.mrb[0].mxu0 %v1886
  %v2214 = vpop.f32.mrb[0].mxu0
  %v2215 = vadd.f32 0.0, %v2214
  %v2216 = vpop.f32.mrb[0].mxu0
  %v2217 = vpop.f32.mrb[0].mxu0
  %v2218 = vadd.f32 0.0, %v2217
  %v2219 = vpop.f32.mrb[0].mxu0
  %2220 = vmatprep.mubr.bf16.mxu0 %v1889
  %2221 = vmatmul.mubr.bf16.gmra.mrb[0].mxu0 %v1888
  %v2222 = vpop.f32.mrb[0].mxu0
  %v2223 = vadd.f32 0.0, %v2222
  %v2224 = vpop.f32.mrb[0].mxu0
  %v2225 = vpop.f32.mrb[0].mxu0
  %v2226 = vadd.f32 0.0, %v2225
  %v2227 = vpop.f32.mrb[0].mxu0
  %2228 = vmatprep.mubr.bf16.mxu0 %v1891
  %2229 = vmatmul.mubr.bf16.gmra.mrb[0].mxu0 %v1890
  %v2230 = vpop.f32.mrb[0].mxu0
  %v2231 = vadd.f32 0.0, %v2230
  %v2232 = vpop.f32.mrb[0].mxu0
  %v2233 = vpop.f32.mrb[0].mxu0
  %v2234 = vadd.f32 0.0, %v2233
  %v2235 = vpop.f32.mrb[0].mxu0
  %2236 = vmatprep.mubr.bf16.mxu0 %v1893
  %2237 = vmatmul.mubr.bf16.gmra.mrb[0].mxu0 %v1892
  %v2238 = vpop.f32.mrb[0].mxu0
  %v2239 = vadd.f32 0.0, %v2238
  %v2240 = vpop.f32.mrb[0].mxu0
  %v2241 = vpop.f32.mrb[0].mxu0
  %v2242 = vadd.f32 0.0, %v2241
  %v2243 = vpop.f32.mrb[0].mxu0
  %2244 = vmatprep.mubr.bf16.mxu0 %v1895
  %2245 = vmatmul.mubr.bf16.gmra.mrb[0].mxu0 %v1894
  %v2246 = vpop.f32.mrb[0].mxu0
  %v2247 = vadd.f32 0.0, %v2246
  %v2248 = vpop.f32.mrb[0].mxu0
  %v2249 = vpop.f32.mrb[0].mxu0
  %v2250 = vadd.f32 0.0, %v2249
  %v2251 = vpop.f32.mrb[0].mxu0
  %2252 = vmatprep.mubr.bf16.mxu0 %v1897
  %2253 = vmatmul.mubr.bf16.gmra.mrb[0].mxu0 %v1896
  %v2254 = vpop.f32.mrb[0].mxu0
  %v2255 = vadd.f32 0.0, %v2254
  %v2256 = vpop.f32.mrb[0].mxu0
  %v2257 = vpop.f32.mrb[0].mxu0
  %v2258 = vadd.f32 0.0, %v2257
  %v2259 = vpop.f32.mrb[0].mxu0
  %2260 = vmatprep.mubr.bf16.mxu0 %v1899
  %2261 = vmatmul.mubr.bf16.gmra.mrb[0].mxu0 %v1898
  %v2262 = vpop.f32.mrb[0].mxu0
  %v2263 = vadd.f32 0.0, %v2262
  %v2264 = vpop.f32.mrb[0].mxu0
  %v2265 = vpop.f32.mrb[0].mxu0
  %v2266 = vadd.f32 0.0, %v2265
  %v2267 = vpop.f32.mrb[0].mxu0
  %2268 = vmatprep.mubr.bf16.mxu0 %v1901
  %2269 = vmatmul.mubr.bf16.gmra.mrb[0].mxu0 %v1900
  %v2270 = vpop.f32.mrb[0].mxu0
  %v2271 = vadd.f32 0.0, %v2270
  %v2272 = vpop.f32.mrb[0].mxu0
  %v2273 = vpop.f32.mrb[0].mxu0
  %v2274 = vadd.f32 0.0, %v2273
  %v2275 = vpop.f32.mrb[0].mxu0
  %2276 = vmatprep.mubr.bf16.mxu0 %v1903
  %2277 = vmatmul.mubr.bf16.gmra.mrb[0].mxu0 %v1902
  %v2278 = vpop.f32.mrb[0].mxu0
  %v2279 = vadd.f32 0.0, %v2278
  %v2280 = vpop.f32.mrb[0].mxu0
  %v2281 = vpop.f32.mrb[0].mxu0
  %v2282 = vadd.f32 0.0, %v2281
  %v2283 = vpop.f32.mrb[0].mxu0
  %2284 = vmatprep.mubr.bf16.mxu0 %v1905
  %2285 = vmatmul.mubr.bf16.gmra.mrb[0].mxu0 %v1904
  %v2286 = vpop.f32.mrb[0].mxu0
  %v2287 = vadd.f32 0.0, %v2286
  %v2288 = vpop.f32.mrb[0].mxu0
  %v2289 = vpop.f32.mrb[0].mxu0
  %v2290 = vadd.f32 0.0, %v2289
  %v2291 = vpop.f32.mrb[0].mxu0
  %2292 = vmatprep.mubr.bf16.mxu0 %v1907
  %2293 = vmatmul.mubr.bf16.gmra.mrb[0].mxu0 %v1906
  %v2294 = vpop.f32.mrb[0].mxu0
  %v2295 = vadd.f32 0.0, %v2294
  %v2296 = vpop.f32.mrb[0].mxu0
  %v2297 = vpop.f32.mrb[0].mxu0
  %v2298 = vadd.f32 0.0, %v2297
  %v2299 = vpop.f32.mrb[0].mxu0
  %2300 = vdwg.mxu0
  %s2301 = smul.u32 4, 144
  %s2302 = smul.u32 %s2301, 1
  %s2303 = sshll.u32 %s2302, 4
  %2304 = dma.done [#allocation6], %s2303
  %v2305 = vpack.c.bf16 %v2018, %v2015
  %v2306 = vpack.c.bf16 %v2050, %v2047
  %v2307 = vpack.c.bf16 %v2082, %v2079
  %v2308 = vpack.c.bf16 %v2114, %v2111
  %v2309 = vpack.c.bf16 %v2146, %v2143
  %v2310 = vpack.c.bf16 %v2178, %v2175
  %v2311 = vpack.c.bf16 %v2210, %v2207
  %v2312 = vpack.c.bf16 %v2242, %v2239
  %v2313 = vpack.c.bf16 %v2274, %v2271
  %v2314 = vpack.c.bf16 %v2026, %v2023
  %v2315 = vpack.c.bf16 %v2058, %v2055
  %v2316 = vpack.c.bf16 %v2090, %v2087
  %v2317 = vpack.c.bf16 %v2122, %v2119
  %v2318 = vpack.c.bf16 %v2154, %v2151
  %v2319 = vpack.c.bf16 %v2186, %v2183
  %v2320 = vpack.c.bf16 %v2218, %v2215
  %v2321 = vpack.c.bf16 %v2250, %v2247
  %v2322 = vpack.c.bf16 %v2282, %v2279
  %v2323 = vpack.c.bf16 %v2034, %v2031
  %v2324 = vpack.c.bf16 %v2066, %v2063
  %v2325 = vpack.c.bf16 %v2098, %v2095
  %v2326 = vpack.c.bf16 %v2130, %v2127
  %v2327 = vpack.c.bf16 %v2162, %v2159
  %v2328 = vpack.c.bf16 %v2194, %v2191
  %v2329 = vpack.c.bf16 %v2226, %v2223
  %v2330 = vpack.c.bf16 %v2258, %v2255
  %v2331 = vpack.c.bf16 %v2290, %v2287
  %v2332 = vpack.c.bf16 %v2042, %v2039
  %v2333 = vpack.c.bf16 %v2074, %v2071
  %v2334 = vpack.c.bf16 %v2106, %v2103
  %v2335 = vpack.c.bf16 %v2138, %v2135
  %v2336 = vpack.c.bf16 %v2170, %v2167
  %v2337 = vpack.c.bf16 %v2202, %v2199
  %v2338 = vpack.c.bf16 %v2234, %v2231
  %v2339 = vpack.c.bf16 %v2266, %v2263
  %v2340 = vpack.c.bf16 %v2298, %v2295
  %v2341 = vld [vmem:[#allocation2] sm:$0xff]
  %v2342 = vld [vmem:[#allocation2 + $0x8] sm:$0xff]
  %v2343 = vld [vmem:[#allocation2 + $0x10] sm:$0xff]
  %v2344 = vld [vmem:[#allocation2 + $0x18] sm:$0xff]
  %v2345 = vld [vmem:[#allocation2 + $0x20] sm:$0xff]
  %v2346 = vld [vmem:[#allocation2 + $0x28] sm:$0xff]
  %v2347 = vld [vmem:[#allocation2 + $0x30] sm:$0xff]
  %v2348 = vld [vmem:[#allocation2 + $0x38] sm:$0xff]
  %v2349 = vld [vmem:[#allocation2 + $0x40] sm:$0xff]
  %v2350 = vld [vmem:[#allocation2 + $0x48] sm:$0xff]
  %v2351 = vld [vmem:[#allocation2 + $0x50] sm:$0xff]
  %v2352 = vld [vmem:[#allocation2 + $0x58] sm:$0xff]
  %v2353 = vld [vmem:[#allocation2 + $0x60] sm:$0xff]
  %v2354 = vld [vmem:[#allocation2 + $0x68] sm:$0xff]
  %v2355 = vld [vmem:[#allocation2 + $0x70] sm:$0xff]
  %v2356 = vld [vmem:[#allocation2 + $0x78] sm:$0xff]
  %v2357 = vld [vmem:[#allocation2 + $0x80] sm:$0xff]
  %v2358 = vld [vmem:[#allocation2 + $0x88] sm:$0xff]
  %v2359 = vld [vmem:[#allocation2 + $0x90] sm:$0xff]
  %v2360 = vld [vmem:[#allocation2 + $0x98] sm:$0xff]
  %v2361 = vld [vmem:[#allocation2 + $0xa0] sm:$0xff]
  %v2362 = vld [vmem:[#allocation2 + $0xa8] sm:$0xff]
  %v2363 = vld [vmem:[#allocation2 + $0xb0] sm:$0xff]
  %v2364 = vld [vmem:[#allocation2 + $0xb8] sm:$0xff]
  %v2365 = vld [vmem:[#allocation2 + $0xc0] sm:$0xff]
  %v2366 = vld [vmem:[#allocation2 + $0xc8] sm:$0xff]
  %v2367 = vld [vmem:[#allocation2 + $0xd0] sm:$0xff]
  %v2368 = vld [vmem:[#allocation2 + $0xd8] sm:$0xff]
  %v2369 = vld [vmem:[#allocation2 + $0xe0] sm:$0xff]
  %v2370 = vld [vmem:[#allocation2 + $0xe8] sm:$0xff]
  %v2371 = vld [vmem:[#allocation2 + $0xf0] sm:$0xff]
  %v2372 = vld [vmem:[#allocation2 + $0xf8] sm:$0xff]
  %v2373 = vld [vmem:[#allocation2 + $0x100] sm:$0xff]
  %v2374 = vld [vmem:[#allocation2 + $0x108] sm:$0xff]
  %v2375 = vld [vmem:[#allocation2 + $0x110] sm:$0xff]
  %v2376 = vld [vmem:[#allocation2 + $0x118] sm:$0xff]
  %v2377 = vld [vmem:[#allocation2 + $0x120] sm:$0xff]
  %v2378 = vld [vmem:[#allocation2 + $0x128] sm:$0xff]
  %v2379 = vld [vmem:[#allocation2 + $0x130] sm:$0xff]
  %v2380 = vld [vmem:[#allocation2 + $0x138] sm:$0xff]
  %v2381 = vld [vmem:[#allocation2 + $0x140] sm:$0xff]
  %v2382 = vld [vmem:[#allocation2 + $0x148] sm:$0xff]
  %v2383 = vld [vmem:[#allocation2 + $0x150] sm:$0xff]
  %v2384 = vld [vmem:[#allocation2 + $0x158] sm:$0xff]
  %v2385 = vld [vmem:[#allocation2 + $0x160] sm:$0xff]
  %v2386 = vld [vmem:[#allocation2 + $0x168] sm:$0xff]
  %v2387 = vld [vmem:[#allocation2 + $0x170] sm:$0xff]
  %v2388 = vld [vmem:[#allocation2 + $0x178] sm:$0xff]
  %v2389 = vld [vmem:[#allocation2 + $0x180] sm:$0xff]
  %v2390 = vld [vmem:[#allocation2 + $0x188] sm:$0xff]
  %v2391 = vld [vmem:[#allocation2 + $0x190] sm:$0xff]
  %v2392 = vld [vmem:[#allocation2 + $0x198] sm:$0xff]
  %v2393 = vld [vmem:[#allocation2 + $0x1a0] sm:$0xff]
  %v2394 = vld [vmem:[#allocation2 + $0x1a8] sm:$0xff]
  %v2395 = vld [vmem:[#allocation2 + $0x1b0] sm:$0xff]
  %v2396 = vld [vmem:[#allocation2 + $0x1b8] sm:$0xff]
  %v2397 = vld [vmem:[#allocation2 + $0x1c0] sm:$0xff]
  %v2398 = vld [vmem:[#allocation2 + $0x1c8] sm:$0xff]
  %v2399 = vld [vmem:[#allocation2 + $0x1d0] sm:$0xff]
  %v2400 = vld [vmem:[#allocation2 + $0x1d8] sm:$0xff]
  %v2401 = vld [vmem:[#allocation2 + $0x1e0] sm:$0xff]
  %v2402 = vld [vmem:[#allocation2 + $0x1e8] sm:$0xff]
  %v2403 = vld [vmem:[#allocation2 + $0x1f0] sm:$0xff]
  %v2404 = vld [vmem:[#allocation2 + $0x1f8] sm:$0xff]
  %v2405 = vld [vmem:[#allocation2 + $0x200] sm:$0xff]
  %v2406 = vld [vmem:[#allocation2 + $0x208] sm:$0xff]
  %v2407 = vld [vmem:[#allocation2 + $0x210] sm:$0xff]
  %v2408 = vld [vmem:[#allocation2 + $0x218] sm:$0xff]
  %v2409 = vld [vmem:[#allocation2 + $0x220] sm:$0xff]
  %v2410 = vld [vmem:[#allocation2 + $0x228] sm:$0xff]
  %v2411 = vld [vmem:[#allocation2 + $0x230] sm:$0xff]
  %v2412 = vld [vmem:[#allocation2 + $0x238] sm:$0xff]
  %v2413 = vld [vmem:[%s4] sm:$0x1]
  %v2415 = vlaneseq
  %v2416 = vshrl.u32 %v2415, 7
  %v2417 = vsub.s32 0, %v2416
  %v2418 = vrot.slane %v2413, %v2417
  %2420 = vmatprep.subr.bf16.mxu0 0
  %2421 = vmatpush1.bf16.msra.mxu0 %v2341
  %2422 = vmatprep.subr.bf16.mxu0 0
  %2423 = vmatpush1.bf16.msra.mxu0 %v2342
  %2424 = vmatprep.subr.bf16.mxu0 0
  %2425 = vmatpush1.bf16.msra.mxu0 %v2343
  %2426 = vmatprep.subr.bf16.mxu0 0
  %2427 = vmatpush1.bf16.msra.mxu0 %v2344
  %2428 = vmatprep.subr.bf16.mxu0 0
  %2429 = vmatpush1.bf16.msra.mxu0 %v2345
  %2430 = vmatprep.subr.bf16.mxu0 0
  %2431 = vmatpush1.bf16.msra.mxu0 %v2346
  %2432 = vmatprep.subr.bf16.mxu0 0
  %2433 = vmatpush1.bf16.msra.mxu0 %v2347
  %2434 = vmatprep.subr.bf16.mxu0 0
  %2435 = vmatpush1.bf16.msra.mxu0 %v2348
  %2436 = vmatprep.subr.bf16.mxu0 0
  %2437 = vmatpush1.bf16.msra.mxu0 %v2349
  %2438 = vmatprep.subr.bf16.mxu0 0
  %2439 = vmatpush1.bf16.msra.mxu0 %v2350
  %2440 = vmatprep.subr.bf16.mxu0 0
  %2441 = vmatpush1.bf16.msra.mxu0 %v2351
  %2442 = vmatprep.subr.bf16.mxu0 0
  %2443 = vmatpush1.bf16.msra.mxu0 %v2352
  %2444 = vmatprep.subr.bf16.mxu0 0
  %2445 = vmatpush1.bf16.msra.mxu0 %v2353
  %2446 = vmatprep.subr.bf16.mxu0 0
  %2447 = vmatpush1.bf16.msra.mxu0 %v2354
  %2448 = vmatprep.subr.bf16.mxu0 0
  %2449 = vmatpush1.bf16.msra.mxu0 %v2355
  %2450 = vmatprep.subr.bf16.mxu0 0
  %2451 = vmatpush1.bf16.msra.mxu0 %v2356
  %2452 = vmatprep.mubr.bf16.mxu0 %v2306
  %2453 = vmatmul.mubr.bf16.gmra.mrb[0].mxu0 %v2305
  %v2454 = vpop.f32.mrb[0].mxu0
  %v2455 = vadd.f32 %v2418, %v2454
  %v2456 = vpop.f32.mrb[0].mxu0
  %v2457 = vpop.f32.mrb[0].mxu0
  %v2458 = vadd.f32 %v2418, %v2457
  %v2459 = vpop.f32.mrb[0].mxu0
  %2460 = vmatprep.mubr.bf16.mxu0 %v2315
  %2461 = vmatmul.mubr.bf16.gmra.mrb[0].mxu0 %v2314
  %v2462 = vpop.f32.mrb[0].mxu0
  %v2463 = vadd.f32 %v2418, %v2462
  %v2464 = vpop.f32.mrb[0].mxu0
  %v2465 = vpop.f32.mrb[0].mxu0
  %v2466 = vadd.f32 %v2418, %v2465
  %v2467 = vpop.f32.mrb[0].mxu0
  %2468 = vmatprep.mubr.bf16.mxu0 %v2324
  %2469 = vmatmul.mubr.bf16.gmra.mrb[0].mxu0 %v2323
  %v2470 = vpop.f32.mrb[0].mxu0
  %v2471 = vadd.f32 %v2418, %v2470
  %v2472 = vpop.f32.mrb[0].mxu0
  %v2473 = vpop.f32.mrb[0].mxu0
  %v2474 = vadd.f32 %v2418, %v2473
  %v2475 = vpop.f32.mrb[0].mxu0
  %2476 = vmatprep.mubr.bf16.mxu0 %v2333
  %2477 = vmatmul.mubr.bf16.gmra.mrb[0].mxu0 %v2332
  %v2478 = vpop.f32.mrb[0].mxu0
  %v2479 = vadd.f32 %v2418, %v2478
  %v2480 = vpop.f32.mrb[0].mxu0
  %v2481 = vpop.f32.mrb[0].mxu0
  %v2482 = vadd.f32 %v2418, %v2481
  %v2483 = vpop.f32.mrb[0].mxu0
  %2484 = vdwg.mxu0
  %2485 = vmatprep.subr.bf16.mxu0 0
  %2486 = vmatpush1.bf16.msra.mxu0 %v2357
  %2487 = vmatprep.subr.bf16.mxu0 0
  %2488 = vmatpush1.bf16.msra.mxu0 %v2358
  %2489 = vmatprep.subr.bf16.mxu0 0
  %2490 = vmatpush1.bf16.msra.mxu0 %v2359
  %2491 = vmatprep.subr.bf16.mxu0 0
  %2492 = vmatpush1.bf16.msra.mxu0 %v2360
  %2493 = vmatprep.subr.bf16.mxu0 0
  %2494 = vmatpush1.bf16.msra.mxu0 %v2361
  %2495 = vmatprep.subr.bf16.mxu0 0
  %2496 = vmatpush1.bf16.msra.mxu0 %v2362
  %2497 = vmatprep.subr.bf16.mxu0 0
  %2498 = vmatpush1.bf16.msra.mxu0 %v2363
  %2499 = vmatprep.subr.bf16.mxu0 0
  %2500 = vmatpush1.bf16.msra.mxu0 %v2364
  %2501 = vmatprep.subr.bf16.mxu0 0
  %2502 = vmatpush1.bf16.msra.mxu0 %v2365
  %2503 = vmatprep.subr.bf16.mxu0 0
  %2504 = vmatpush1.bf16.msra.mxu0 %v2366
  %2505 = vmatprep.subr.bf16.mxu0 0
  %2506 = vmatpush1.bf16.msra.mxu0 %v2367
  %2507 = vmatprep.subr.bf16.mxu0 0
  %2508 = vmatpush1.bf16.msra.mxu0 %v2368
  %2509 = vmatprep.subr.bf16.mxu0 0
  %2510 = vmatpush1.bf16.msra.mxu0 %v2369
  %2511 = vmatprep.subr.bf16.mxu0 0
  %2512 = vmatpush1.bf16.msra.mxu0 %v2370
  %2513 = vmatprep.subr.bf16.mxu0 0
  %2514 = vmatpush1.bf16.msra.mxu0 %v2371
  %2515 = vmatprep.subr.bf16.mxu0 0
  %2516 = vmatpush1.bf16.msra.mxu0 %v2372
  %2517 = vmatprep.mubr.bf16.mxu0 %v2308
  %2518 = vmatmul.mubr.bf16.gmra.mrb[0].mxu0 %v2307
  %v2519 = vpop.f32.mrb[0].mxu0
  %v2520 = vadd.f32 %v2455, %v2519
  %v2521 = vpop.f32.mrb[0].mxu0
  %v2522 = vpop.f32.mrb[0].mxu0
  %v2523 = vadd.f32 %v2458, %v2522
  %v2524 = vpop.f32.mrb[0].mxu0
  %2525 = vmatprep.mubr.bf16.mxu0 %v2317
  %2526 = vmatmul.mubr.bf16.gmra.mrb[0].mxu0 %v2316
  %v2527 = vpop.f32.mrb[0].mxu0
  %v2528 = vadd.f32 %v2463, %v2527
  %v2529 = vpop.f32.mrb[0].mxu0
  %v2530 = vpop.f32.mrb[0].mxu0
  %v2531 = vadd.f32 %v2466, %v2530
  %v2532 = vpop.f32.mrb[0].mxu0
  %2533 = vmatprep.mubr.bf16.mxu0 %v2326
  %2534 = vmatmul.mubr.bf16.gmra.mrb[0].mxu0 %v2325
  %v2535 = vpop.f32.mrb[0].mxu0
  %v2536 = vadd.f32 %v2471, %v2535
  %v2537 = vpop.f32.mrb[0].mxu0
  %v2538 = vpop.f32.mrb[0].mxu0
  %v2539 = vadd.f32 %v2474, %v2538
  %v2540 = vpop.f32.mrb[0].mxu0
  %2541 = vmatprep.mubr.bf16.mxu0 %v2335
  %2542 = vmatmul.mubr.bf16.gmra.mrb[0].mxu0 %v2334
  %v2543 = vpop.f32.mrb[0].mxu0
  %v2544 = vadd.f32 %v2479, %v2543
  %v2545 = vpop.f32.mrb[0].mxu0
  %v2546 = vpop.f32.mrb[0].mxu0
  %v2547 = vadd.f32 %v2482, %v2546
  %v2548 = vpop.f32.mrb[0].mxu0
  %2549 = vdwg.mxu0
  %2550 = vmatprep.subr.bf16.mxu0 0
  %2551 = vmatpush1.bf16.msra.mxu0 %v2373
  %2552 = vmatprep.subr.bf16.mxu0 0
  %2553 = vmatpush1.bf16.msra.mxu0 %v2374
  %2554 = vmatprep.subr.bf16.mxu0 0
  %2555 = vmatpush1.bf16.msra.mxu0 %v2375
  %2556 = vmatprep.subr.bf16.mxu0 0
  %2557 = vmatpush1.bf16.msra.mxu0 %v2376
  %2558 = vmatprep.subr.bf16.mxu0 0
  %2559 = vmatpush1.bf16.msra.mxu0 %v2377
  %2560 = vmatprep.subr.bf16.mxu0 0
  %2561 = vmatpush1.bf16.msra.mxu0 %v2378
  %2562 = vmatprep.subr.bf16.mxu0 0
  %2563 = vmatpush1.bf16.msra.mxu0 %v2379
  %2564 = vmatprep.subr.bf16.mxu0 0
  %2565 = vmatpush1.bf16.msra.mxu0 %v2380
  %2566 = vmatprep.subr.bf16.mxu0 0
  %2567 = vmatpush1.bf16.msra.mxu0 %v2381
  %2568 = vmatprep.subr.bf16.mxu0 0
  %2569 = vmatpush1.bf16.msra.mxu0 %v2382
  %2570 = vmatprep.subr.bf16.mxu0 0
  %2571 = vmatpush1.bf16.msra.mxu0 %v2383
  %2572 = vmatprep.subr.bf16.mxu0 0
  %2573 = vmatpush1.bf16.msra.mxu0 %v2384
  %2574 = vmatprep.subr.bf16.mxu0 0
  %2575 = vmatpush1.bf16.msra.mxu0 %v2385
  %2576 = vmatprep.subr.bf16.mxu0 0
  %2577 = vmatpush1.bf16.msra.mxu0 %v2386
  %2578 = vmatprep.subr.bf16.mxu0 0
  %2579 = vmatpush1.bf16.msra.mxu0 %v2387
  %2580 = vmatprep.subr.bf16.mxu0 0
  %2581 = vmatpush1.bf16.msra.mxu0 %v2388
  %2582 = vmatprep.mubr.bf16.mxu0 %v2310
  %2583 = vmatmul.mubr.bf16.gmra.mrb[0].mxu0 %v2309
  %v2584 = vpop.f32.mrb[0].mxu0
  %v2585 = vadd.f32 %v2520, %v2584
  %v2586 = vpop.f32.mrb[0].mxu0
  %v2587 = vpop.f32.mrb[0].mxu0
  %v2588 = vadd.f32 %v2523, %v2587
  %v2589 = vpop.f32.mrb[0].mxu0
  %2590 = vmatprep.mubr.bf16.mxu0 %v2319
  %2591 = vmatmul.mubr.bf16.gmra.mrb[0].mxu0 %v2318
  %v2592 = vpop.f32.mrb[0].mxu0
  %v2593 = vadd.f32 %v2528, %v2592
  %v2594 = vpop.f32.mrb[0].mxu0
  %v2595 = vpop.f32.mrb[0].mxu0
  %v2596 = vadd.f32 %v2531, %v2595
  %v2597 = vpop.f32.mrb[0].mxu0
  %2598 = vmatprep.mubr.bf16.mxu0 %v2328
  %2599 = vmatmul.mubr.bf16.gmra.mrb[0].mxu0 %v2327
  %v2600 = vpop.f32.mrb[0].mxu0
  %v2601 = vadd.f32 %v2536, %v2600
  %v2602 = vpop.f32.mrb[0].mxu0
  %v2603 = vpop.f32.mrb[0].mxu0
  %v2604 = vadd.f32 %v2539, %v2603
  %v2605 = vpop.f32.mrb[0].mxu0
  %2606 = vmatprep.mubr.bf16.mxu0 %v2337
  %2607 = vmatmul.mubr.bf16.gmra.mrb[0].mxu0 %v2336
  %v2608 = vpop.f32.mrb[0].mxu0
  %v2609 = vadd.f32 %v2544, %v2608
  %v2610 = vpop.f32.mrb[0].mxu0
  %v2611 = vpop.f32.mrb[0].mxu0
  %v2612 = vadd.f32 %v2547, %v2611
  %v2613 = vpop.f32.mrb[0].mxu0
  %2614 = vdwg.mxu0
  %2615 = vmatprep.subr.bf16.mxu0 0
  %2616 = vmatpush1.bf16.msra.mxu0 %v2389
  %2617 = vmatprep.subr.bf16.mxu0 0
  %2618 = vmatpush1.bf16.msra.mxu0 %v2390
  %2619 = vmatprep.subr.bf16.mxu0 0
  %2620 = vmatpush1.bf16.msra.mxu0 %v2391
  %2621 = vmatprep.subr.bf16.mxu0 0
  %2622 = vmatpush1.bf16.msra.mxu0 %v2392
  %2623 = vmatprep.subr.bf16.mxu0 0
  %2624 = vmatpush1.bf16.msra.mxu0 %v2393
  %2625 = vmatprep.subr.bf16.mxu0 0
  %2626 = vmatpush1.bf16.msra.mxu0 %v2394
  %2627 = vmatprep.subr.bf16.mxu0 0
  %2628 = vmatpush1.bf16.msra.mxu0 %v2395
  %2629 = vmatprep.subr.bf16.mxu0 0
  %2630 = vmatpush1.bf16.msra.mxu0 %v2396
  %2631 = vmatprep.subr.bf16.mxu0 0
  %2632 = vmatpush1.bf16.msra.mxu0 %v2397
  %2633 = vmatprep.subr.bf16.mxu0 0
  %2634 = vmatpush1.bf16.msra.mxu0 %v2398
  %2635 = vmatprep.subr.bf16.mxu0 0
  %2636 = vmatpush1.bf16.msra.mxu0 %v2399
  %2637 = vmatprep.subr.bf16.mxu0 0
  %2638 = vmatpush1.bf16.msra.mxu0 %v2400
  %2639 = vmatprep.subr.bf16.mxu0 0
  %2640 = vmatpush1.bf16.msra.mxu0 %v2401
  %2641 = vmatprep.subr.bf16.mxu0 0
  %2642 = vmatpush1.bf16.msra.mxu0 %v2402
  %2643 = vmatprep.subr.bf16.mxu0 0
  %2644 = vmatpush1.bf16.msra.mxu0 %v2403
  %2645 = vmatprep.subr.bf16.mxu0 0
  %2646 = vmatpush1.bf16.msra.mxu0 %v2404
  %2647 = vmatprep.mubr.bf16.mxu0 %v2312
  %2648 = vmatmul.mubr.bf16.gmra.mrb[0].mxu0 %v2311
  %v2649 = vpop.f32.mrb[0].mxu0
  %v2650 = vadd.f32 %v2585, %v2649
  %v2651 = vpop.f32.mrb[0].mxu0
  %v2652 = vpop.f32.mrb[0].mxu0
  %v2653 = vadd.f32 %v2588, %v2652
  %v2654 = vpop.f32.mrb[0].mxu0
  %2655 = vmatprep.mubr.bf16.mxu0 %v2321
  %2656 = vmatmul.mubr.bf16.gmra.mrb[0].mxu0 %v2320
  %v2657 = vpop.f32.mrb[0].mxu0
  %v2658 = vadd.f32 %v2593, %v2657
  %v2659 = vpop.f32.mrb[0].mxu0
  %v2660 = vpop.f32.mrb[0].mxu0
  %v2661 = vadd.f32 %v2596, %v2660
  %v2662 = vpop.f32.mrb[0].mxu0
  %2663 = vmatprep.mubr.bf16.mxu0 %v2330
  %2664 = vmatmul.mubr.bf16.gmra.mrb[0].mxu0 %v2329
  %v2665 = vpop.f32.mrb[0].mxu0
  %v2666 = vadd.f32 %v2601, %v2665
  %v2667 = vpop.f32.mrb[0].mxu0
  %v2668 = vpop.f32.mrb[0].mxu0
  %v2669 = vadd.f32 %v2604, %v2668
  %v2670 = vpop.f32.mrb[0].mxu0
  %2671 = vmatprep.mubr.bf16.mxu0 %v2339
  %2672 = vmatmul.mubr.bf16.gmra.mrb[0].mxu0 %v2338
  %v2673 = vpop.f32.mrb[0].mxu0
  %v2674 = vadd.f32 %v2609, %v2673
  %v2675 = vpop.f32.mrb[0].mxu0
  %v2676 = vpop.f32.mrb[0].mxu0
  %v2677 = vadd.f32 %v2612, %v2676
  %v2678 = vpop.f32.mrb[0].mxu0
  %2679 = vdwg.mxu0
  %2680 = vmatprep.subr.bf16.mxu0 0
  %2681 = vmatpush1.bf16.msra.mxu0 %v2405
  %2682 = vmatprep.subr.bf16.mxu0 0
  %2683 = vmatpush1.bf16.msra.mxu0 %v2406
  %2684 = vmatprep.subr.bf16.mxu0 0
  %2685 = vmatpush1.bf16.msra.mxu0 %v2407
  %2686 = vmatprep.subr.bf16.mxu0 0
  %2687 = vmatpush1.bf16.msra.mxu0 %v2408
  %2688 = vmatprep.subr.bf16.mxu0 0
  %2689 = vmatpush1.bf16.msra.mxu0 %v2409
  %2690 = vmatprep.subr.bf16.mxu0 0
  %2691 = vmatpush1.bf16.msra.mxu0 %v2410
  %2692 = vmatprep.subr.bf16.mxu0 0
  %2693 = vmatpush1.bf16.msra.mxu0 %v2411
  %2694 = vmatprep.subr.bf16.mxu0 0
  %2695 = vmatpush1.bf16.msra.mxu0 %v2412
  %2696 = vmatprep.subr.bf16.mxu0 0
  %2697 = vmatpush1.bf16.msra.mxu0 0
  %2698 = vmatprep.subr.bf16.mxu0 0
  %2699 = vmatpush1.bf16.msra.mxu0 0
  %2700 = vmatprep.subr.bf16.mxu0 0
  %2701 = vmatpush1.bf16.msra.mxu0 0
  %2702 = vmatprep.subr.bf16.mxu0 0
  %2703 = vmatpush1.bf16.msra.mxu0 0
  %2704 = vmatprep.subr.bf16.mxu0 0
  %2705 = vmatpush1.bf16.msra.mxu0 0
  %2706 = vmatprep.subr.bf16.mxu0 0
  %2707 = vmatpush1.bf16.msra.mxu0 0
  %2708 = vmatprep.subr.bf16.mxu0 0
  %2709 = vmatpush1.bf16.msra.mxu0 0
  %2710 = vmatprep.subr.bf16.mxu0 0
  %2711 = vmatpush1.bf16.msra.mxu0 0
  %2712 = vmatprep.mubr.bf16.mxu0 0
  %2713 = vmatmul.mubr.bf16.gmra.mrb[0].mxu0 %v2313
  %v2714 = vpop.f32.mrb[0].mxu0
  %v2715 = vadd.f32 %v2650, %v2714
  %v2716 = vpop.f32.mrb[0].mxu0
  %v2717 = vpop.f32.mrb[0].mxu0
  %v2718 = vadd.f32 %v2653, %v2717
  %v2719 = vpop.f32.mrb[0].mxu0
  %2720 = vmatprep.mubr.bf16.mxu0 0
  %2721 = vmatmul.mubr.bf16.gmra.mrb[0].mxu0 %v2322
  %v2722 = vpop.f32.mrb[0].mxu0
  %v2723 = vadd.f32 %v2658, %v2722
  %v2724 = vpop.f32.mrb[0].mxu0
  %v2725 = vpop.f32.mrb[0].mxu0
  %v2726 = vadd.f32 %v2661, %v2725
  %v2727 = vpop.f32.mrb[0].mxu0
  %2728 = vmatprep.mubr.bf16.mxu0 0
  %2729 = vmatmul.mubr.bf16.gmra.mrb[0].mxu0 %v2331
  %v2730 = vpop.f32.mrb[0].mxu0
  %v2731 = vadd.f32 %v2666, %v2730
  %v2732 = vpop.f32.mrb[0].mxu0
  %v2733 = vpop.f32.mrb[0].mxu0
  %v2734 = vadd.f32 %v2669, %v2733
  %v2735 = vpop.f32.mrb[0].mxu0
  %2736 = vmatprep.mubr.bf16.mxu0 0
  %2737 = vmatmul.mubr.bf16.gmra.mrb[0].mxu0 %v2340
  %v2738 = vpop.f32.mrb[0].mxu0
  %v2739 = vadd.f32 %v2674, %v2738
  %v2740 = vpop.f32.mrb[0].mxu0
  %v2741 = vpop.f32.mrb[0].mxu0
  %v2742 = vadd.f32 %v2677, %v2741
  %v2743 = vpop.f32.mrb[0].mxu0
  %2744 = vdwg.mxu0
  %v2745 = vmax.f32 %v2715, 0.0
  %v2746 = vmax.f32 %v2718, 0.0
  %v2747 = vmax.f32 %v2723, 0.0
  %v2748 = vmax.f32 %v2726, 0.0
  %v2749 = vmax.f32 %v2731, 0.0
  %v2750 = vmax.f32 %v2734, 0.0
  %v2751 = vmax.f32 %v2739, 0.0
  %v2752 = vmax.f32 %v2742, 0.0
  %v2753 = vld [vmem:[%s5] sm:$0xf]
  %v2754 = vld [vmem:[%s5 + $0x4] sm:$0xf]
  %v2755 = vld [vmem:[%s5 + $0x8] sm:$0xf]
  %v2756 = vld [vmem:[%s5 + $0xc] sm:$0xf]
  %v2757 = vld [vmem:[%s5 + $0x10] sm:$0xf]
  %v2758 = vld [vmem:[%s5 + $0x14] sm:$0xf]
  %v2759 = vld [vmem:[%s5 + $0x18] sm:$0xf]
  %v2760 = vld [vmem:[%s5 + $0x1c] sm:$0xf]
  %v2761 = vld [vmem:[%s5 + $0x20] sm:$0xf]
  %v2762 = vld [vmem:[%s5 + $0x24] sm:$0xf]
  %v2763 = vld [vmem:[%s5 + $0x28] sm:$0xf]
  %v2764 = vld [vmem:[%s5 + $0x2c] sm:$0xf]
  %v2765 = vld [vmem:[%s5 + $0x30] sm:$0xf]
  %v2766 = vld [vmem:[%s5 + $0x34] sm:$0xf]
  %v2767 = vld [vmem:[%s5 + $0x38] sm:$0xf]
  %v2768 = vld [vmem:[%s5 + $0x3c] sm:$0xf]
  %v2769 = vld [vmem:[%s5 + $0x40] sm:$0xf]
  %v2770 = vld [vmem:[%s5 + $0x44] sm:$0xf]
  %v2771 = vpack.c.bf16 %v2746, %v2745
  %v2772 = vpack.c.bf16 %v2748, %v2747
  %v2773 = vpack.c.bf16 %v2750, %v2749
  %v2774 = vpack.c.bf16 %v2752, %v2751
  %v2793 = vunpack.c.l.b16 %v2753
  %v2794 = vunpack.c.l.b16 %v2754
  %v2795 = vunpack.c.l.b16 %v2755
  %v2796 = vunpack.c.l.b16 %v2756
  %v2797 = vunpack.c.l.b16 %v2757
  %v2798 = vunpack.c.l.b16 %v2758
  %v2799 = vunpack.c.l.b16 %v2759
  %v2800 = vunpack.c.l.b16 %v2760
  %v2801 = vunpack.c.l.b16 %v2761
  %v2802 = vunpack.c.l.b16 %v2762
  %v2803 = vunpack.c.l.b16 %v2763
  %v2804 = vunpack.c.l.b16 %v2764
  %v2805 = vunpack.c.l.b16 %v2765
  %v2806 = vunpack.c.l.b16 %v2766
  %v2807 = vunpack.c.l.b16 %v2767
  %v2808 = vunpack.c.l.b16 %v2768
  %v2809 = vunpack.c.l.b16 %v2769
  %v2810 = vunpack.c.l.b16 %v2770
  %v2811 = vpack.c.b16 %v2794, %v2793
  %v2812 = vpack.c.b16 %v2796, %v2795
  %v2813 = vpack.c.b16 %v2798, %v2797
  %v2814 = vpack.c.b16 %v2800, %v2799
  %v2815 = vpack.c.b16 %v2802, %v2801
  %v2816 = vpack.c.b16 %v2804, %v2803
  %v2817 = vpack.c.b16 %v2806, %v2805
  %v2818 = vpack.c.b16 %v2808, %v2807
  %v2819 = vpack.c.b16 %v2810, %v2809
  %vm2820 = vcmask 523264
  %v2822 = vsel %vm2820, %v2811, 0
  %v2825 = vsel %vm2820, %v2812, 0
  %v2828 = vsel %vm2820, %v2813, 0
  %v2831 = vsel %vm2820, %v2814, 0
  %v2834 = vsel %vm2820, %v2815, 0
  %v2837 = vsel %vm2820, %v2816, 0
  %v2840 = vsel %vm2820, %v2817, 0
  %v2843 = vsel %vm2820, %v2818, 0
  %v2846 = vsel %vm2820, %v2819, 0
  %2848 = vmatprep.subr.bf16.mxu0 0
  %2849 = vmatpush1.bf16.msra.mxu0 %v2771
  %2850 = vmatprep.subr.bf16.mxu0 0
  %2851 = vmatpush1.bf16.msra.mxu0 %v2772
  %2852 = vmatprep.subr.bf16.mxu0 0
  %2853 = vmatpush1.bf16.msra.mxu0 %v2773
  %2854 = vmatprep.subr.bf16.mxu0 0
  %2855 = vmatpush1.bf16.msra.mxu0 %v2774
  %2856 = vmatprep.subr.bf16.mxu0 0
  %2857 = vmatpush1.bf16.msra.mxu0 0
  %2858 = vmatprep.subr.bf16.mxu0 0
  %2859 = vmatpush1.bf16.msra.mxu0 0
  %2860 = vmatprep.subr.bf16.mxu0 0
  %2861 = vmatpush1.bf16.msra.mxu0 0
  %2862 = vmatprep.subr.bf16.mxu0 0
  %2863 = vmatpush1.bf16.msra.mxu0 0
  %2864 = vmatprep.subr.bf16.mxu0 0
  %2865 = vmatpush1.bf16.msra.mxu0 0
  %2866 = vmatprep.subr.bf16.mxu0 0
  %2867 = vmatpush1.bf16.msra.mxu0 0
  %2868 = vmatprep.subr.bf16.mxu0 0
  %2869 = vmatpush1.bf16.msra.mxu0 0
  %2870 = vmatprep.subr.bf16.mxu0 0
  %2871 = vmatpush1.bf16.msra.mxu0 0
  %2872 = vmatprep.subr.bf16.mxu0 0
  %2873 = vmatpush1.bf16.msra.mxu0 0
  %2874 = vmatprep.subr.bf16.mxu0 0
  %2875 = vmatpush1.bf16.msra.mxu0 0
  %2876 = vmatprep.subr.bf16.mxu0 0
  %2877 = vmatpush1.bf16.msra.mxu0 0
  %2878 = vmatprep.subr.bf16.mxu0 0
  %2879 = vmatpush1.bf16.msra.mxu0 0
  %2880 = vmatprep.mubr.bf16.mxu0 0
  %2881 = vmatmul.mubr.bf16.gmra.mrb[0].mxu0 %v2822
  %v2882 = vpop.f32.mrb[0].mxu0
  %v2883 = vadd.f32 0.0, %v2882
  %v2884 = vpop.f32.mrb[0].mxu0
  %v2885 = vpop.f32.mrb[0].mxu0
  %v2886 = vadd.f32 0.0, %v2885
  %v2887 = vpop.f32.mrb[0].mxu0
  %2888 = vmatprep.mubr.bf16.mxu0 0
  %2889 = vmatmul.mubr.bf16.gmra.mrb[0].mxu0 %v2825
  %v2890 = vpop.f32.mrb[0].mxu0
  %v2891 = vadd.f32 0.0, %v2890
  %v2892 = vpop.f32.mrb[0].mxu0
  %v2893 = vpop.f32.mrb[0].mxu0
  %v2894 = vadd.f32 0.0, %v2893
  %v2895 = vpop.f32.mrb[0].mxu0
  %2896 = vmatprep.mubr.bf16.mxu0 0
  %2897 = vmatmul.mubr.bf16.gmra.mrb[0].mxu0 %v2828
  %v2898 = vpop.f32.mrb[0].mxu0
  %v2899 = vadd.f32 0.0, %v2898
  %v2900 = vpop.f32.mrb[0].mxu0
  %v2901 = vpop.f32.mrb[0].mxu0
  %v2902 = vadd.f32 0.0, %v2901
  %v2903 = vpop.f32.mrb[0].mxu0
  %2904 = vmatprep.mubr.bf16.mxu0 0
  %2905 = vmatmul.mubr.bf16.gmra.mrb[0].mxu0 %v2831
  %v2906 = vpop.f32.mrb[0].mxu0
  %v2907 = vadd.f32 0.0, %v2906
  %v2908 = vpop.f32.mrb[0].mxu0
  %v2909 = vpop.f32.mrb[0].mxu0
  %v2910 = vadd.f32 0.0, %v2909
  %v2911 = vpop.f32.mrb[0].mxu0
  %2912 = vmatprep.mubr.bf16.mxu0 0
  %2913 = vmatmul.mubr.bf16.gmra.mrb[0].mxu0 %v2834
  %v2914 = vpop.f32.mrb[0].mxu0
  %v2915 = vadd.f32 0.0, %v2914
  %v2916 = vpop.f32.mrb[0].mxu0
  %v2917 = vpop.f32.mrb[0].mxu0
  %v2918 = vadd.f32 0.0, %v2917
  %v2919 = vpop.f32.mrb[0].mxu0
  %2920 = vmatprep.mubr.bf16.mxu0 0
  %2921 = vmatmul.mubr.bf16.gmra.mrb[0].mxu0 %v2837
  %v2922 = vpop.f32.mrb[0].mxu0
  %v2923 = vadd.f32 0.0, %v2922
  %v2924 = vpop.f32.mrb[0].mxu0
  %v2925 = vpop.f32.mrb[0].mxu0
  %v2926 = vadd.f32 0.0, %v2925
  %v2927 = vpop.f32.mrb[0].mxu0
  %2928 = vmatprep.mubr.bf16.mxu0 0
  %2929 = vmatmul.mubr.bf16.gmra.mrb[0].mxu0 %v2840
  %v2930 = vpop.f32.mrb[0].mxu0
  %v2931 = vadd.f32 0.0, %v2930
  %v2932 = vpop.f32.mrb[0].mxu0
  %v2933 = vpop.f32.mrb[0].mxu0
  %v2934 = vadd.f32 0.0, %v2933
  %v2935 = vpop.f32.mrb[0].mxu0
  %2936 = vmatprep.mubr.bf16.mxu0 0
  %2937 = vmatmul.mubr.bf16.gmra.mrb[0].mxu0 %v2843
  %v2938 = vpop.f32.mrb[0].mxu0
  %v2939 = vadd.f32 0.0, %v2938
  %v2940 = vpop.f32.mrb[0].mxu0
  %v2941 = vpop.f32.mrb[0].mxu0
  %v2942 = vadd.f32 0.0, %v2941
  %v2943 = vpop.f32.mrb[0].mxu0
  %2944 = vmatprep.mubr.bf16.mxu0 0
  %2945 = vmatmul.mubr.bf16.gmra.mrb[0].mxu0 %v2846
  %v2946 = vpop.f32.mrb[0].mxu0
  %v2947 = vadd.f32 0.0, %v2946
  %v2948 = vpop.f32.mrb[0].mxu0
  %v2949 = vpop.f32.mrb[0].mxu0
  %v2950 = vadd.f32 0.0, %v2949
  %v2951 = vpop.f32.mrb[0].mxu0
  %2952 = vdwg.mxu0
  %s2953 = sshll.u32 %s2302, 4
  %2954 = dma.done %s224, %s2953
  %v2955 = vpack.c.bf16 %v2886, %v2883
  %v2956 = vpack.c.bf16 %v2894, %v2891
  %v2957 = vpack.c.bf16 %v2902, %v2899
  %v2958 = vpack.c.bf16 %v2910, %v2907
  %v2959 = vpack.c.bf16 %v2918, %v2915
  %v2960 = vpack.c.bf16 %v2926, %v2923
  %v2961 = vpack.c.bf16 %v2934, %v2931
  %v2962 = vpack.c.bf16 %v2942, %v2939
  %v2963 = vpack.c.bf16 %v2950, %v2947
  %v2964 = vld [vmem:[#allocation3] sm:$0xff]
  %v2965 = vld [vmem:[#allocation3 + $0x8] sm:$0xff]
  %v2966 = vld [vmem:[#allocation3 + $0x10] sm:$0xff]
  %v2967 = vld [vmem:[#allocation3 + $0x18] sm:$0xff]
  %v2968 = vld [vmem:[#allocation3 + $0x20] sm:$0xff]
  %v2969 = vld [vmem:[#allocation3 + $0x28] sm:$0xff]
  %v2970 = vld [vmem:[#allocation3 + $0x30] sm:$0xff]
  %v2971 = vld [vmem:[#allocation3 + $0x38] sm:$0xff]
  %v2972 = vld [vmem:[#allocation3 + $0x40] sm:$0xff]
  %v2973 = vld [vmem:[#allocation3 + $0x48] sm:$0xff]
  %v2974 = vld [vmem:[#allocation3 + $0x50] sm:$0xff]
  %v2975 = vld [vmem:[#allocation3 + $0x58] sm:$0xff]
  %v2976 = vld [vmem:[#allocation3 + $0x60] sm:$0xff]
  %v2977 = vld [vmem:[#allocation3 + $0x68] sm:$0xff]
  %v2978 = vld [vmem:[#allocation3 + $0x70] sm:$0xff]
  %v2979 = vld [vmem:[#allocation3 + $0x78] sm:$0xff]
  %v2980 = vld [vmem:[#allocation3 + $0x80] sm:$0xff]
  %v2981 = vld [vmem:[#allocation3 + $0x88] sm:$0xff]
  %v2982 = vld [vmem:[#allocation3 + $0x90] sm:$0xff]
  %v2983 = vld [vmem:[#allocation3 + $0x98] sm:$0xff]
  %v2984 = vld [vmem:[#allocation3 + $0xa0] sm:$0xff]
  %v2985 = vld [vmem:[#allocation3 + $0xa8] sm:$0xff]
  %v2986 = vld [vmem:[#allocation3 + $0xb0] sm:$0xff]
  %v2987 = vld [vmem:[#allocation3 + $0xb8] sm:$0xff]
  %v2988 = vld [vmem:[#allocation3 + $0xc0] sm:$0xff]
  %v2989 = vld [vmem:[#allocation3 + $0xc8] sm:$0xff]
  %v2990 = vld [vmem:[#allocation3 + $0xd0] sm:$0xff]
  %v2991 = vld [vmem:[#allocation3 + $0xd8] sm:$0xff]
  %v2992 = vld [vmem:[#allocation3 + $0xe0] sm:$0xff]
  %v2993 = vld [vmem:[#allocation3 + $0xe8] sm:$0xff]
  %v2994 = vld [vmem:[#allocation3 + $0xf0] sm:$0xff]
  %v2995 = vld [vmem:[#allocation3 + $0xf8] sm:$0xff]
  %v2996 = vld [vmem:[#allocation3 + $0x100] sm:$0xff]
  %v2997 = vld [vmem:[#allocation3 + $0x108] sm:$0xff]
  %v2998 = vld [vmem:[#allocation3 + $0x110] sm:$0xff]
  %v2999 = vld [vmem:[#allocation3 + $0x118] sm:$0xff]
  %v3000 = vld [vmem:[#allocation3 + $0x120] sm:$0xff]
  %v3001 = vld [vmem:[#allocation3 + $0x128] sm:$0xff]
  %v3002 = vld [vmem:[#allocation3 + $0x130] sm:$0xff]
  %v3003 = vld [vmem:[#allocation3 + $0x138] sm:$0xff]
  %v3004 = vld [vmem:[#allocation3 + $0x140] sm:$0xff]
  %v3005 = vld [vmem:[#allocation3 + $0x148] sm:$0xff]
  %v3006 = vld [vmem:[#allocation3 + $0x150] sm:$0xff]
  %v3007 = vld [vmem:[#allocation3 + $0x158] sm:$0xff]
  %v3008 = vld [vmem:[#allocation3 + $0x160] sm:$0xff]
  %v3009 = vld [vmem:[#allocation3 + $0x168] sm:$0xff]
  %v3010 = vld [vmem:[#allocation3 + $0x170] sm:$0xff]
  %v3011 = vld [vmem:[#allocation3 + $0x178] sm:$0xff]
  %v3012 = vld [vmem:[#allocation3 + $0x180] sm:$0xff]
  %v3013 = vld [vmem:[#allocation3 + $0x188] sm:$0xff]
  %v3014 = vld [vmem:[#allocation3 + $0x190] sm:$0xff]
  %v3015 = vld [vmem:[#allocation3 + $0x198] sm:$0xff]
  %v3016 = vld [vmem:[#allocation3 + $0x1a0] sm:$0xff]
  %v3017 = vld [vmem:[#allocation3 + $0x1a8] sm:$0xff]
  %v3018 = vld [vmem:[#allocation3 + $0x1b0] sm:$0xff]
  %v3019 = vld [vmem:[#allocation3 + $0x1b8] sm:$0xff]
  %v3020 = vld [vmem:[#allocation3 + $0x1c0] sm:$0xff]
  %v3021 = vld [vmem:[#allocation3 + $0x1c8] sm:$0xff]
  %v3022 = vld [vmem:[#allocation3 + $0x1d0] sm:$0xff]
  %v3023 = vld [vmem:[#allocation3 + $0x1d8] sm:$0xff]
  %v3024 = vld [vmem:[#allocation3 + $0x1e0] sm:$0xff]
  %v3025 = vld [vmem:[#allocation3 + $0x1e8] sm:$0xff]
  %v3026 = vld [vmem:[#allocation3 + $0x1f0] sm:$0xff]
  %v3027 = vld [vmem:[#allocation3 + $0x1f8] sm:$0xff]
  %v3028 = vld [vmem:[#allocation3 + $0x200] sm:$0xff]
  %v3029 = vld [vmem:[#allocation3 + $0x208] sm:$0xff]
  %v3030 = vld [vmem:[#allocation3 + $0x210] sm:$0xff]
  %v3031 = vld [vmem:[#allocation3 + $0x218] sm:$0xff]
  %v3032 = vld [vmem:[#allocation3 + $0x220] sm:$0xff]
  %v3033 = vld [vmem:[#allocation3 + $0x228] sm:$0xff]
  %v3034 = vld [vmem:[#allocation3 + $0x230] sm:$0xff]
  %v3035 = vld [vmem:[#allocation3 + $0x238] sm:$0xff]
  %v3036 = vld [vmem:[%s6] sm:$0x1]
  %v3038 = vlaneseq
  %v3039 = vshrl.u32 %v3038, 7
  %v3040 = vsub.s32 0, %v3039
  %v3041 = vrot.slane %v3036, %v3040
  %3043 = vmatprep.subr.bf16.mxu0 0
  %3044 = vmatpush1.bf16.msra.mxu0 %v2964
  %3045 = vmatprep.subr.bf16.mxu0 0
  %3046 = vmatpush1.bf16.msra.mxu0 %v2965
  %3047 = vmatprep.subr.bf16.mxu0 0
  %3048 = vmatpush1.bf16.msra.mxu0 %v2966
  %3049 = vmatprep.subr.bf16.mxu0 0
  %3050 = vmatpush1.bf16.msra.mxu0 %v2967
  %3051 = vmatprep.subr.bf16.mxu0 0
  %3052 = vmatpush1.bf16.msra.mxu0 %v2968
  %3053 = vmatprep.subr.bf16.mxu0 0
  %3054 = vmatpush1.bf16.msra.mxu0 %v2969
  %3055 = vmatprep.subr.bf16.mxu0 0
  %3056 = vmatpush1.bf16.msra.mxu0 %v2970
  %3057 = vmatprep.subr.bf16.mxu0 0
  %3058 = vmatpush1.bf16.msra.mxu0 %v2971
  %3059 = vmatprep.subr.bf16.mxu0 0
  %3060 = vmatpush1.bf16.msra.mxu0 %v2972
  %3061 = vmatprep.subr.bf16.mxu0 0
  %3062 = vmatpush1.bf16.msra.mxu0 %v2973
  %3063 = vmatprep.subr.bf16.mxu0 0
  %3064 = vmatpush1.bf16.msra.mxu0 %v2974
  %3065 = vmatprep.subr.bf16.mxu0 0
  %3066 = vmatpush1.bf16.msra.mxu0 %v2975
  %3067 = vmatprep.subr.bf16.mxu0 0
  %3068 = vmatpush1.bf16.msra.mxu0 %v2976
  %3069 = vmatprep.subr.bf16.mxu0 0
  %3070 = vmatpush1.bf16.msra.mxu0 %v2977
  %3071 = vmatprep.subr.bf16.mxu0 0
  %3072 = vmatpush1.bf16.msra.mxu0 %v2978
  %3073 = vmatprep.subr.bf16.mxu0 0
  %3074 = vmatpush1.bf16.msra.mxu0 %v2979
  %3075 = vmatprep.mubr.bf16.mxu0 %v2956
  %3076 = vmatmul.mubr.bf16.gmra.mrb[0].mxu0 %v2955
  %v3077 = vpop.f32.mrb[0].mxu0
  %v3078 = vadd.f32 %v3041, %v3077
  %v3079 = vpop.f32.mrb[0].mxu0
  %v3080 = vpop.f32.mrb[0].mxu0
  %v3081 = vadd.f32 %v3041, %v3080
  %v3082 = vpop.f32.mrb[0].mxu0
  %3083 = vdwg.mxu0
  %3084 = vmatprep.subr.bf16.mxu0 0
  %3085 = vmatpush1.bf16.msra.mxu0 %v2980
  %3086 = vmatprep.subr.bf16.mxu0 0
  %3087 = vmatpush1.bf16.msra.mxu0 %v2981
  %3088 = vmatprep.subr.bf16.mxu0 0
  %3089 = vmatpush1.bf16.msra.mxu0 %v2982
  %3090 = vmatprep.subr.bf16.mxu0 0
  %3091 = vmatpush1.bf16.msra.mxu0 %v2983
  %3092 = vmatprep.subr.bf16.mxu0 0
  %3093 = vmatpush1.bf16.msra.mxu0 %v2984
  %3094 = vmatprep.subr.bf16.mxu0 0
  %3095 = vmatpush1.bf16.msra.mxu0 %v2985
  %3096 = vmatprep.subr.bf16.mxu0 0
  %3097 = vmatpush1.bf16.msra.mxu0 %v2986
  %3098 = vmatprep.subr.bf16.mxu0 0
  %3099 = vmatpush1.bf16.msra.mxu0 %v2987
  %3100 = vmatprep.subr.bf16.mxu0 0
  %3101 = vmatpush1.bf16.msra.mxu0 %v2988
  %3102 = vmatprep.subr.bf16.mxu0 0
  %3103 = vmatpush1.bf16.msra.mxu0 %v2989
  %3104 = vmatprep.subr.bf16.mxu0 0
  %3105 = vmatpush1.bf16.msra.mxu0 %v2990
  %3106 = vmatprep.subr.bf16.mxu0 0
  %3107 = vmatpush1.bf16.msra.mxu0 %v2991
  %3108 = vmatprep.subr.bf16.mxu0 0
  %3109 = vmatpush1.bf16.msra.mxu0 %v2992
  %3110 = vmatprep.subr.bf16.mxu0 0
  %3111 = vmatpush1.bf16.msra.mxu0 %v2993
  %3112 = vmatprep.subr.bf16.mxu0 0
  %3113 = vmatpush1.bf16.msra.mxu0 %v2994
  %3114 = vmatprep.subr.bf16.mxu0 0
  %3115 = vmatpush1.bf16.msra.mxu0 %v2995
  %3116 = vmatprep.mubr.bf16.mxu0 %v2958
  %3117 = vmatmul.mubr.bf16.gmra.mrb[0].mxu0 %v2957
  %v3118 = vpop.f32.mrb[0].mxu0
  %v3119 = vadd.f32 %v3078, %v3118
  %v3120 = vpop.f32.mrb[0].mxu0
  %v3121 = vpop.f32.mrb[0].mxu0
  %v3122 = vadd.f32 %v3081, %v3121
  %v3123 = vpop.f32.mrb[0].mxu0
  %3124 = vdwg.mxu0
  %3125 = vmatprep.subr.bf16.mxu0 0
  %3126 = vmatpush1.bf16.msra.mxu0 %v2996
  %3127 = vmatprep.subr.bf16.mxu0 0
  %3128 = vmatpush1.bf16.msra.mxu0 %v2997
  %3129 = vmatprep.subr.bf16.mxu0 0
  %3130 = vmatpush1.bf16.msra.mxu0 %v2998
  %3131 = vmatprep.subr.bf16.mxu0 0
  %3132 = vmatpush1.bf16.msra.mxu0 %v2999
  %3133 = vmatprep.subr.bf16.mxu0 0
  %3134 = vmatpush1.bf16.msra.mxu0 %v3000
  %3135 = vmatprep.subr.bf16.mxu0 0
  %3136 = vmatpush1.bf16.msra.mxu0 %v3001
  %3137 = vmatprep.subr.bf16.mxu0 0
  %3138 = vmatpush1.bf16.msra.mxu0 %v3002
  %3139 = vmatprep.subr.bf16.mxu0 0
  %3140 = vmatpush1.bf16.msra.mxu0 %v3003
  %3141 = vmatprep.subr.bf16.mxu0 0
  %3142 = vmatpush1.bf16.msra.mxu0 %v3004
  %3143 = vmatprep.subr.bf16.mxu0 0
  %3144 = vmatpush1.bf16.msra.mxu0 %v3005
  %3145 = vmatprep.subr.bf16.mxu0 0
  %3146 = vmatpush1.bf16.msra.mxu0 %v3006
  %3147 = vmatprep.subr.bf16.mxu0 0
  %3148 = vmatpush1.bf16.msra.mxu0 %v3007
  %3149 = vmatprep.subr.bf16.mxu0 0
  %3150 = vmatpush1.bf16.msra.mxu0 %v3008
  %3151 = vmatprep.subr.bf16.mxu0 0
  %3152 = vmatpush1.bf16.msra.mxu0 %v3009
  %3153 = vmatprep.subr.bf16.mxu0 0
  %3154 = vmatpush1.bf16.msra.mxu0 %v3010
  %3155 = vmatprep.subr.bf16.mxu0 0
  %3156 = vmatpush1.bf16.msra.mxu0 %v3011
  %3157 = vmatprep.mubr.bf16.mxu0 %v2960
  %3158 = vmatmul.mubr.bf16.gmra.mrb[0].mxu0 %v2959
  %v3159 = vpop.f32.mrb[0].mxu0
  %v3160 = vadd.f32 %v3119, %v3159
  %v3161 = vpop.f32.mrb[0].mxu0
  %v3162 = vpop.f32.mrb[0].mxu0
  %v3163 = vadd.f32 %v3122, %v3162
  %v3164 = vpop.f32.mrb[0].mxu0
  %3165 = vdwg.mxu0
  %3166 = vmatprep.subr.bf16.mxu0 0
  %3167 = vmatpush1.bf16.msra.mxu0 %v3012
  %3168 = vmatprep.subr.bf16.mxu0 0
  %3169 = vmatpush1.bf16.msra.mxu0 %v3013
  %3170 = vmatprep.subr.bf16.mxu0 0
  %3171 = vmatpush1.bf16.msra.mxu0 %v3014
  %3172 = vmatprep.subr.bf16.mxu0 0
  %3173 = vmatpush1.bf16.msra.mxu0 %v3015
  %3174 = vmatprep.subr.bf16.mxu0 0
  %3175 = vmatpush1.bf16.msra.mxu0 %v3016
  %3176 = vmatprep.subr.bf16.mxu0 0
  %3177 = vmatpush1.bf16.msra.mxu0 %v3017
  %3178 = vmatprep.subr.bf16.mxu0 0
  %3179 = vmatpush1.bf16.msra.mxu0 %v3018
  %3180 = vmatprep.subr.bf16.mxu0 0
  %3181 = vmatpush1.bf16.msra.mxu0 %v3019
  %3182 = vmatprep.subr.bf16.mxu0 0
  %3183 = vmatpush1.bf16.msra.mxu0 %v3020
  %3184 = vmatprep.subr.bf16.mxu0 0
  %3185 = vmatpush1.bf16.msra.mxu0 %v3021
  %3186 = vmatprep.subr.bf16.mxu0 0
  %3187 = vmatpush1.bf16.msra.mxu0 %v3022
  %3188 = vmatprep.subr.bf16.mxu0 0
  %3189 = vmatpush1.bf16.msra.mxu0 %v3023
  %3190 = vmatprep.subr.bf16.mxu0 0
  %3191 = vmatpush1.bf16.msra.mxu0 %v3024
  %3192 = vmatprep.subr.bf16.mxu0 0
  %3193 = vmatpush1.bf16.msra.mxu0 %v3025
  %3194 = vmatprep.subr.bf16.mxu0 0
  %3195 = vmatpush1.bf16.msra.mxu0 %v3026
  %3196 = vmatprep.subr.bf16.mxu0 0
  %3197 = vmatpush1.bf16.msra.mxu0 %v3027
  %3198 = vmatprep.mubr.bf16.mxu0 %v2962
  %3199 = vmatmul.mubr.bf16.gmra.mrb[0].mxu0 %v2961
  %v3200 = vpop.f32.mrb[0].mxu0
  %v3201 = vadd.f32 %v3160, %v3200
  %v3202 = vpop.f32.mrb[0].mxu0
  %v3203 = vpop.f32.mrb[0].mxu0
  %v3204 = vadd.f32 %v3163, %v3203
  %v3205 = vpop.f32.mrb[0].mxu0
  %3206 = vdwg.mxu0
  %3207 = vmatprep.subr.bf16.mxu0 0
  %3208 = vmatpush1.bf16.msra.mxu0 %v3028
  %3209 = vmatprep.subr.bf16.mxu0 0
  %3210 = vmatpush1.bf16.msra.mxu0 %v3029
  %3211 = vmatprep.subr.bf16.mxu0 0
  %3212 = vmatpush1.bf16.msra.mxu0 %v3030
  %3213 = vmatprep.subr.bf16.mxu0 0
  %3214 = vmatpush1.bf16.msra.mxu0 %v3031
  %3215 = vmatprep.subr.bf16.mxu0 0
  %3216 = vmatpush1.bf16.msra.mxu0 %v3032
  %3217 = vmatprep.subr.bf16.mxu0 0
  %3218 = vmatpush1.bf16.msra.mxu0 %v3033
  %3219 = vmatprep.subr.bf16.mxu0 0
  %3220 = vmatpush1.bf16.msra.mxu0 %v3034
  %3221 = vmatprep.subr.bf16.mxu0 0
  %3222 = vmatpush1.bf16.msra.mxu0 %v3035
  %3223 = vmatprep.subr.bf16.mxu0 0
  %3224 = vmatpush1.bf16.msra.mxu0 0
  %3225 = vmatprep.subr.bf16.mxu0 0
  %3226 = vmatpush1.bf16.msra.mxu0 0
  %3227 = vmatprep.subr.bf16.mxu0 0
  %3228 = vmatpush1.bf16.msra.mxu0 0
  %3229 = vmatprep.subr.bf16.mxu0 0
  %3230 = vmatpush1.bf16.msra.mxu0 0
  %3231 = vmatprep.subr.bf16.mxu0 0
  %3232 = vmatpush1.bf16.msra.mxu0 0
  %3233 = vmatprep.subr.bf16.mxu0 0
  %3234 = vmatpush1.bf16.msra.mxu0 0
  %3235 = vmatprep.subr.bf16.mxu0 0
  %3236 = vmatpush1.bf16.msra.mxu0 0
  %3237 = vmatprep.subr.bf16.mxu0 0
  %3238 = vmatpush1.bf16.msra.mxu0 0
  %3239 = vmatprep.mubr.bf16.mxu0 0
  %3240 = vmatmul.mubr.bf16.gmra.mrb[0].mxu0 %v2963
  %v3241 = vpop.f32.mrb[0].mxu0
  %v3242 = vadd.f32 %v3201, %v3241
  %v3243 = vpop.f32.mrb[0].mxu0
  %v3244 = vpop.f32.mrb[0].mxu0
  %v3245 = vadd.f32 %v3204, %v3244
  %v3246 = vpop.f32.mrb[0].mxu0
  %3247 = vdwg.mxu0
  %v3248 = vmax.f32 %v3242, 0.0
  %v3249 = vmax.f32 %v3245, 0.0
  %v3250 = vld [vmem:[%s7] sm:$0xf]
  %v3251 = vld [vmem:[%s7 + $0x4] sm:$0xf]
  %v3252 = vld [vmem:[%s7 + $0x8] sm:$0xf]
  %v3253 = vld [vmem:[%s7 + $0xc] sm:$0xf]
  %v3254 = vld [vmem:[%s7 + $0x10] sm:$0xf]
  %v3255 = vld [vmem:[%s7 + $0x14] sm:$0xf]
  %v3256 = vld [vmem:[%s7 + $0x18] sm:$0xf]
  %v3257 = vld [vmem:[%s7 + $0x1c] sm:$0xf]
  %v3258 = vld [vmem:[%s7 + $0x20] sm:$0xf]
  %v3259 = vld [vmem:[%s7 + $0x24] sm:$0xf]
  %v3260 = vld [vmem:[%s7 + $0x28] sm:$0xf]
  %v3261 = vld [vmem:[%s7 + $0x2c] sm:$0xf]
  %v3262 = vld [vmem:[%s7 + $0x30] sm:$0xf]
  %v3263 = vld [vmem:[%s7 + $0x34] sm:$0xf]
  %v3264 = vld [vmem:[%s7 + $0x38] sm:$0xf]
  %v3265 = vld [vmem:[%s7 + $0x3c] sm:$0xf]
  %v3266 = vld [vmem:[%s7 + $0x40] sm:$0xf]
  %v3267 = vld [vmem:[%s7 + $0x44] sm:$0xf]
  %v3268 = vld [vmem:[%s7 + $0x48] sm:$0xf]
  %v3269 = vld [vmem:[%s7 + $0x4c] sm:$0xf]
  %v3270 = vld [vmem:[%s7 + $0x50] sm:$0xf]
  %v3271 = vld [vmem:[%s7 + $0x54] sm:$0xf]
  %v3272 = vld [vmem:[%s7 + $0x58] sm:$0xf]
  %v3273 = vld [vmem:[%s7 + $0x5c] sm:$0xf]
  %v3274 = vld [vmem:[%s7 + $0x60] sm:$0xf]
  %v3275 = vld [vmem:[%s7 + $0x64] sm:$0xf]
  %v3276 = vld [vmem:[%s7 + $0x68] sm:$0xf]
  %v3277 = vld [vmem:[%s7 + $0x6c] sm:$0xf]
  %v3278 = vld [vmem:[%s7 + $0x70] sm:$0xf]
  %v3279 = vld [vmem:[%s7 + $0x74] sm:$0xf]
  %v3280 = vld [vmem:[%s7 + $0x78] sm:$0xf]
  %v3281 = vld [vmem:[%s7 + $0x7c] sm:$0xf]
  %v3282 = vld [vmem:[%s7 + $0x80] sm:$0xf]
  %v3283 = vld [vmem:[%s7 + $0x84] sm:$0xf]
  %v3284 = vld [vmem:[%s7 + $0x88] sm:$0xf]
  %v3285 = vld [vmem:[%s7 + $0x8c] sm:$0xf]
  %v3286 = vpack.c.bf16 %v3249, %v3248
  %v3323 = vunpack.c.l.b16 %v3250
  %v3324 = vunpack.c.l.b16 %v3251
  %v3325 = vunpack.c.l.b16 %v3252
  %v3326 = vunpack.c.l.b16 %v3253
  %v3327 = vunpack.c.l.b16 %v3254
  %v3328 = vunpack.c.l.b16 %v3255
  %v3329 = vunpack.c.l.b16 %v3256
  %v3330 = vunpack.c.l.b16 %v3257
  %v3331 = vunpack.c.l.b16 %v3258
  %v3332 = vunpack.c.l.b16 %v3259
  %v3333 = vunpack.c.l.b16 %v3260
  %v3334 = vunpack.c.l.b16 %v3261
  %v3335 = vunpack.c.l.b16 %v3262
  %v3336 = vunpack.c.l.b16 %v3263
  %v3337 = vunpack.c.l.b16 %v3264
  %v3338 = vunpack.c.l.b16 %v3265
  %v3339 = vunpack.c.l.b16 %v3266
  %v3340 = vunpack.c.l.b16 %v3267
  %v3341 = vunpack.c.l.b16 %v3268
  %v3342 = vunpack.c.l.b16 %v3269
  %v3343 = vunpack.c.l.b16 %v3270
  %v3344 = vunpack.c.l.b16 %v3271
  %v3345 = vunpack.c.l.b16 %v3272
  %v3346 = vunpack.c.l.b16 %v3273
  %v3347 = vunpack.c.l.b16 %v3274
  %v3348 = vunpack.c.l.b16 %v3275
  %v3349 = vunpack.c.l.b16 %v3276
  %v3350 = vunpack.c.l.b16 %v3277
  %v3351 = vunpack.c.l.b16 %v3278
  %v3352 = vunpack.c.l.b16 %v3279
  %v3353 = vunpack.c.l.b16 %v3280
  %v3354 = vunpack.c.l.b16 %v3281
  %v3355 = vunpack.c.l.b16 %v3282
  %v3356 = vunpack.c.l.b16 %v3283
  %v3357 = vunpack.c.l.b16 %v3284
  %v3358 = vunpack.c.l.b16 %v3285
  %v3359 = vpack.c.b16 %v3324, %v3323
  %v3360 = vpack.c.b16 %v3326, %v3325
  %v3361 = vpack.c.b16 %v3328, %v3327
  %v3362 = vpack.c.b16 %v3330, %v3329
  %v3363 = vpack.c.b16 %v3332, %v3331
  %v3364 = vpack.c.b16 %v3334, %v3333
  %v3365 = vpack.c.b16 %v3336, %v3335
  %v3366 = vpack.c.b16 %v3338, %v3337
  %v3367 = vpack.c.b16 %v3340, %v3339
  %v3368 = vpack.c.b16 %v3342, %v3341
  %v3369 = vpack.c.b16 %v3344, %v3343
  %v3370 = vpack.c.b16 %v3346, %v3345
  %v3371 = vpack.c.b16 %v3348, %v3347
  %v3372 = vpack.c.b16 %v3350, %v3349
  %v3373 = vpack.c.b16 %v3352, %v3351
  %v3374 = vpack.c.b16 %v3354, %v3353
  %v3375 = vpack.c.b16 %v3356, %v3355
  %v3376 = vpack.c.b16 %v3358, %v3357
  %vm3377 = vcmask 130048
  %v3379 = vsel %vm3377, %v3359, 0
  %v3382 = vsel %vm3377, %v3360, 0
  %v3385 = vsel %vm3377, %v3361, 0
  %v3388 = vsel %vm3377, %v3362, 0
  %v3391 = vsel %vm3377, %v3363, 0
  %v3394 = vsel %vm3377, %v3364, 0
  %v3397 = vsel %vm3377, %v3365, 0
  %v3400 = vsel %vm3377, %v3366, 0
  %v3403 = vsel %vm3377, %v3367, 0
  %v3406 = vsel %vm3377, %v3368, 0
  %v3409 = vsel %vm3377, %v3369, 0
  %v3412 = vsel %vm3377, %v3370, 0
  %v3415 = vsel %vm3377, %v3371, 0
  %v3418 = vsel %vm3377, %v3372, 0
  %v3421 = vsel %vm3377, %v3373, 0
  %v3424 = vsel %vm3377, %v3374, 0
  %v3427 = vsel %vm3377, %v3375, 0
  %v3430 = vsel %vm3377, %v3376, 0
  %3432 = vmatprep.subr.bf16.mxu0 0
  %3433 = vmatpush1.bf16.msra.mxu0 %v3286
  %3434 = vmatprep.subr.bf16.mxu0 0
  %3435 = vmatpush1.bf16.msra.mxu0 0
  %3436 = vmatprep.subr.bf16.mxu0 0
  %3437 = vmatpush1.bf16.msra.mxu0 0
  %3438 = vmatprep.subr.bf16.mxu0 0
  %3439 = vmatpush1.bf16.msra.mxu0 0
  %3440 = vmatprep.subr.bf16.mxu0 0
  %3441 = vmatpush1.bf16.msra.mxu0 0
  %3442 = vmatprep.subr.bf16.mxu0 0
  %3443 = vmatpush1.bf16.msra.mxu0 0
  %3444 = vmatprep.subr.bf16.mxu0 0
  %3445 = vmatpush1.bf16.msra.mxu0 0
  %3446 = vmatprep.subr.bf16.mxu0 0
  %3447 = vmatpush1.bf16.msra.mxu0 0
  %3448 = vmatprep.subr.bf16.mxu0 0
  %3449 = vmatpush1.bf16.msra.mxu0 0
  %3450 = vmatprep.subr.bf16.mxu0 0
  %3451 = vmatpush1.bf16.msra.mxu0 0
  %3452 = vmatprep.subr.bf16.mxu0 0
  %3453 = vmatpush1.bf16.msra.mxu0 0
  %3454 = vmatprep.subr.bf16.mxu0 0
  %3455 = vmatpush1.bf16.msra.mxu0 0
  %3456 = vmatprep.subr.bf16.mxu0 0
  %3457 = vmatpush1.bf16.msra.mxu0 0
  %3458 = vmatprep.subr.bf16.mxu0 0
  %3459 = vmatpush1.bf16.msra.mxu0 0
  %3460 = vmatprep.subr.bf16.mxu0 0
  %3461 = vmatpush1.bf16.msra.mxu0 0
  %3462 = vmatprep.subr.bf16.mxu0 0
  %3463 = vmatpush1.bf16.msra.mxu0 0
  %3464 = vmatprep.mubr.bf16.mxu0 0
  %3465 = vmatmul.mubr.bf16.gmra.mrb[0].mxu0 %v3379
  %v3466 = vpop.f32.mrb[0].mxu0
  %v3467 = vadd.f32 0.0, %v3466
  %v3468 = vpop.f32.mrb[0].mxu0
  %v3469 = vpop.f32.mrb[0].mxu0
  %v3470 = vadd.f32 0.0, %v3469
  %v3471 = vpop.f32.mrb[0].mxu0
  %3472 = vmatprep.mubr.bf16.mxu0 0
  %3473 = vmatmul.mubr.bf16.gmra.mrb[0].mxu0 %v3382
  %v3474 = vpop.f32.mrb[0].mxu0
  %v3475 = vadd.f32 0.0, %v3474
  %v3476 = vpop.f32.mrb[0].mxu0
  %v3477 = vpop.f32.mrb[0].mxu0
  %v3478 = vadd.f32 0.0, %v3477
  %v3479 = vpop.f32.mrb[0].mxu0
  %3480 = vmatprep.mubr.bf16.mxu0 0
  %3481 = vmatmul.mubr.bf16.gmra.mrb[0].mxu0 %v3385
  %v3482 = vpop.f32.mrb[0].mxu0
  %v3483 = vadd.f32 0.0, %v3482
  %v3484 = vpop.f32.mrb[0].mxu0
  %v3485 = vpop.f32.mrb[0].mxu0
  %v3486 = vadd.f32 0.0, %v3485
  %v3487 = vpop.f32.mrb[0].mxu0
  %3488 = vmatprep.mubr.bf16.mxu0 0
  %3489 = vmatmul.mubr.bf16.gmra.mrb[0].mxu0 %v3388
  %v3490 = vpop.f32.mrb[0].mxu0
  %v3491 = vadd.f32 0.0, %v3490
  %v3492 = vpop.f32.mrb[0].mxu0
  %v3493 = vpop.f32.mrb[0].mxu0
  %v3494 = vadd.f32 0.0, %v3493
  %v3495 = vpop.f32.mrb[0].mxu0
  %3496 = vmatprep.mubr.bf16.mxu0 0
  %3497 = vmatmul.mubr.bf16.gmra.mrb[0].mxu0 %v3391
  %v3498 = vpop.f32.mrb[0].mxu0
  %v3499 = vadd.f32 0.0, %v3498
  %v3500 = vpop.f32.mrb[0].mxu0
  %v3501 = vpop.f32.mrb[0].mxu0
  %v3502 = vadd.f32 0.0, %v3501
  %v3503 = vpop.f32.mrb[0].mxu0
  %3504 = vmatprep.mubr.bf16.mxu0 0
  %3505 = vmatmul.mubr.bf16.gmra.mrb[0].mxu0 %v3394
  %v3506 = vpop.f32.mrb[0].mxu0
  %v3507 = vadd.f32 0.0, %v3506
  %v3508 = vpop.f32.mrb[0].mxu0
  %v3509 = vpop.f32.mrb[0].mxu0
  %v3510 = vadd.f32 0.0, %v3509
  %v3511 = vpop.f32.mrb[0].mxu0
  %3512 = vmatprep.mubr.bf16.mxu0 0
  %3513 = vmatmul.mubr.bf16.gmra.mrb[0].mxu0 %v3397
  %v3514 = vpop.f32.mrb[0].mxu0
  %v3515 = vadd.f32 0.0, %v3514
  %v3516 = vpop.f32.mrb[0].mxu0
  %v3517 = vpop.f32.mrb[0].mxu0
  %v3518 = vadd.f32 0.0, %v3517
  %v3519 = vpop.f32.mrb[0].mxu0
  %3520 = vmatprep.mubr.bf16.mxu0 0
  %3521 = vmatmul.mubr.bf16.gmra.mrb[0].mxu0 %v3400
  %v3522 = vpop.f32.mrb[0].mxu0
  %v3523 = vadd.f32 0.0, %v3522
  %v3524 = vpop.f32.mrb[0].mxu0
  %v3525 = vpop.f32.mrb[0].mxu0
  %v3526 = vadd.f32 0.0, %v3525
  %v3527 = vpop.f32.mrb[0].mxu0
  %3528 = vmatprep.mubr.bf16.mxu0 0
  %3529 = vmatmul.mubr.bf16.gmra.mrb[0].mxu0 %v3403
  %v3530 = vpop.f32.mrb[0].mxu0
  %v3531 = vadd.f32 0.0, %v3530
  %v3532 = vpop.f32.mrb[0].mxu0
  %v3533 = vpop.f32.mrb[0].mxu0
  %v3534 = vadd.f32 0.0, %v3533
  %v3535 = vpop.f32.mrb[0].mxu0
  %3536 = vmatprep.mubr.bf16.mxu0 0
  %3537 = vmatmul.mubr.bf16.gmra.mrb[0].mxu0 %v3406
  %v3538 = vpop.f32.mrb[0].mxu0
  %v3539 = vadd.f32 0.0, %v3538
  %v3540 = vpop.f32.mrb[0].mxu0
  %v3541 = vpop.f32.mrb[0].mxu0
  %v3542 = vadd.f32 0.0, %v3541
  %v3543 = vpop.f32.mrb[0].mxu0
  %3544 = vmatprep.mubr.bf16.mxu0 0
  %3545 = vmatmul.mubr.bf16.gmra.mrb[0].mxu0 %v3409
  %v3546 = vpop.f32.mrb[0].mxu0
  %v3547 = vadd.f32 0.0, %v3546
  %v3548 = vpop.f32.mrb[0].mxu0
  %v3549 = vpop.f32.mrb[0].mxu0
  %v3550 = vadd.f32 0.0, %v3549
  %v3551 = vpop.f32.mrb[0].mxu0
  %3552 = vmatprep.mubr.bf16.mxu0 0
  %3553 = vmatmul.mubr.bf16.gmra.mrb[0].mxu0 %v3412
  %v3554 = vpop.f32.mrb[0].mxu0
  %v3555 = vadd.f32 0.0, %v3554
  %v3556 = vpop.f32.mrb[0].mxu0
  %v3557 = vpop.f32.mrb[0].mxu0
  %v3558 = vadd.f32 0.0, %v3557
  %v3559 = vpop.f32.mrb[0].mxu0
  %3560 = vmatprep.mubr.bf16.mxu0 0
  %3561 = vmatmul.mubr.bf16.gmra.mrb[0].mxu0 %v3415
  %v3562 = vpop.f32.mrb[0].mxu0
  %v3563 = vadd.f32 0.0, %v3562
  %v3564 = vpop.f32.mrb[0].mxu0
  %v3565 = vpop.f32.mrb[0].mxu0
  %v3566 = vadd.f32 0.0, %v3565
  %v3567 = vpop.f32.mrb[0].mxu0
  %3568 = vmatprep.mubr.bf16.mxu0 0
  %3569 = vmatmul.mubr.bf16.gmra.mrb[0].mxu0 %v3418
  %v3570 = vpop.f32.mrb[0].mxu0
  %v3571 = vadd.f32 0.0, %v3570
  %v3572 = vpop.f32.mrb[0].mxu0
  %v3573 = vpop.f32.mrb[0].mxu0
  %v3574 = vadd.f32 0.0, %v3573
  %v3575 = vpop.f32.mrb[0].mxu0
  %3576 = vmatprep.mubr.bf16.mxu0 0
  %3577 = vmatmul.mubr.bf16.gmra.mrb[0].mxu0 %v3421
  %v3578 = vpop.f32.mrb[0].mxu0
  %v3579 = vadd.f32 0.0, %v3578
  %v3580 = vpop.f32.mrb[0].mxu0
  %v3581 = vpop.f32.mrb[0].mxu0
  %v3582 = vadd.f32 0.0, %v3581
  %v3583 = vpop.f32.mrb[0].mxu0
  %3584 = vmatprep.mubr.bf16.mxu0 0
  %3585 = vmatmul.mubr.bf16.gmra.mrb[0].mxu0 %v3424
  %v3586 = vpop.f32.mrb[0].mxu0
  %v3587 = vadd.f32 0.0, %v3586
  %v3588 = vpop.f32.mrb[0].mxu0
  %v3589 = vpop.f32.mrb[0].mxu0
  %v3590 = vadd.f32 0.0, %v3589
  %v3591 = vpop.f32.mrb[0].mxu0
  %3592 = vmatprep.mubr.bf16.mxu0 0
  %3593 = vmatmul.mubr.bf16.gmra.mrb[0].mxu0 %v3427
  %v3594 = vpop.f32.mrb[0].mxu0
  %v3595 = vadd.f32 0.0, %v3594
  %v3596 = vpop.f32.mrb[0].mxu0
  %v3597 = vpop.f32.mrb[0].mxu0
  %v3598 = vadd.f32 0.0, %v3597
  %v3599 = vpop.f32.mrb[0].mxu0
  %3600 = vmatprep.mubr.bf16.mxu0 0
  %3601 = vmatmul.mubr.bf16.gmra.mrb[0].mxu0 %v3430
  %v3602 = vpop.f32.mrb[0].mxu0
  %v3603 = vadd.f32 0.0, %v3602
  %v3604 = vpop.f32.mrb[0].mxu0
  %v3605 = vpop.f32.mrb[0].mxu0
  %v3606 = vadd.f32 0.0, %v3605
  %v3607 = vpop.f32.mrb[0].mxu0
  %3608 = vdwg.mxu0
  %s3609 = sshll.u32 %s2302, 4
  %3610 = dma.done %s409, %s3609
  %v3611 = vpack.c.bf16 %v3470, %v3467
  %v3612 = vpack.c.bf16 %v3486, %v3483
  %v3613 = vpack.c.bf16 %v3502, %v3499
  %v3614 = vpack.c.bf16 %v3518, %v3515
  %v3615 = vpack.c.bf16 %v3534, %v3531
  %v3616 = vpack.c.bf16 %v3550, %v3547
  %v3617 = vpack.c.bf16 %v3566, %v3563
  %v3618 = vpack.c.bf16 %v3582, %v3579
  %v3619 = vpack.c.bf16 %v3598, %v3595
  %v3620 = vpack.c.bf16 %v3478, %v3475
  %v3621 = vpack.c.bf16 %v3494, %v3491
  %v3622 = vpack.c.bf16 %v3510, %v3507
  %v3623 = vpack.c.bf16 %v3526, %v3523
  %v3624 = vpack.c.bf16 %v3542, %v3539
  %v3625 = vpack.c.bf16 %v3558, %v3555
  %v3626 = vpack.c.bf16 %v3574, %v3571
  %v3627 = vpack.c.bf16 %v3590, %v3587
  %v3628 = vpack.c.bf16 %v3606, %v3603
  %v3629 = vld [vmem:[#allocation4] sm:$0xff]
  %v3630 = vld [vmem:[#allocation4 + $0x8] sm:$0xff]
  %v3631 = vld [vmem:[#allocation4 + $0x10] sm:$0xff]
  %v3632 = vld [vmem:[#allocation4 + $0x18] sm:$0xff]
  %v3633 = vld [vmem:[#allocation4 + $0x20] sm:$0xff]
  %v3634 = vld [vmem:[#allocation4 + $0x28] sm:$0xff]
  %v3635 = vld [vmem:[#allocation4 + $0x30] sm:$0xff]
  %v3636 = vld [vmem:[#allocation4 + $0x38] sm:$0xff]
  %v3637 = vld [vmem:[#allocation4 + $0x40] sm:$0xff]
  %v3638 = vld [vmem:[#allocation4 + $0x48] sm:$0xff]
  %v3639 = vld [vmem:[#allocation4 + $0x50] sm:$0xff]
  %v3640 = vld [vmem:[#allocation4 + $0x58] sm:$0xff]
  %v3641 = vld [vmem:[#allocation4 + $0x60] sm:$0xff]
  %v3642 = vld [vmem:[#allocation4 + $0x68] sm:$0xff]
  %v3643 = vld [vmem:[#allocation4 + $0x70] sm:$0xff]
  %v3644 = vld [vmem:[#allocation4 + $0x78] sm:$0xff]
  %v3645 = vld [vmem:[#allocation4 + $0x80] sm:$0xff]
  %v3646 = vld [vmem:[#allocation4 + $0x88] sm:$0xff]
  %v3647 = vld [vmem:[#allocation4 + $0x90] sm:$0xff]
  %v3648 = vld [vmem:[#allocation4 + $0x98] sm:$0xff]
  %v3649 = vld [vmem:[#allocation4 + $0xa0] sm:$0xff]
  %v3650 = vld [vmem:[#allocation4 + $0xa8] sm:$0xff]
  %v3651 = vld [vmem:[#allocation4 + $0xb0] sm:$0xff]
  %v3652 = vld [vmem:[#allocation4 + $0xb8] sm:$0xff]
  %v3653 = vld [vmem:[#allocation4 + $0xc0] sm:$0xff]
  %v3654 = vld [vmem:[#allocation4 + $0xc8] sm:$0xff]
  %v3655 = vld [vmem:[#allocation4 + $0xd0] sm:$0xff]
  %v3656 = vld [vmem:[#allocation4 + $0xd8] sm:$0xff]
  %v3657 = vld [vmem:[#allocation4 + $0xe0] sm:$0xff]
  %v3658 = vld [vmem:[#allocation4 + $0xe8] sm:$0xff]
  %v3659 = vld [vmem:[#allocation4 + $0xf0] sm:$0xff]
  %v3660 = vld [vmem:[#allocation4 + $0xf8] sm:$0xff]
  %v3661 = vld [vmem:[#allocation4 + $0x100] sm:$0xff]
  %v3662 = vld [vmem:[#allocation4 + $0x108] sm:$0xff]
  %v3663 = vld [vmem:[#allocation4 + $0x110] sm:$0xff]
  %v3664 = vld [vmem:[#allocation4 + $0x118] sm:$0xff]
  %v3665 = vld [vmem:[#allocation4 + $0x120] sm:$0xff]
  %v3666 = vld [vmem:[#allocation4 + $0x128] sm:$0xff]
  %v3667 = vld [vmem:[#allocation4 + $0x130] sm:$0xff]
  %v3668 = vld [vmem:[#allocation4 + $0x138] sm:$0xff]
  %v3669 = vld [vmem:[#allocation4 + $0x140] sm:$0xff]
  %v3670 = vld [vmem:[#allocation4 + $0x148] sm:$0xff]
  %v3671 = vld [vmem:[#allocation4 + $0x150] sm:$0xff]
  %v3672 = vld [vmem:[#allocation4 + $0x158] sm:$0xff]
  %v3673 = vld [vmem:[#allocation4 + $0x160] sm:$0xff]
  %v3674 = vld [vmem:[#allocation4 + $0x168] sm:$0xff]
  %v3675 = vld [vmem:[#allocation4 + $0x170] sm:$0xff]
  %v3676 = vld [vmem:[#allocation4 + $0x178] sm:$0xff]
  %v3677 = vld [vmem:[#allocation4 + $0x180] sm:$0xff]
  %v3678 = vld [vmem:[#allocation4 + $0x188] sm:$0xff]
  %v3679 = vld [vmem:[#allocation4 + $0x190] sm:$0xff]
  %v3680 = vld [vmem:[#allocation4 + $0x198] sm:$0xff]
  %v3681 = vld [vmem:[#allocation4 + $0x1a0] sm:$0xff]
  %v3682 = vld [vmem:[#allocation4 + $0x1a8] sm:$0xff]
  %v3683 = vld [vmem:[#allocation4 + $0x1b0] sm:$0xff]
  %v3684 = vld [vmem:[#allocation4 + $0x1b8] sm:$0xff]
  %v3685 = vld [vmem:[#allocation4 + $0x1c0] sm:$0xff]
  %v3686 = vld [vmem:[#allocation4 + $0x1c8] sm:$0xff]
  %v3687 = vld [vmem:[#allocation4 + $0x1d0] sm:$0xff]
  %v3688 = vld [vmem:[#allocation4 + $0x1d8] sm:$0xff]
  %v3689 = vld [vmem:[#allocation4 + $0x1e0] sm:$0xff]
  %v3690 = vld [vmem:[#allocation4 + $0x1e8] sm:$0xff]
  %v3691 = vld [vmem:[#allocation4 + $0x1f0] sm:$0xff]
  %v3692 = vld [vmem:[#allocation4 + $0x1f8] sm:$0xff]
  %v3693 = vld [vmem:[#allocation4 + $0x200] sm:$0xff]
  %v3694 = vld [vmem:[#allocation4 + $0x208] sm:$0xff]
  %v3695 = vld [vmem:[#allocation4 + $0x210] sm:$0xff]
  %v3696 = vld [vmem:[#allocation4 + $0x218] sm:$0xff]
  %v3697 = vld [vmem:[#allocation4 + $0x220] sm:$0xff]
  %v3698 = vld [vmem:[#allocation4 + $0x228] sm:$0xff]
  %v3699 = vld [vmem:[#allocation4 + $0x230] sm:$0xff]
  %v3700 = vld [vmem:[#allocation4 + $0x238] sm:$0xff]
  %v3701 = vld [vmem:[%s8] sm:$0x1]
  %v3703 = vlaneseq
  %v3704 = vshrl.u32 %v3703, 7
  %v3705 = vsub.s32 0, %v3704
  %v3706 = vrot.slane %v3701, %v3705
  %3708 = vmatprep.subr.bf16.mxu0 0
  %3709 = vmatpush1.bf16.msra.mxu0 %v3629
  %3710 = vmatprep.subr.bf16.mxu0 0
  %3711 = vmatpush1.bf16.msra.mxu0 %v3630
  %3712 = vmatprep.subr.bf16.mxu0 0
  %3713 = vmatpush1.bf16.msra.mxu0 %v3631
  %3714 = vmatprep.subr.bf16.mxu0 0
  %3715 = vmatpush1.bf16.msra.mxu0 %v3632
  %3716 = vmatprep.subr.bf16.mxu0 0
  %3717 = vmatpush1.bf16.msra.mxu0 %v3633
  %3718 = vmatprep.subr.bf16.mxu0 0
  %3719 = vmatpush1.bf16.msra.mxu0 %v3634
  %3720 = vmatprep.subr.bf16.mxu0 0
  %3721 = vmatpush1.bf16.msra.mxu0 %v3635
  %3722 = vmatprep.subr.bf16.mxu0 0
  %3723 = vmatpush1.bf16.msra.mxu0 %v3636
  %3724 = vmatprep.subr.bf16.mxu0 0
  %3725 = vmatpush1.bf16.msra.mxu0 %v3637
  %3726 = vmatprep.subr.bf16.mxu0 0
  %3727 = vmatpush1.bf16.msra.mxu0 %v3638
  %3728 = vmatprep.subr.bf16.mxu0 0
  %3729 = vmatpush1.bf16.msra.mxu0 %v3639
  %3730 = vmatprep.subr.bf16.mxu0 0
  %3731 = vmatpush1.bf16.msra.mxu0 %v3640
  %3732 = vmatprep.subr.bf16.mxu0 0
  %3733 = vmatpush1.bf16.msra.mxu0 %v3641
  %3734 = vmatprep.subr.bf16.mxu0 0
  %3735 = vmatpush1.bf16.msra.mxu0 %v3642
  %3736 = vmatprep.subr.bf16.mxu0 0
  %3737 = vmatpush1.bf16.msra.mxu0 %v3643
  %3738 = vmatprep.subr.bf16.mxu0 0
  %3739 = vmatpush1.bf16.msra.mxu0 %v3644
  %3740 = vmatprep.mubr.bf16.mxu0 %v3612
  %3741 = vmatmul.mubr.bf16.gmra.mrb[0].mxu0 %v3611
  %v3742 = vpop.f32.mrb[0].mxu0
  %v3743 = vadd.f32 %v3706, %v3742
  %v3744 = vpop.f32.mrb[0].mxu0
  %v3745 = vpop.f32.mrb[0].mxu0
  %v3746 = vadd.f32 %v3706, %v3745
  %v3747 = vpop.f32.mrb[0].mxu0
  %3748 = vmatprep.mubr.bf16.mxu0 %v3621
  %3749 = vmatmul.mubr.bf16.gmra.mrb[0].mxu0 %v3620
  %v3750 = vpop.f32.mrb[0].mxu0
  %v3751 = vadd.f32 %v3706, %v3750
  %v3752 = vpop.f32.mrb[0].mxu0
  %v3753 = vpop.f32.mrb[0].mxu0
  %v3754 = vadd.f32 %v3706, %v3753
  %v3755 = vpop.f32.mrb[0].mxu0
  %3756 = vdwg.mxu0
  %3757 = vmatprep.subr.bf16.mxu0 0
  %3758 = vmatpush1.bf16.msra.mxu0 %v3645
  %3759 = vmatprep.subr.bf16.mxu0 0
  %3760 = vmatpush1.bf16.msra.mxu0 %v3646
  %3761 = vmatprep.subr.bf16.mxu0 0
  %3762 = vmatpush1.bf16.msra.mxu0 %v3647
  %3763 = vmatprep.subr.bf16.mxu0 0
  %3764 = vmatpush1.bf16.msra.mxu0 %v3648
  %3765 = vmatprep.subr.bf16.mxu0 0
  %3766 = vmatpush1.bf16.msra.mxu0 %v3649
  %3767 = vmatprep.subr.bf16.mxu0 0
  %3768 = vmatpush1.bf16.msra.mxu0 %v3650
  %3769 = vmatprep.subr.bf16.mxu0 0
  %3770 = vmatpush1.bf16.msra.mxu0 %v3651
  %3771 = vmatprep.subr.bf16.mxu0 0
  %3772 = vmatpush1.bf16.msra.mxu0 %v3652
  %3773 = vmatprep.subr.bf16.mxu0 0
  %3774 = vmatpush1.bf16.msra.mxu0 %v3653
  %3775 = vmatprep.subr.bf16.mxu0 0
  %3776 = vmatpush1.bf16.msra.mxu0 %v3654
  %3777 = vmatprep.subr.bf16.mxu0 0
  %3778 = vmatpush1.bf16.msra.mxu0 %v3655
  %3779 = vmatprep.subr.bf16.mxu0 0
  %3780 = vmatpush1.bf16.msra.mxu0 %v3656
  %3781 = vmatprep.subr.bf16.mxu0 0
  %3782 = vmatpush1.bf16.msra.mxu0 %v3657
  %3783 = vmatprep.subr.bf16.mxu0 0
  %3784 = vmatpush1.bf16.msra.mxu0 %v3658
  %3785 = vmatprep.subr.bf16.mxu0 0
  %3786 = vmatpush1.bf16.msra.mxu0 %v3659
  %3787 = vmatprep.subr.bf16.mxu0 0
  %3788 = vmatpush1.bf16.msra.mxu0 %v3660
  %3789 = vmatprep.mubr.bf16.mxu0 %v3614
  %3790 = vmatmul.mubr.bf16.gmra.mrb[0].mxu0 %v3613
  %v3791 = vpop.f32.mrb[0].mxu0
  %v3792 = vadd.f32 %v3743, %v3791
  %v3793 = vpop.f32.mrb[0].mxu0
  %v3794 = vpop.f32.mrb[0].mxu0
  %v3795 = vadd.f32 %v3746, %v3794
  %v3796 = vpop.f32.mrb[0].mxu0
  %3797 = vmatprep.mubr.bf16.mxu0 %v3623
  %3798 = vmatmul.mubr.bf16.gmra.mrb[0].mxu0 %v3622
  %v3799 = vpop.f32.mrb[0].mxu0
  %v3800 = vadd.f32 %v3751, %v3799
  %v3801 = vpop.f32.mrb[0].mxu0
  %v3802 = vpop.f32.mrb[0].mxu0
  %v3803 = vadd.f32 %v3754, %v3802
  %v3804 = vpop.f32.mrb[0].mxu0
  %3805 = vdwg.mxu0
  %3806 = vmatprep.subr.bf16.mxu0 0
  %3807 = vmatpush1.bf16.msra.mxu0 %v3661
  %3808 = vmatprep.subr.bf16.mxu0 0
  %3809 = vmatpush1.bf16.msra.mxu0 %v3662
  %3810 = vmatprep.subr.bf16.mxu0 0
  %3811 = vmatpush1.bf16.msra.mxu0 %v3663
  %3812 = vmatprep.subr.bf16.mxu0 0
  %3813 = vmatpush1.bf16.msra.mxu0 %v3664
  %3814 = vmatprep.subr.bf16.mxu0 0
  %3815 = vmatpush1.bf16.msra.mxu0 %v3665
  %3816 = vmatprep.subr.bf16.mxu0 0
  %3817 = vmatpush1.bf16.msra.mxu0 %v3666
  %3818 = vmatprep.subr.bf16.mxu0 0
  %3819 = vmatpush1.bf16.msra.mxu0 %v3667
  %3820 = vmatprep.subr.bf16.mxu0 0
  %3821 = vmatpush1.bf16.msra.mxu0 %v3668
  %3822 = vmatprep.subr.bf16.mxu0 0
  %3823 = vmatpush1.bf16.msra.mxu0 %v3669
  %3824 = vmatprep.subr.bf16.mxu0 0
  %3825 = vmatpush1.bf16.msra.mxu0 %v3670
  %3826 = vmatprep.subr.bf16.mxu0 0
  %3827 = vmatpush1.bf16.msra.mxu0 %v3671
  %3828 = vmatprep.subr.bf16.mxu0 0
  %3829 = vmatpush1.bf16.msra.mxu0 %v3672
  %3830 = vmatprep.subr.bf16.mxu0 0
  %3831 = vmatpush1.bf16.msra.mxu0 %v3673
  %3832 = vmatprep.subr.bf16.mxu0 0
  %3833 = vmatpush1.bf16.msra.mxu0 %v3674
  %3834 = vmatprep.subr.bf16.mxu0 0
  %3835 = vmatpush1.bf16.msra.mxu0 %v3675
  %3836 = vmatprep.subr.bf16.mxu0 0
  %3837 = vmatpush1.bf16.msra.mxu0 %v3676
  %3838 = vmatprep.mubr.bf16.mxu0 %v3616
  %3839 = vmatmul.mubr.bf16.gmra.mrb[0].mxu0 %v3615
  %v3840 = vpop.f32.mrb[0].mxu0
  %v3841 = vadd.f32 %v3792, %v3840
  %v3842 = vpop.f32.mrb[0].mxu0
  %v3843 = vpop.f32.mrb[0].mxu0
  %v3844 = vadd.f32 %v3795, %v3843
  %v3845 = vpop.f32.mrb[0].mxu0
  %3846 = vmatprep.mubr.bf16.mxu0 %v3625
  %3847 = vmatmul.mubr.bf16.gmra.mrb[0].mxu0 %v3624
  %v3848 = vpop.f32.mrb[0].mxu0
  %v3849 = vadd.f32 %v3800, %v3848
  %v3850 = vpop.f32.mrb[0].mxu0
  %v3851 = vpop.f32.mrb[0].mxu0
  %v3852 = vadd.f32 %v3803, %v3851
  %v3853 = vpop.f32.mrb[0].mxu0
  %3854 = vdwg.mxu0
  %3855 = vmatprep.subr.bf16.mxu0 0
  %3856 = vmatpush1.bf16.msra.mxu0 %v3677
  %3857 = vmatprep.subr.bf16.mxu0 0
  %3858 = vmatpush1.bf16.msra.mxu0 %v3678
  %3859 = vmatprep.subr.bf16.mxu0 0
  %3860 = vmatpush1.bf16.msra.mxu0 %v3679
  %3861 = vmatprep.subr.bf16.mxu0 0
  %3862 = vmatpush1.bf16.msra.mxu0 %v3680
  %3863 = vmatprep.subr.bf16.mxu0 0
  %3864 = vmatpush1.bf16.msra.mxu0 %v3681
  %3865 = vmatprep.subr.bf16.mxu0 0
  %3866 = vmatpush1.bf16.msra.mxu0 %v3682
  %3867 = vmatprep.subr.bf16.mxu0 0
  %3868 = vmatpush1.bf16.msra.mxu0 %v3683
  %3869 = vmatprep.subr.bf16.mxu0 0
  %3870 = vmatpush1.bf16.msra.mxu0 %v3684
  %3871 = vmatprep.subr.bf16.mxu0 0
  %3872 = vmatpush1.bf16.msra.mxu0 %v3685
  %3873 = vmatprep.subr.bf16.mxu0 0
  %3874 = vmatpush1.bf16.msra.mxu0 %v3686
  %3875 = vmatprep.subr.bf16.mxu0 0
  %3876 = vmatpush1.bf16.msra.mxu0 %v3687
  %3877 = vmatprep.subr.bf16.mxu0 0
  %3878 = vmatpush1.bf16.msra.mxu0 %v3688
  %3879 = vmatprep.subr.bf16.mxu0 0
  %3880 = vmatpush1.bf16.msra.mxu0 %v3689
  %3881 = vmatprep.subr.bf16.mxu0 0
  %3882 = vmatpush1.bf16.msra.mxu0 %v3690
  %3883 = vmatprep.subr.bf16.mxu0 0
  %3884 = vmatpush1.bf16.msra.mxu0 %v3691
  %3885 = vmatprep.subr.bf16.mxu0 0
  %3886 = vmatpush1.bf16.msra.mxu0 %v3692
  %3887 = vmatprep.mubr.bf16.mxu0 %v3618
  %3888 = vmatmul.mubr.bf16.gmra.mrb[0].mxu0 %v3617
  %v3889 = vpop.f32.mrb[0].mxu0
  %v3890 = vadd.f32 %v3841, %v3889
  %v3891 = vpop.f32.mrb[0].mxu0
  %v3892 = vpop.f32.mrb[0].mxu0
  %v3893 = vadd.f32 %v3844, %v3892
  %v3894 = vpop.f32.mrb[0].mxu0
  %3895 = vmatprep.mubr.bf16.mxu0 %v3627
  %3896 = vmatmul.mubr.bf16.gmra.mrb[0].mxu0 %v3626
  %v3897 = vpop.f32.mrb[0].mxu0
  %v3898 = vadd.f32 %v3849, %v3897
  %v3899 = vpop.f32.mrb[0].mxu0
  %v3900 = vpop.f32.mrb[0].mxu0
  %v3901 = vadd.f32 %v3852, %v3900
  %v3902 = vpop.f32.mrb[0].mxu0
  %3903 = vdwg.mxu0
  %3904 = vmatprep.subr.bf16.mxu0 0
  %3905 = vmatpush1.bf16.msra.mxu0 %v3693
  %3906 = vmatprep.subr.bf16.mxu0 0
  %3907 = vmatpush1.bf16.msra.mxu0 %v3694
  %3908 = vmatprep.subr.bf16.mxu0 0
  %3909 = vmatpush1.bf16.msra.mxu0 %v3695
  %3910 = vmatprep.subr.bf16.mxu0 0
  %3911 = vmatpush1.bf16.msra.mxu0 %v3696
  %3912 = vmatprep.subr.bf16.mxu0 0
  %3913 = vmatpush1.bf16.msra.mxu0 %v3697
  %3914 = vmatprep.subr.bf16.mxu0 0
  %3915 = vmatpush1.bf16.msra.mxu0 %v3698
  %3916 = vmatprep.subr.bf16.mxu0 0
  %3917 = vmatpush1.bf16.msra.mxu0 %v3699
  %3918 = vmatprep.subr.bf16.mxu0 0
  %3919 = vmatpush1.bf16.msra.mxu0 %v3700
  %3920 = vmatprep.subr.bf16.mxu0 0
  %3921 = vmatpush1.bf16.msra.mxu0 0
  %3922 = vmatprep.subr.bf16.mxu0 0
  %3923 = vmatpush1.bf16.msra.mxu0 0
  %3924 = vmatprep.subr.bf16.mxu0 0
  %3925 = vmatpush1.bf16.msra.mxu0 0
  %3926 = vmatprep.subr.bf16.mxu0 0
  %3927 = vmatpush1.bf16.msra.mxu0 0
  %3928 = vmatprep.subr.bf16.mxu0 0
  %3929 = vmatpush1.bf16.msra.mxu0 0
  %3930 = vmatprep.subr.bf16.mxu0 0
  %3931 = vmatpush1.bf16.msra.mxu0 0
  %3932 = vmatprep.subr.bf16.mxu0 0
  %3933 = vmatpush1.bf16.msra.mxu0 0
  %3934 = vmatprep.subr.bf16.mxu0 0
  %3935 = vmatpush1.bf16.msra.mxu0 0
  %3936 = vmatprep.mubr.bf16.mxu0 0
  %3937 = vmatmul.mubr.bf16.gmra.mrb[0].mxu0 %v3619
  %v3938 = vpop.f32.mrb[0].mxu0
  %v3939 = vadd.f32 %v3890, %v3938
  %v3940 = vpop.f32.mrb[0].mxu0
  %v3941 = vpop.f32.mrb[0].mxu0
  %v3942 = vadd.f32 %v3893, %v3941
  %v3943 = vpop.f32.mrb[0].mxu0
  %3944 = vmatprep.mubr.bf16.mxu0 0
  %3945 = vmatmul.mubr.bf16.gmra.mrb[0].mxu0 %v3628
  %v3946 = vpop.f32.mrb[0].mxu0
  %v3947 = vadd.f32 %v3898, %v3946
  %v3948 = vpop.f32.mrb[0].mxu0
  %v3949 = vpop.f32.mrb[0].mxu0
  %v3950 = vadd.f32 %v3901, %v3949
  %v3951 = vpop.f32.mrb[0].mxu0
  %3952 = vdwg.mxu0
  %v3953 = vmax.f32 %v3939, 0.0
  %v3954 = vmax.f32 %v3942, 0.0
  %v3955 = vmax.f32 %v3947, 0.0
  %v3956 = vmax.f32 %v3950, 0.0
  %s3957 = smul.u32 4, 64
  %s3958 = smul.u32 %s3957, 2
  %s3959 = sshll.u32 %s3958, 4
  %3960 = dma.done %s594, %s3959
  %v3961 = vpack.c.bf16 %v3953, %v3953
  %v3962 = vpack.c.bf16 %v3954, %v3954
  %v3963 = vpack.c.bf16 %v3955, %v3955
  %v3964 = vpack.c.bf16 %v3956, %v3956
  %v3965 = vld [vmem:[#allocation5] sm:$0xff]
  %v3966 = vld [vmem:[#allocation5 + $0x8] sm:$0xff]
  %v3967 = vld [vmem:[#allocation5 + $0x10] sm:$0xff]
  %v3968 = vld [vmem:[#allocation5 + $0x18] sm:$0xff]
  %v3969 = vld [vmem:[#allocation5 + $0x20] sm:$0xff]
  %v3970 = vld [vmem:[#allocation5 + $0x28] sm:$0xff]
  %v3971 = vld [vmem:[#allocation5 + $0x30] sm:$0xff]
  %v3972 = vld [vmem:[#allocation5 + $0x38] sm:$0xff]
  %v3973 = vld [vmem:[#allocation5 + $0x40] sm:$0xff]
  %v3974 = vld [vmem:[#allocation5 + $0x48] sm:$0xff]
  %v3975 = vld [vmem:[#allocation5 + $0x50] sm:$0xff]
  %v3976 = vld [vmem:[#allocation5 + $0x58] sm:$0xff]
  %v3977 = vld [vmem:[#allocation5 + $0x60] sm:$0xff]
  %v3978 = vld [vmem:[#allocation5 + $0x68] sm:$0xff]
  %v3979 = vld [vmem:[#allocation5 + $0x70] sm:$0xff]
  %v3980 = vld [vmem:[#allocation5 + $0x78] sm:$0xff]
  %v3981 = vld [vmem:[#allocation5 + $0x80] sm:$0xff]
  %v3982 = vld [vmem:[#allocation5 + $0x88] sm:$0xff]
  %v3983 = vld [vmem:[#allocation5 + $0x90] sm:$0xff]
  %v3984 = vld [vmem:[#allocation5 + $0x98] sm:$0xff]
  %v3985 = vld [vmem:[#allocation5 + $0xa0] sm:$0xff]
  %v3986 = vld [vmem:[#allocation5 + $0xa8] sm:$0xff]
  %v3987 = vld [vmem:[#allocation5 + $0xb0] sm:$0xff]
  %v3988 = vld [vmem:[#allocation5 + $0xb8] sm:$0xff]
  %v3989 = vld [vmem:[#allocation5 + $0xc0] sm:$0xff]
  %v3990 = vld [vmem:[#allocation5 + $0xc8] sm:$0xff]
  %v3991 = vld [vmem:[#allocation5 + $0xd0] sm:$0xff]
  %v3992 = vld [vmem:[#allocation5 + $0xd8] sm:$0xff]
  %v3993 = vld [vmem:[#allocation5 + $0xe0] sm:$0xff]
  %v3994 = vld [vmem:[#allocation5 + $0xe8] sm:$0xff]
  %v3995 = vld [vmem:[#allocation5 + $0xf0] sm:$0xff]
  %v3996 = vld [vmem:[#allocation5 + $0xf8] sm:$0xff]
  %v3997 = vld [vmem:[#allocation5 + $0x100] sm:$0xff]
  %v3998 = vld [vmem:[#allocation5 + $0x108] sm:$0xff]
  %v3999 = vld [vmem:[#allocation5 + $0x110] sm:$0xff]
  %v4000 = vld [vmem:[#allocation5 + $0x118] sm:$0xff]
  %v4001 = vld [vmem:[#allocation5 + $0x120] sm:$0xff]
  %v4002 = vld [vmem:[#allocation5 + $0x128] sm:$0xff]
  %v4003 = vld [vmem:[#allocation5 + $0x130] sm:$0xff]
  %v4004 = vld [vmem:[#allocation5 + $0x138] sm:$0xff]
  %v4005 = vld [vmem:[#allocation5 + $0x140] sm:$0xff]
  %v4006 = vld [vmem:[#allocation5 + $0x148] sm:$0xff]
  %v4007 = vld [vmem:[#allocation5 + $0x150] sm:$0xff]
  %v4008 = vld [vmem:[#allocation5 + $0x158] sm:$0xff]
  %v4009 = vld [vmem:[#allocation5 + $0x160] sm:$0xff]
  %v4010 = vld [vmem:[#allocation5 + $0x168] sm:$0xff]
  %v4011 = vld [vmem:[#allocation5 + $0x170] sm:$0xff]
  %v4012 = vld [vmem:[#allocation5 + $0x178] sm:$0xff]
  %v4013 = vld [vmem:[#allocation5 + $0x180] sm:$0xff]
  %v4014 = vld [vmem:[#allocation5 + $0x188] sm:$0xff]
  %v4015 = vld [vmem:[#allocation5 + $0x190] sm:$0xff]
  %v4016 = vld [vmem:[#allocation5 + $0x198] sm:$0xff]
  %v4017 = vld [vmem:[#allocation5 + $0x1a0] sm:$0xff]
  %v4018 = vld [vmem:[#allocation5 + $0x1a8] sm:$0xff]
  %v4019 = vld [vmem:[#allocation5 + $0x1b0] sm:$0xff]
  %v4020 = vld [vmem:[#allocation5 + $0x1b8] sm:$0xff]
  %v4021 = vld [vmem:[#allocation5 + $0x1c0] sm:$0xff]
  %v4022 = vld [vmem:[#allocation5 + $0x1c8] sm:$0xff]
  %v4023 = vld [vmem:[#allocation5 + $0x1d0] sm:$0xff]
  %v4024 = vld [vmem:[#allocation5 + $0x1d8] sm:$0xff]
  %v4025 = vld [vmem:[#allocation5 + $0x1e0] sm:$0xff]
  %v4026 = vld [vmem:[#allocation5 + $0x1e8] sm:$0xff]
  %v4027 = vld [vmem:[#allocation5 + $0x1f0] sm:$0xff]
  %v4028 = vld [vmem:[#allocation5 + $0x1f8] sm:$0xff]
  %v4029 = vld [vmem:[%s9] sm:$0x3]
  %v4031 = vlaneseq
  %v4032 = vshrl.u32 %v4031, 7
  %v4033 = vsub.s32 0, %v4032
  %v4034 = vrot.slane %v4029, %v4033
  %v4035 = vlaneseq
  %v4036 = vshrl.u32 %v4035, 7
  %v4037 = vsub.s32 1, %v4036
  %v4038 = vrot.slane %v4029, %v4037
  %4041 = vmatprep.subr.bf16.mxu0 %v3966
  %4042 = vmatpush1.bf16.msra.mxu0 %v3965
  %4043 = vmatprep.subr.bf16.mxu0 %v3968
  %4044 = vmatpush1.bf16.msra.mxu0 %v3967
  %4045 = vmatprep.subr.bf16.mxu0 %v3970
  %4046 = vmatpush1.bf16.msra.mxu0 %v3969
  %4047 = vmatprep.subr.bf16.mxu0 %v3972
  %4048 = vmatpush1.bf16.msra.mxu0 %v3971
  %4049 = vmatprep.subr.bf16.mxu0 %v3974
  %4050 = vmatpush1.bf16.msra.mxu0 %v3973
  %4051 = vmatprep.subr.bf16.mxu0 %v3976
  %4052 = vmatpush1.bf16.msra.mxu0 %v3975
  %4053 = vmatprep.subr.bf16.mxu0 %v3978
  %4054 = vmatpush1.bf16.msra.mxu0 %v3977
  %4055 = vmatprep.subr.bf16.mxu0 %v3980
  %4056 = vmatpush1.bf16.msra.mxu0 %v3979
  %4057 = vmatprep.subr.bf16.mxu0 %v3982
  %4058 = vmatpush1.bf16.msra.mxu0 %v3981
  %4059 = vmatprep.subr.bf16.mxu0 %v3984
  %4060 = vmatpush1.bf16.msra.mxu0 %v3983
  %4061 = vmatprep.subr.bf16.mxu0 %v3986
  %4062 = vmatpush1.bf16.msra.mxu0 %v3985
  %4063 = vmatprep.subr.bf16.mxu0 %v3988
  %4064 = vmatpush1.bf16.msra.mxu0 %v3987
  %4065 = vmatprep.subr.bf16.mxu0 %v3990
  %4066 = vmatpush1.bf16.msra.mxu0 %v3989
  %4067 = vmatprep.subr.bf16.mxu0 %v3992
  %4068 = vmatpush1.bf16.msra.mxu0 %v3991
  %4069 = vmatprep.subr.bf16.mxu0 %v3994
  %4070 = vmatpush1.bf16.msra.mxu0 %v3993
  %4071 = vmatprep.subr.bf16.mxu0 %v3996
  %4072 = vmatpush1.bf16.msra.mxu0 %v3995
  %4073 = vmatprep.mubr.bf16.mxu0 %v3962
  %4074 = vmatmul.mubr.bf16.gmra.mrb[0].mxu0 %v3961
  %v4075 = vpop.f32.mrb[0].mxu0
  %v4076 = vadd.f32 %v4034, %v4075
  %v4077 = vpop.f32.mrb[0].mxu0
  %v4078 = vadd.f32 %v4038, %v4077
  %v4079 = vpop.f32.mrb[0].mxu0
  %v4080 = vpop.f32.mrb[0].mxu0
  %4081 = vdwg.mxu0
  %4082 = vmatprep.subr.bf16.mxu0 %v3998
  %4083 = vmatpush1.bf16.msra.mxu0 %v3997
  %4084 = vmatprep.subr.bf16.mxu0 %v4000
  %4085 = vmatpush1.bf16.msra.mxu0 %v3999
  %4086 = vmatprep.subr.bf16.mxu0 %v4002
  %4087 = vmatpush1.bf16.msra.mxu0 %v4001
  %4088 = vmatprep.subr.bf16.mxu0 %v4004
  %4089 = vmatpush1.bf16.msra.mxu0 %v4003
  %4090 = vmatprep.subr.bf16.mxu0 %v4006
  %4091 = vmatpush1.bf16.msra.mxu0 %v4005
  %4092 = vmatprep.subr.bf16.mxu0 %v4008
  %4093 = vmatpush1.bf16.msra.mxu0 %v4007
  %4094 = vmatprep.subr.bf16.mxu0 %v4010
  %4095 = vmatpush1.bf16.msra.mxu0 %v4009
  %4096 = vmatprep.subr.bf16.mxu0 %v4012
  %4097 = vmatpush1.bf16.msra.mxu0 %v4011
  %4098 = vmatprep.subr.bf16.mxu0 %v4014
  %4099 = vmatpush1.bf16.msra.mxu0 %v4013
  %4100 = vmatprep.subr.bf16.mxu0 %v4016
  %4101 = vmatpush1.bf16.msra.mxu0 %v4015
  %4102 = vmatprep.subr.bf16.mxu0 %v4018
  %4103 = vmatpush1.bf16.msra.mxu0 %v4017
  %4104 = vmatprep.subr.bf16.mxu0 %v4020
  %4105 = vmatpush1.bf16.msra.mxu0 %v4019
  %4106 = vmatprep.subr.bf16.mxu0 %v4022
  %4107 = vmatpush1.bf16.msra.mxu0 %v4021
  %4108 = vmatprep.subr.bf16.mxu0 %v4024
  %4109 = vmatpush1.bf16.msra.mxu0 %v4023
  %4110 = vmatprep.subr.bf16.mxu0 %v4026
  %4111 = vmatpush1.bf16.msra.mxu0 %v4025
  %4112 = vmatprep.subr.bf16.mxu0 %v4028
  %4113 = vmatpush1.bf16.msra.mxu0 %v4027
  %4114 = vmatprep.mubr.bf16.mxu0 %v3964
  %4115 = vmatmul.mubr.bf16.gmra.mrb[0].mxu0 %v3963
  %v4116 = vpop.f32.mrb[0].mxu0
  %v4117 = vadd.f32 %v4076, %v4116
  %v4118 = vpop.f32.mrb[0].mxu0
  %v4119 = vadd.f32 %v4078, %v4118
  %v4120 = vpop.f32.mrb[0].mxu0
  %v4121 = vpop.f32.mrb[0].mxu0
  %4122 = vdwg.mxu0
  %4123 = vst [vmem:[%s14] sm:$0xff] %v4117
  %4124 = vst [vmem:[%s14 + $0x8] sm:$0xff] %v4119
  // Predicated region
  $region181: #{cnn_clf_forward.1} parent=0 // pred_check
    _
  $region182: #{cnn_clf_forward.1} parent=0 // pred_check_branch
    %4126 = sbr.rel (0) target = $region184
  $region183: #{cnn_clf_forward.1} parent=0 // pred_region
    _
  $region184: #{cnn_clf_forward.1} parent=0 // pred_fallthru
    _
  // Predicated region
  $region185: #{cnn_clf_forward.1} parent=0 // pred_check
    _
  $region186: #{cnn_clf_forward.1} parent=0 // pred_check_branch
    %4128 = sbr.rel (0) target = $region188
  $region187: #{cnn_clf_forward.1} parent=0 // pred_region
    _
  $region188: #{cnn_clf_forward.1} parent=0 // pred_fallthru
    _
  %4129 = vsyncmov [#allocation6]
  %s4130 = vpop.sfrf %4129
  %p4131 = scmp.eq.s32.totalorder %s4130, 0
  %p4132 = pneg %p4131
  %4134 = shalt.err (%p4132)
  %s4135 = scalar_lea.sflag [#allocation6], 1
  %4136 = vsyncmov %s4135
  %s4137 = vpop.sfrf %4136
  %p4138 = scmp.eq.s32.totalorder %s4137, 0
  %p4139 = pneg %p4138
  %4141 = shalt.err (%p4139)
  %s4142 = scalar_lea.sflag [#allocation6], 2
  %4143 = vsyncmov %s4142
  %s4144 = vpop.sfrf %4143
  %p4145 = scmp.eq.s32.totalorder %s4144, 0
  %p4146 = pneg %p4145
  %4148 = shalt.err (%p4146)
  %s4149 = scalar_lea.sflag [#allocation6], 3
  %4150 = vsyncmov %s4149
  %s4151 = vpop.sfrf %4150
  %p4152 = scmp.eq.s32.totalorder %s4151, 0
  %p4153 = pneg %p4152
  %4155 = shalt.err (%p4153)

</llo_original>
